<compile_context>
chip_gen: v7x
topology: tpu7x:2x2x1
jax: 0.10.0
libtpu: 0.0.40
codegen_flags: <defaults>
</compile_context>

<pallas_src>
import functools

import jax
import jax.numpy as jnp
from jax.experimental import pallas as pl
from jax.experimental.pallas import tpu as pltpu

LANES = 128                      # vreg lane width: pad channel/class dims to it
_VMEM_LIMIT = 32 * 1024 * 1024   # explicit scoped-VMEM budget (usage is ~2 MiB)


def _round_up(x, m):
    return (x + m - 1) // m * m


def _pick_batch_tile(n, max_tile=8):
    """Largest divisor of n with batch_tile <= min(8, n//2) (keeps grid >= 2)."""
    cap = max(1, min(max_tile, n // 2)) if n >= 2 else 1
    for t in range(cap, 0, -1):
        if n % t == 0:
            return t
    return 1


# ----------------------------------------------------------------------------
# Fused kernel: conv3x3+ReLU+pool, conv3x3+ReLU+pool, linear head (bt images)
# ----------------------------------------------------------------------------
def _convnet_kernel(x_ref, w1_ref, b1_ref, w2_ref, b2_ref, fcw_ref, fcb_ref,
                    o_ref, pool1_ref, pool2_ref, h1p_ref, *, H, W, bt):
    c0 = x_ref.shape[-1]          # conv1 in-channels (padded to 8)
    c1p = w1_ref.shape[-1]        # conv1 out-channels (padded to 128)
    c2p = w2_ref.shape[-1]        # conv2 out-channels (padded to 128)
    H2, W2, H4, W4 = H // 2, W // 2, H // 4, W // 4

    # ---- conv1: 3x3 'same' conv = 9 shifted MXU matmuls, register-accumulated
    acc = jnp.zeros((bt * H * W, c1p), jnp.float32)
    for t in range(9):
        dh, dw = divmod(t, 3)
        patch = x_ref[:, dh:dh + H, dw:dw + W, :].reshape(bt * H * W, c0)
        acc = acc + jnp.dot(patch, w1_ref[t],
                            preferred_element_type=jnp.float32)

    # ---- 2x2 maxpool: H via aligned row-group regroup, W via one strided read
    accr = acc.reshape(bt, H2, 2, W, c1p)                       # pair rows (H)
    pool1_ref[...] = jnp.maximum(accr[:, :, 0],
                                 accr[:, :, 1]).reshape(bt * H2 * W, c1p)
    half1 = bt * H2 * W // 2
    mw1 = jnp.maximum(pool1_ref[pl.ds(0, half1, 2), :],         # pair cols (W)
                      pool1_ref[pl.ds(1, half1, 2), :])         # (bt*H2*W2, c1p)
    p1 = jnp.maximum(mw1 + b1_ref[...], 0.0)                    # bias + ReLU

    # ---- keep the spatially zero-padded conv1 output resident in VMEM -------
    h1p_ref[...] = jnp.zeros_like(h1p_ref)                      # zero borders
    h1p_ref[:, 1:1 + H2, 1:1 + W2, :] = p1.reshape(bt, H2, W2, c1p)

    # ---- conv2: in-register im2col (lane-aligned concat of 9 taps) + 1 matmul
    taps = []
    for t in range(9):
        dh, dw = divmod(t, 3)
        taps.append(h1p_ref[:, dh:dh + H2, dw:dw + W2, :]
                    .reshape(bt * H2 * W2, c1p))
    col2 = jnp.concatenate(taps, axis=-1)                       # (bt*H2*W2, 9*c1p)
    y2 = jnp.dot(col2.astype(jnp.bfloat16), w2_ref[...],
                 preferred_element_type=jnp.float32)

    # ---- 2x2 maxpool + bias + ReLU -------------------------------------------
    y2r = y2.reshape(bt, H4, 2, W2, c2p)
    pool2_ref[...] = jnp.maximum(y2r[:, :, 0],
                                 y2r[:, :, 1]).reshape(bt * H4 * W2, c2p)
    half2 = bt * H4 * W2 // 2
    mw2 = jnp.maximum(pool2_ref[pl.ds(0, half2, 2), :],
                      pool2_ref[pl.ds(1, half2, 2), :])         # (bt*H4*W4, c2p)
    p2 = jnp.maximum(mw2 + b2_ref[...], 0.0)

    # ---- linear head: flatten (h, w, c) features into lanes -> one matmul ----
    p2r = p2.reshape(bt, H4 * W4, c2p)
    feats = jnp.concatenate([p2r[:, p, :] for p in range(H4 * W4)], axis=-1)
    logits = jnp.dot(feats.astype(jnp.bfloat16), fcw_ref[...],
                     preferred_element_type=jnp.float32) + fcb_ref[...]
    o_ref[0] = logits                                           # (bt, NCp)


# ----------------------------------------------------------------------------
# pallas_call wrapper
# ----------------------------------------------------------------------------
def convnet_forward(xp, w1, b1, w2, b2, fcw, fcb, *, batch_tile):
    """xp: (N, H+2, W+2, C0) spatially padded NHWC -> padded logits (N, NCp)."""
    n, hp2, wp2, c0 = xp.shape
    H, W = hp2 - 2, wp2 - 2
    bt = batch_tile
    assert H % 4 == 0 and W % 4 == 0, (H, W)
    assert n % bt == 0, (n, bt)
    c1p = w1.shape[-1]
    c2p = w2.shape[-1]
    ncp = fcw.shape[-1]
    kern = functools.partial(_convnet_kernel, H=H, W=W, bt=bt)
    out = pl.pallas_call(
        kern,
        out_shape=jax.ShapeDtypeStruct((n // bt, bt, ncp), jnp.float32),
        grid=(n // bt,),
        in_specs=[
            pl.BlockSpec((bt, hp2, wp2, c0), lambda i: (i, 0, 0, 0)),
            pl.BlockSpec((9, c0, c1p), lambda i: (0, 0, 0)),
            pl.BlockSpec((1, c1p), lambda i: (0, 0)),
            pl.BlockSpec((9 * c1p, c2p), lambda i: (0, 0)),
            pl.BlockSpec((1, c2p), lambda i: (0, 0)),
            pl.BlockSpec(((H // 4) * (W // 4) * c2p, ncp), lambda i: (0, 0)),
            pl.BlockSpec((1, ncp), lambda i: (0, 0)),
        ],
        out_specs=pl.BlockSpec((1, bt, ncp), lambda i: (i, 0, 0)),
        scratch_shapes=[
            pltpu.VMEM((bt * (H // 2) * W, c1p), jnp.float32),        # pool1
            pltpu.VMEM((bt * (H // 4) * (W // 2), c2p), jnp.float32), # pool2
            pltpu.VMEM((bt, H // 2 + 2, W // 2 + 2, c1p), jnp.float32),  # h1 pad
        ],
        compiler_params=pltpu.CompilerParams(
            dimension_semantics=("parallel",),
            vmem_limit_bytes=_VMEM_LIMIT),
    )(xp, w1, b1, w2, b2, fcw, fcb)
    return out.reshape(n, ncp)


# ----------------------------------------------------------------------------
# Parameters (PyTorch-like raw layout) + one-time repack for the kernel
# ----------------------------------------------------------------------------
def init_params(key, in_channels=3, num_classes=10, c1=16, c2=32, spatial=16):
    k1, k2, k3 = jax.random.split(key, 3)
    s = spatial // 4
    return {
        "conv1_w": jax.random.normal(k1, (c1, in_channels, 3, 3), jnp.float32)
        * (2.0 / (in_channels * 9)) ** 0.5,
        "conv1_b": jnp.zeros((c1,), jnp.float32),
        "conv2_w": jax.random.normal(k2, (c2, c1, 3, 3), jnp.float32)
        * (2.0 / (c1 * 9)) ** 0.5,
        "conv2_b": jnp.zeros((c2,), jnp.float32),
        # FC over NCHW-flattened (C2, H/4, W/4) features (PyTorch convention)
        "fc_w": jax.random.normal(k3, (c2 * s * s, num_classes), jnp.float32)
        * (1.0 / (c2 * s * s)) ** 0.5,
        "fc_b": jnp.zeros((num_classes,), jnp.float32),
    }


def prepare_params(params, *, spatial=16):
    """One-time repack: im2col weight layouts, 128-lane pads, bf16 weights."""
    c1, cin = params["conv1_w"].shape[:2]
    c2 = params["conv2_w"].shape[0]
    num_classes = params["fc_b"].shape[0]
    s = spatial // 4
    c0 = max(_round_up(cin, 8), 8)            # conv1 in-channel pad (sublane tile)
    c1p = _round_up(c1, LANES)
    c2p = _round_up(c2, LANES)
    ncp = _round_up(num_classes, LANES)

    # conv1: per-tap (9, C0, C1p), f32 (tiny; K per tap = C0)
    w1 = jnp.transpose(params["conv1_w"], (2, 3, 1, 0))          # (3,3,Cin,C1)
    w1 = jnp.pad(w1, ((0, 0), (0, 0), (0, c0 - cin), (0, c1p - c1)))
    w1 = w1.reshape(9, c0, c1p).astype(jnp.float32)

    # conv2: merged im2col layout (9*C1p, C2p), bf16 (matches lane-concat order)
    w2 = jnp.transpose(params["conv2_w"], (2, 3, 1, 0))          # (3,3,C1,C2)
    w2 = jnp.pad(w2, ((0, 0), (0, 0), (0, c1p - c1), (0, c2p - c2)))
    w2 = w2.reshape(9 * c1p, c2p).astype(jnp.bfloat16)

    # FC: remap NCHW flatten (c, h, w) -> (h, w, c) row order, pad, bf16
    fc = params["fc_w"].reshape(c2, s, s, num_classes).transpose(1, 2, 0, 3)
    fc = jnp.pad(fc, ((0, 0), (0, 0), (0, c2p - c2), (0, ncp - num_classes)))
    fcw = fc.reshape(s * s * c2p, ncp).astype(jnp.bfloat16)

    return {
        "conv1_w": w1,
        "conv1_b": jnp.pad(params["conv1_b"], (0, c1p - c1)).reshape(1, c1p),
        "conv2_w": w2,
        "conv2_b": jnp.pad(params["conv2_b"], (0, c2p - c2)).reshape(1, c2p),
        "fc_w": fcw,
        "fc_b": jnp.pad(params["fc_b"], (0, ncp - num_classes)).reshape(1, ncp),
    }


# ----------------------------------------------------------------------------
# Forward (= Classifier.forward for the 'convnet' backbone)
# ----------------------------------------------------------------------------
@functools.partial(jax.jit, static_argnames=("num_classes", "batch_tile"))
def classifier_forward(pparams, x_nchw, num_classes, batch_tile):
    c0 = pparams["conv1_w"].shape[1]
    x = jnp.transpose(x_nchw, (0, 2, 3, 1)).astype(jnp.float32)    # NHWC, once
    cin = x.shape[-1]
    x = jnp.pad(x, ((0, 0), (1, 1), (1, 1), (0, c0 - cin)))        # spatial+chan
    logits_p = convnet_forward(
        x, pparams["conv1_w"], pparams["conv1_b"],
        pparams["conv2_w"], pparams["conv2_b"],
        pparams["fc_w"], pparams["fc_b"], batch_tile=batch_tile)
    return logits_p[:, :num_classes]


# ----------------------------------------------------------------------------
# Pure-JAX reference (no Pallas) for the correctness check
# ----------------------------------------------------------------------------
def reference_forward(params, x_nchw):
    def conv(x, w, b):
        y = jax.lax.conv_general_dilated(
            x, w, window_strides=(1, 1), padding="SAME",
            dimension_numbers=("NCHW", "OIHW", "NCHW"))
        return jnp.maximum(y + b[None, :, None, None], 0.0)

    def maxpool2(x):
        n, c, h, w = x.shape
        return x.reshape(n, c, h // 2, 2, w // 2, 2).max(axis=(3, 5))

    h = maxpool2(conv(x_nchw, params["conv1_w"], params["conv1_b"]))
    h = maxpool2(conv(h, params["conv2_w"], params["conv2_b"]))
    return h.reshape(h.shape[0], -1) @ params["fc_w"] + params["fc_b"]


if __name__ == "__main__":
    key = jax.random.PRNGKey(0)
    kx, kp = jax.random.split(key)

    batch, in_c, spatial, num_classes = 2, 3, 16, 10
    x = jax.random.normal(kx, (batch, in_c, spatial, spatial), jnp.float32)
    params = init_params(kp, in_channels=in_c, num_classes=num_classes,
                         spatial=spatial)
    pparams = prepare_params(params, spatial=spatial)

    bt = _pick_batch_tile(batch)          # =1 here -> grid=(2,), both v7x cores
    out = classifier_forward(pparams, x, num_classes=num_classes, batch_tile=bt)
    out = jax.block_until_ready(out)
    assert out.shape == (batch, num_classes), out.shape

    ref = jax.block_until_ready(reference_forward(params, x))
    err = float(jnp.max(jnp.abs(out - ref)))
    # bf16 conv2/FC weights + in-kernel bf16 activation casts => looser tolerance
    assert jnp.allclose(out, ref, atol=5e-2, rtol=5e-2), err

    # TODO(synk): other backbone choices (AlexNet, mobilenet*, squeezenet) and
    # pretrained-checkpoint loading from the original Classifier are host-side /
    # out of scope for this Pallas forward kernel.
    print("KERNEL_OK")
</pallas_src>

<mosaic_0001>
module attributes {stable_mosaic.version = 11 : i64} {
  func.func @_convnet_kernel(%arg0: i32, %arg1: memref<1x18x18x8xf32, #tpu.memory_space<vmem>>, %arg2: memref<9x8x128xf32, #tpu.memory_space<vmem>>, %arg3: memref<1x128xf32, #tpu.memory_space<vmem>>, %arg4: memref<1152x128xbf16, #tpu.memory_space<vmem>>, %arg5: memref<1x128xf32, #tpu.memory_space<vmem>>, %arg6: memref<2048x128xbf16, #tpu.memory_space<vmem>>, %arg7: memref<1x128xf32, #tpu.memory_space<vmem>>, %arg8: memref<1x1x128xf32, #tpu.memory_space<vmem>>, %arg9: memref<128x128xf32, #tpu.memory_space<vmem>>, %arg10: memref<32x128xf32, #tpu.memory_space<vmem>>, %arg11: memref<1x10x10x128xf32, #tpu.memory_space<vmem>>) attributes {dimension_semantics = [#tpu.dimension_semantics<parallel>], iteration_bounds = array<i64: 2>, scalar_prefetch = 0 : i64, scratch_operands = 3 : i64, tpu.core_type = #tpu.core_type<tc>, window_params = [{transform_indices = @transform_0, window_bounds = array<i64: 1, 18, 18, 8>}, {pipeline_mode = #tpu.pipeline_mode<synchronous>, transform_indices = @transform_1, window_bounds = array<i64: 9, 8, 128>}, {pipeline_mode = #tpu.pipeline_mode<synchronous>, transform_indices = @transform_2, window_bounds = array<i64: 1, 128>}, {pipeline_mode = #tpu.pipeline_mode<synchronous>, transform_indices = @transform_3, window_bounds = array<i64: 1152, 128>}, {pipeline_mode = #tpu.pipeline_mode<synchronous>, transform_indices = @transform_4, window_bounds = array<i64: 1, 128>}, {pipeline_mode = #tpu.pipeline_mode<synchronous>, transform_indices = @transform_5, window_bounds = array<i64: 2048, 128>}, {pipeline_mode = #tpu.pipeline_mode<synchronous>, transform_indices = @transform_6, window_bounds = array<i64: 1, 128>}, {transform_indices = @transform_7, window_bounds = array<i64: 1, 1, 128>}]} {
    %cst = arith.constant 0.000000e+00 : f32
    %0 = vector.broadcast %cst : f32 to vector<256x128xf32>
    %c0 = arith.constant 0 : index
    %c0_0 = arith.constant 0 : index
    %c0_1 = arith.constant 0 : index
    %c0_2 = arith.constant 0 : index
    %1 = vector.load %arg1[%c0, %c0_0, %c0_1, %c0_2] : memref<1x18x18x8xf32, #tpu.memory_space<vmem>>, vector<1x16x16x8xf32>
    %2 = vector.shape_cast %1 : vector<1x16x16x8xf32> to vector<256x8xf32>
    %c0_3 = arith.constant 0 : index
    %c0_4 = arith.constant 0 : index
    %c0_5 = arith.constant 0 : index
    %3 = vector.load %arg2[%c0_3, %c0_4, %c0_5] : memref<9x8x128xf32, #tpu.memory_space<vmem>>, vector<1x8x128xf32>
    %4 = vector.shape_cast %3 : vector<1x8x128xf32> to vector<8x128xf32>
    %cst_6 = arith.constant dense<0.000000e+00> : vector<256x128xf32>
    %5 = tpu.matmul %2, %4, %cst_6 {dimension_numbers = #tpu.dot_dimension_numbers<[1], [0], [0], [1], [0, 0, 1, 1], [], []>} : vector<256x8xf32>, vector<8x128xf32>, vector<256x128xf32> -> vector<256x128xf32>
    %6 = arith.addf %0, %5 : vector<256x128xf32>
    %c0_7 = arith.constant 0 : index
    %c0_8 = arith.constant 0 : index
    %c1 = arith.constant 1 : index
    %c0_9 = arith.constant 0 : index
    %7 = vector.load %arg1[%c0_7, %c0_8, %c1, %c0_9] : memref<1x18x18x8xf32, #tpu.memory_space<vmem>>, vector<1x16x16x8xf32>
    %8 = vector.shape_cast %7 : vector<1x16x16x8xf32> to vector<256x8xf32>
    %c1_10 = arith.constant 1 : index
    %c0_11 = arith.constant 0 : index
    %c0_12 = arith.constant 0 : index
    %9 = vector.load %arg2[%c1_10, %c0_11, %c0_12] : memref<9x8x128xf32, #tpu.memory_space<vmem>>, vector<1x8x128xf32>
    %10 = vector.shape_cast %9 : vector<1x8x128xf32> to vector<8x128xf32>
    %cst_13 = arith.constant dense<0.000000e+00> : vector<256x128xf32>
    %11 = tpu.matmul %8, %10, %cst_13 {dimension_numbers = #tpu.dot_dimension_numbers<[1], [0], [0], [1], [0, 0, 1, 1], [], []>} : vector<256x8xf32>, vector<8x128xf32>, vector<256x128xf32> -> vector<256x128xf32>
    %12 = arith.addf %6, %11 : vector<256x128xf32>
    %c0_14 = arith.constant 0 : index
    %c0_15 = arith.constant 0 : index
    %c2 = arith.constant 2 : index
    %c0_16 = arith.constant 0 : index
    %13 = vector.load %arg1[%c0_14, %c0_15, %c2, %c0_16] : memref<1x18x18x8xf32, #tpu.memory_space<vmem>>, vector<1x16x16x8xf32>
    %14 = vector.shape_cast %13 : vector<1x16x16x8xf32> to vector<256x8xf32>
    %c2_17 = arith.constant 2 : index
    %c0_18 = arith.constant 0 : index
    %c0_19 = arith.constant 0 : index
    %15 = vector.load %arg2[%c2_17, %c0_18, %c0_19] : memref<9x8x128xf32, #tpu.memory_space<vmem>>, vector<1x8x128xf32>
    %16 = vector.shape_cast %15 : vector<1x8x128xf32> to vector<8x128xf32>
    %cst_20 = arith.constant dense<0.000000e+00> : vector<256x128xf32>
    %17 = tpu.matmul %14, %16, %cst_20 {dimension_numbers = #tpu.dot_dimension_numbers<[1], [0], [0], [1], [0, 0, 1, 1], [], []>} : vector<256x8xf32>, vector<8x128xf32>, vector<256x128xf32> -> vector<256x128xf32>
    %18 = arith.addf %12, %17 : vector<256x128xf32>
    %c0_21 = arith.constant 0 : index
    %c1_22 = arith.constant 1 : index
    %c0_23 = arith.constant 0 : index
    %c0_24 = arith.constant 0 : index
    %19 = vector.load %arg1[%c0_21, %c1_22, %c0_23, %c0_24] : memref<1x18x18x8xf32, #tpu.memory_space<vmem>>, vector<1x16x16x8xf32>
    %20 = vector.shape_cast %19 : vector<1x16x16x8xf32> to vector<256x8xf32>
    %c3 = arith.constant 3 : index
    %c0_25 = arith.constant 0 : index
    %c0_26 = arith.constant 0 : index
    %21 = vector.load %arg2[%c3, %c0_25, %c0_26] : memref<9x8x128xf32, #tpu.memory_space<vmem>>, vector<1x8x128xf32>
    %22 = vector.shape_cast %21 : vector<1x8x128xf32> to vector<8x128xf32>
    %cst_27 = arith.constant dense<0.000000e+00> : vector<256x128xf32>
    %23 = tpu.matmul %20, %22, %cst_27 {dimension_numbers = #tpu.dot_dimension_numbers<[1], [0], [0], [1], [0, 0, 1, 1], [], []>} : vector<256x8xf32>, vector<8x128xf32>, vector<256x128xf32> -> vector<256x128xf32>
    %24 = arith.addf %18, %23 : vector<256x128xf32>
    %c0_28 = arith.constant 0 : index
    %c1_29 = arith.constant 1 : index
    %c1_30 = arith.constant 1 : index
    %c0_31 = arith.constant 0 : index
    %25 = vector.load %arg1[%c0_28, %c1_29, %c1_30, %c0_31] : memref<1x18x18x8xf32, #tpu.memory_space<vmem>>, vector<1x16x16x8xf32>
    %26 = vector.shape_cast %25 : vector<1x16x16x8xf32> to vector<256x8xf32>
    %c4 = arith.constant 4 : index
    %c0_32 = arith.constant 0 : index
    %c0_33 = arith.constant 0 : index
    %27 = vector.load %arg2[%c4, %c0_32, %c0_33] : memref<9x8x128xf32, #tpu.memory_space<vmem>>, vector<1x8x128xf32>
    %28 = vector.shape_cast %27 : vector<1x8x128xf32> to vector<8x128xf32>
    %cst_34 = arith.constant dense<0.000000e+00> : vector<256x128xf32>
    %29 = tpu.matmul %26, %28, %cst_34 {dimension_numbers = #tpu.dot_dimension_numbers<[1], [0], [0], [1], [0, 0, 1, 1], [], []>} : vector<256x8xf32>, vector<8x128xf32>, vector<256x128xf32> -> vector<256x128xf32>
    %30 = arith.addf %24, %29 : vector<256x128xf32>
    %c0_35 = arith.constant 0 : index
    %c1_36 = arith.constant 1 : index
    %c2_37 = arith.constant 2 : index
    %c0_38 = arith.constant 0 : index
    %31 = vector.load %arg1[%c0_35, %c1_36, %c2_37, %c0_38] : memref<1x18x18x8xf32, #tpu.memory_space<vmem>>, vector<1x16x16x8xf32>
    %32 = vector.shape_cast %31 : vector<1x16x16x8xf32> to vector<256x8xf32>
    %c5 = arith.constant 5 : index
    %c0_39 = arith.constant 0 : index
    %c0_40 = arith.constant 0 : index
    %33 = vector.load %arg2[%c5, %c0_39, %c0_40] : memref<9x8x128xf32, #tpu.memory_space<vmem>>, vector<1x8x128xf32>
    %34 = vector.shape_cast %33 : vector<1x8x128xf32> to vector<8x128xf32>
    %cst_41 = arith.constant dense<0.000000e+00> : vector<256x128xf32>
    %35 = tpu.matmul %32, %34, %cst_41 {dimension_numbers = #tpu.dot_dimension_numbers<[1], [0], [0], [1], [0, 0, 1, 1], [], []>} : vector<256x8xf32>, vector<8x128xf32>, vector<256x128xf32> -> vector<256x128xf32>
    %36 = arith.addf %30, %35 : vector<256x128xf32>
    %c0_42 = arith.constant 0 : index
    %c2_43 = arith.constant 2 : index
    %c0_44 = arith.constant 0 : index
    %c0_45 = arith.constant 0 : index
    %37 = vector.load %arg1[%c0_42, %c2_43, %c0_44, %c0_45] : memref<1x18x18x8xf32, #tpu.memory_space<vmem>>, vector<1x16x16x8xf32>
    %38 = vector.shape_cast %37 : vector<1x16x16x8xf32> to vector<256x8xf32>
    %c6 = arith.constant 6 : index
    %c0_46 = arith.constant 0 : index
    %c0_47 = arith.constant 0 : index
    %39 = vector.load %arg2[%c6, %c0_46, %c0_47] : memref<9x8x128xf32, #tpu.memory_space<vmem>>, vector<1x8x128xf32>
    %40 = vector.shape_cast %39 : vector<1x8x128xf32> to vector<8x128xf32>
    %cst_48 = arith.constant dense<0.000000e+00> : vector<256x128xf32>
    %41 = tpu.matmul %38, %40, %cst_48 {dimension_numbers = #tpu.dot_dimension_numbers<[1], [0], [0], [1], [0, 0, 1, 1], [], []>} : vector<256x8xf32>, vector<8x128xf32>, vector<256x128xf32> -> vector<256x128xf32>
    %42 = arith.addf %36, %41 : vector<256x128xf32>
    %c0_49 = arith.constant 0 : index
    %c2_50 = arith.constant 2 : index
    %c1_51 = arith.constant 1 : index
    %c0_52 = arith.constant 0 : index
    %43 = vector.load %arg1[%c0_49, %c2_50, %c1_51, %c0_52] : memref<1x18x18x8xf32, #tpu.memory_space<vmem>>, vector<1x16x16x8xf32>
    %44 = vector.shape_cast %43 : vector<1x16x16x8xf32> to vector<256x8xf32>
    %c7 = arith.constant 7 : index
    %c0_53 = arith.constant 0 : index
    %c0_54 = arith.constant 0 : index
    %45 = vector.load %arg2[%c7, %c0_53, %c0_54] : memref<9x8x128xf32, #tpu.memory_space<vmem>>, vector<1x8x128xf32>
    %46 = vector.shape_cast %45 : vector<1x8x128xf32> to vector<8x128xf32>
    %cst_55 = arith.constant dense<0.000000e+00> : vector<256x128xf32>
    %47 = tpu.matmul %44, %46, %cst_55 {dimension_numbers = #tpu.dot_dimension_numbers<[1], [0], [0], [1], [0, 0, 1, 1], [], []>} : vector<256x8xf32>, vector<8x128xf32>, vector<256x128xf32> -> vector<256x128xf32>
    %48 = arith.addf %42, %47 : vector<256x128xf32>
    %c0_56 = arith.constant 0 : index
    %c2_57 = arith.constant 2 : index
    %c2_58 = arith.constant 2 : index
    %c0_59 = arith.constant 0 : index
    %49 = vector.load %arg1[%c0_56, %c2_57, %c2_58, %c0_59] : memref<1x18x18x8xf32, #tpu.memory_space<vmem>>, vector<1x16x16x8xf32>
    %50 = vector.shape_cast %49 : vector<1x16x16x8xf32> to vector<256x8xf32>
    %c8 = arith.constant 8 : index
    %c0_60 = arith.constant 0 : index
    %c0_61 = arith.constant 0 : index
    %51 = vector.load %arg2[%c8, %c0_60, %c0_61] : memref<9x8x128xf32, #tpu.memory_space<vmem>>, vector<1x8x128xf32>
    %52 = vector.shape_cast %51 : vector<1x8x128xf32> to vector<8x128xf32>
    %cst_62 = arith.constant dense<0.000000e+00> : vector<256x128xf32>
    %53 = tpu.matmul %50, %52, %cst_62 {dimension_numbers = #tpu.dot_dimension_numbers<[1], [0], [0], [1], [0, 0, 1, 1], [], []>} : vector<256x8xf32>, vector<8x128xf32>, vector<256x128xf32> -> vector<256x128xf32>
    %54 = arith.addf %48, %53 : vector<256x128xf32>
    %55 = vector.shape_cast %54 : vector<256x128xf32> to vector<1x8x2x16x128xf32>
    %56 = vector.extract_strided_slice %55 {offsets = [0, 0, 0, 0, 0], sizes = [1, 8, 1, 16, 128], strides = [1, 1, 1, 1, 1]} : vector<1x8x2x16x128xf32> to vector<1x8x1x16x128xf32>
    %57 = vector.shape_cast %56 : vector<1x8x1x16x128xf32> to vector<1x8x16x128xf32>
    %58 = vector.extract_strided_slice %55 {offsets = [0, 0, 1, 0, 0], sizes = [1, 8, 1, 16, 128], strides = [1, 1, 1, 1, 1]} : vector<1x8x2x16x128xf32> to vector<1x8x1x16x128xf32>
    %59 = vector.shape_cast %58 : vector<1x8x1x16x128xf32> to vector<1x8x16x128xf32>
    %60 = arith.maximumf %57, %59 : vector<1x8x16x128xf32>
    %61 = vector.shape_cast %60 : vector<1x8x16x128xf32> to vector<128x128xf32>
    %c0_63 = arith.constant 0 : index
    %c0_64 = arith.constant 0 : index
    %62 = vector.load %arg9[%c0_63, %c0_64] : memref<128x128xf32, #tpu.memory_space<vmem>>, vector<128x128xf32>
    tpu.vector_store %arg9[%c0_63, %c0_64], %61 {strides = array<i32>} : memref<128x128xf32, #tpu.memory_space<vmem>>, vector<128x128xf32>,
    %c0_65 = arith.constant 0 : index
    %c0_66 = arith.constant 0 : index
    %63 = tpu.strided_load %arg9[%c0_65, %c0_66] {strides = array<i32: 2, 1>} : memref<128x128xf32, #tpu.memory_space<vmem>>, vector<64x128xf32>
    %c1_67 = arith.constant 1 : index
    %c0_68 = arith.constant 0 : index
    %64 = tpu.strided_load %arg9[%c1_67, %c0_68] {strides = array<i32: 2, 1>} : memref<128x128xf32, #tpu.memory_space<vmem>>, vector<64x128xf32>
    %65 = arith.maximumf %63, %64 : vector<64x128xf32>
    %c0_69 = arith.constant 0 : index
    %c0_70 = arith.constant 0 : index
    %66 = vector.load %arg3[%c0_69, %c0_70] : memref<1x128xf32, #tpu.memory_space<vmem>>, vector<1x128xf32>
    %67 = vector.broadcast %66 : vector<1x128xf32> to vector<64x128xf32>
    %68 = arith.addf %65, %67 : vector<64x128xf32>
    %cst_71 = arith.constant 0.000000e+00 : f32
    %69 = vector.broadcast %cst_71 : f32 to vector<64x128xf32>
    %70 = arith.maximumf %68, %69 : vector<64x128xf32>
    %cst_72 = arith.constant 0.000000e+00 : f32
    %71 = vector.broadcast %cst_72 : f32 to vector<1x10x10x128xf32>
    %c0_73 = arith.constant 0 : index
    %c0_74 = arith.constant 0 : index
    %c0_75 = arith.constant 0 : index
    %c0_76 = arith.constant 0 : index
    %72 = vector.load %arg11[%c0_73, %c0_74, %c0_75, %c0_76] : memref<1x10x10x128xf32, #tpu.memory_space<vmem>>, vector<1x10x10x128xf32>
    tpu.vector_store %arg11[%c0_73, %c0_74, %c0_75, %c0_76], %71 {strides = array<i32>} : memref<1x10x10x128xf32, #tpu.memory_space<vmem>>, vector<1x10x10x128xf32>,
    %73 = vector.shape_cast %70 : vector<64x128xf32> to vector<1x8x8x128xf32>
    %c0_77 = arith.constant 0 : index
    %c1_78 = arith.constant 1 : index
    %c1_79 = arith.constant 1 : index
    %c0_80 = arith.constant 0 : index
    %74 = vector.load %arg11[%c0_77, %c1_78, %c1_79, %c0_80] : memref<1x10x10x128xf32, #tpu.memory_space<vmem>>, vector<1x8x8x128xf32>
    tpu.vector_store %arg11[%c0_77, %c1_78, %c1_79, %c0_80], %73 {strides = array<i32>} : memref<1x10x10x128xf32, #tpu.memory_space<vmem>>, vector<1x8x8x128xf32>,
    %c0_81 = arith.constant 0 : index
    %c0_82 = arith.constant 0 : index
    %c0_83 = arith.constant 0 : index
    %c0_84 = arith.constant 0 : index
    %75 = vector.load %arg11[%c0_81, %c0_82, %c0_83, %c0_84] : memref<1x10x10x128xf32, #tpu.memory_space<vmem>>, vector<1x8x8x128xf32>
    %76 = vector.shape_cast %75 : vector<1x8x8x128xf32> to vector<64x128xf32>
    %c0_85 = arith.constant 0 : index
    %c0_86 = arith.constant 0 : index
    %c1_87 = arith.constant 1 : index
    %c0_88 = arith.constant 0 : index
    %77 = vector.load %arg11[%c0_85, %c0_86, %c1_87, %c0_88] : memref<1x10x10x128xf32, #tpu.memory_space<vmem>>, vector<1x8x8x128xf32>
    %78 = vector.shape_cast %77 : vector<1x8x8x128xf32> to vector<64x128xf32>
    %c0_89 = arith.constant 0 : index
    %c0_90 = arith.constant 0 : index
    %c2_91 = arith.constant 2 : index
    %c0_92 = arith.constant 0 : index
    %79 = vector.load %arg11[%c0_89, %c0_90, %c2_91, %c0_92] : memref<1x10x10x128xf32, #tpu.memory_space<vmem>>, vector<1x8x8x128xf32>
    %80 = vector.shape_cast %79 : vector<1x8x8x128xf32> to vector<64x128xf32>
    %c0_93 = arith.constant 0 : index
    %c1_94 = arith.constant 1 : index
    %c0_95 = arith.constant 0 : index
    %c0_96 = arith.constant 0 : index
    %81 = vector.load %arg11[%c0_93, %c1_94, %c0_95, %c0_96] : memref<1x10x10x128xf32, #tpu.memory_space<vmem>>, vector<1x8x8x128xf32>
    %82 = vector.shape_cast %81 : vector<1x8x8x128xf32> to vector<64x128xf32>
    %c0_97 = arith.constant 0 : index
    %c1_98 = arith.constant 1 : index
    %c1_99 = arith.constant 1 : index
    %c0_100 = arith.constant 0 : index
    %83 = vector.load %arg11[%c0_97, %c1_98, %c1_99, %c0_100] : memref<1x10x10x128xf32, #tpu.memory_space<vmem>>, vector<1x8x8x128xf32>
    %84 = vector.shape_cast %83 : vector<1x8x8x128xf32> to vector<64x128xf32>
    %c0_101 = arith.constant 0 : index
    %c1_102 = arith.constant 1 : index
    %c2_103 = arith.constant 2 : index
    %c0_104 = arith.constant 0 : index
    %85 = vector.load %arg11[%c0_101, %c1_102, %c2_103, %c0_104] : memref<1x10x10x128xf32, #tpu.memory_space<vmem>>, vector<1x8x8x128xf32>
    %86 = vector.shape_cast %85 : vector<1x8x8x128xf32> to vector<64x128xf32>
    %c0_105 = arith.constant 0 : index
    %c2_106 = arith.constant 2 : index
    %c0_107 = arith.constant 0 : index
    %c0_108 = arith.constant 0 : index
    %87 = vector.load %arg11[%c0_105, %c2_106, %c0_107, %c0_108] : memref<1x10x10x128xf32, #tpu.memory_space<vmem>>, vector<1x8x8x128xf32>
    %88 = vector.shape_cast %87 : vector<1x8x8x128xf32> to vector<64x128xf32>
    %c0_109 = arith.constant 0 : index
    %c2_110 = arith.constant 2 : index
    %c1_111 = arith.constant 1 : index
    %c0_112 = arith.constant 0 : index
    %89 = vector.load %arg11[%c0_109, %c2_110, %c1_111, %c0_112] : memref<1x10x10x128xf32, #tpu.memory_space<vmem>>, vector<1x8x8x128xf32>
    %90 = vector.shape_cast %89 : vector<1x8x8x128xf32> to vector<64x128xf32>
    %c0_113 = arith.constant 0 : index
    %c2_114 = arith.constant 2 : index
    %c2_115 = arith.constant 2 : index
    %c0_116 = arith.constant 0 : index
    %91 = vector.load %arg11[%c0_113, %c2_114, %c2_115, %c0_116] : memref<1x10x10x128xf32, #tpu.memory_space<vmem>>, vector<1x8x8x128xf32>
    %92 = vector.shape_cast %91 : vector<1x8x8x128xf32> to vector<64x128xf32>
    %93 = tpu.concatenate %76, %78, %80, %82, %84, %86, %88, %90, %92 in 1 : vector<64x128xf32>, vector<64x128xf32>, vector<64x128xf32>, vector<64x128xf32>, vector<64x128xf32>, vector<64x128xf32>, vector<64x128xf32>, vector<64x128xf32>, vector<64x128xf32> -> vector<64x1152xf32>
    %94 = arith.truncf %93 : vector<64x1152xf32> to vector<64x1152xbf16>
    %c0_117 = arith.constant 0 : index
    %c0_118 = arith.constant 0 : index
    %95 = vector.load %arg4[%c0_117, %c0_118] : memref<1152x128xbf16, #tpu.memory_space<vmem>>, vector<1152x128xbf16>
    %cst_119 = arith.constant dense<0.000000e+00> : vector<64x128xf32>
    %96 = tpu.matmul %94, %95, %cst_119 {dimension_numbers = #tpu.dot_dimension_numbers<[1], [0], [0], [1], [0, 0, 1, 1], [], []>} : vector<64x1152xbf16>, vector<1152x128xbf16>, vector<64x128xf32> -> vector<64x128xf32>
    %97 = vector.shape_cast %96 : vector<64x128xf32> to vector<1x4x2x8x128xf32>
    %98 = vector.extract_strided_slice %97 {offsets = [0, 0, 0, 0, 0], sizes = [1, 4, 1, 8, 128], strides = [1, 1, 1, 1, 1]} : vector<1x4x2x8x128xf32> to vector<1x4x1x8x128xf32>
    %99 = vector.shape_cast %98 : vector<1x4x1x8x128xf32> to vector<1x4x8x128xf32>
    %100 = vector.extract_strided_slice %97 {offsets = [0, 0, 1, 0, 0], sizes = [1, 4, 1, 8, 128], strides = [1, 1, 1, 1, 1]} : vector<1x4x2x8x128xf32> to vector<1x4x1x8x128xf32>
    %101 = vector.shape_cast %100 : vector<1x4x1x8x128xf32> to vector<1x4x8x128xf32>
    %102 = arith.maximumf %99, %101 : vector<1x4x8x128xf32>
    %103 = vector.shape_cast %102 : vector<1x4x8x128xf32> to vector<32x128xf32>
    %c0_120 = arith.constant 0 : index
    %c0_121 = arith.constant 0 : index
    %104 = vector.load %arg10[%c0_120, %c0_121] : memref<32x128xf32, #tpu.memory_space<vmem>>, vector<32x128xf32>
    tpu.vector_store %arg10[%c0_120, %c0_121], %103 {strides = array<i32>} : memref<32x128xf32, #tpu.memory_space<vmem>>, vector<32x128xf32>,
    %c0_122 = arith.constant 0 : index
    %c0_123 = arith.constant 0 : index
    %105 = tpu.strided_load %arg10[%c0_122, %c0_123] {strides = array<i32: 2, 1>} : memref<32x128xf32, #tpu.memory_space<vmem>>, vector<16x128xf32>
    %c1_124 = arith.constant 1 : index
    %c0_125 = arith.constant 0 : index
    %106 = tpu.strided_load %arg10[%c1_124, %c0_125] {strides = array<i32: 2, 1>} : memref<32x128xf32, #tpu.memory_space<vmem>>, vector<16x128xf32>
    %107 = arith.maximumf %105, %106 : vector<16x128xf32>
    %c0_126 = arith.constant 0 : index
    %c0_127 = arith.constant 0 : index
    %108 = vector.load %arg5[%c0_126, %c0_127] : memref<1x128xf32, #tpu.memory_space<vmem>>, vector<1x128xf32>
    %109 = vector.broadcast %108 : vector<1x128xf32> to vector<16x128xf32>
    %110 = arith.addf %107, %109 : vector<16x128xf32>
    %cst_128 = arith.constant 0.000000e+00 : f32
    %111 = vector.broadcast %cst_128 : f32 to vector<16x128xf32>
    %112 = arith.maximumf %110, %111 : vector<16x128xf32>
    %113 = vector.shape_cast %112 : vector<16x128xf32> to vector<1x16x128xf32>
    %114 = vector.extract_strided_slice %113 {offsets = [0, 0, 0], sizes = [1, 1, 128], strides = [1, 1, 1]} : vector<1x16x128xf32> to vector<1x1x128xf32>
    %115 = vector.shape_cast %114 : vector<1x1x128xf32> to vector<1x128xf32>
    %116 = vector.extract_strided_slice %113 {offsets = [0, 1, 0], sizes = [1, 1, 128], strides = [1, 1, 1]} : vector<1x16x128xf32> to vector<1x1x128xf32>
    %117 = vector.shape_cast %116 : vector<1x1x128xf32> to vector<1x128xf32>
    %118 = vector.extract_strided_slice %113 {offsets = [0, 2, 0], sizes = [1, 1, 128], strides = [1, 1, 1]} : vector<1x16x128xf32> to vector<1x1x128xf32>
    %119 = vector.shape_cast %118 : vector<1x1x128xf32> to vector<1x128xf32>
    %120 = vector.extract_strided_slice %113 {offsets = [0, 3, 0], sizes = [1, 1, 128], strides = [1, 1, 1]} : vector<1x16x128xf32> to vector<1x1x128xf32>
    %121 = vector.shape_cast %120 : vector<1x1x128xf32> to vector<1x128xf32>
    %122 = vector.extract_strided_slice %113 {offsets = [0, 4, 0], sizes = [1, 1, 128], strides = [1, 1, 1]} : vector<1x16x128xf32> to vector<1x1x128xf32>
    %123 = vector.shape_cast %122 : vector<1x1x128xf32> to vector<1x128xf32>
    %124 = vector.extract_strided_slice %113 {offsets = [0, 5, 0], sizes = [1, 1, 128], strides = [1, 1, 1]} : vector<1x16x128xf32> to vector<1x1x128xf32>
    %125 = vector.shape_cast %124 : vector<1x1x128xf32> to vector<1x128xf32>
    %126 = vector.extract_strided_slice %113 {offsets = [0, 6, 0], sizes = [1, 1, 128], strides = [1, 1, 1]} : vector<1x16x128xf32> to vector<1x1x128xf32>
    %127 = vector.shape_cast %126 : vector<1x1x128xf32> to vector<1x128xf32>
    %128 = vector.extract_strided_slice %113 {offsets = [0, 7, 0], sizes = [1, 1, 128], strides = [1, 1, 1]} : vector<1x16x128xf32> to vector<1x1x128xf32>
    %129 = vector.shape_cast %128 : vector<1x1x128xf32> to vector<1x128xf32>
    %130 = vector.extract_strided_slice %113 {offsets = [0, 8, 0], sizes = [1, 1, 128], strides = [1, 1, 1]} : vector<1x16x128xf32> to vector<1x1x128xf32>
    %131 = vector.shape_cast %130 : vector<1x1x128xf32> to vector<1x128xf32>
    %132 = vector.extract_strided_slice %113 {offsets = [0, 9, 0], sizes = [1, 1, 128], strides = [1, 1, 1]} : vector<1x16x128xf32> to vector<1x1x128xf32>
    %133 = vector.shape_cast %132 : vector<1x1x128xf32> to vector<1x128xf32>
    %134 = vector.extract_strided_slice %113 {offsets = [0, 10, 0], sizes = [1, 1, 128], strides = [1, 1, 1]} : vector<1x16x128xf32> to vector<1x1x128xf32>
    %135 = vector.shape_cast %134 : vector<1x1x128xf32> to vector<1x128xf32>
    %136 = vector.extract_strided_slice %113 {offsets = [0, 11, 0], sizes = [1, 1, 128], strides = [1, 1, 1]} : vector<1x16x128xf32> to vector<1x1x128xf32>
    %137 = vector.shape_cast %136 : vector<1x1x128xf32> to vector<1x128xf32>
    %138 = vector.extract_strided_slice %113 {offsets = [0, 12, 0], sizes = [1, 1, 128], strides = [1, 1, 1]} : vector<1x16x128xf32> to vector<1x1x128xf32>
    %139 = vector.shape_cast %138 : vector<1x1x128xf32> to vector<1x128xf32>
    %140 = vector.extract_strided_slice %113 {offsets = [0, 13, 0], sizes = [1, 1, 128], strides = [1, 1, 1]} : vector<1x16x128xf32> to vector<1x1x128xf32>
    %141 = vector.shape_cast %140 : vector<1x1x128xf32> to vector<1x128xf32>
    %142 = vector.extract_strided_slice %113 {offsets = [0, 14, 0], sizes = [1, 1, 128], strides = [1, 1, 1]} : vector<1x16x128xf32> to vector<1x1x128xf32>
    %143 = vector.shape_cast %142 : vector<1x1x128xf32> to vector<1x128xf32>
    %144 = vector.extract_strided_slice %113 {offsets = [0, 15, 0], sizes = [1, 1, 128], strides = [1, 1, 1]} : vector<1x16x128xf32> to vector<1x1x128xf32>
    %145 = vector.shape_cast %144 : vector<1x1x128xf32> to vector<1x128xf32>
    %146 = tpu.concatenate %115, %117, %119, %121, %123, %125, %127, %129, %131, %133, %135, %137, %139, %141, %143, %145 in 1 : vector<1x128xf32>, vector<1x128xf32>, vector<1x128xf32>, vector<1x128xf32>, vector<1x128xf32>, vector<1x128xf32>, vector<1x128xf32>, vector<1x128xf32>, vector<1x128xf32>, vector<1x128xf32>, vector<1x128xf32>, vector<1x128xf32>, vector<1x128xf32>, vector<1x128xf32>, vector<1x128xf32>, vector<1x128xf32> -> vector<1x2048xf32>
    %147 = arith.truncf %146 : vector<1x2048xf32> to vector<1x2048xbf16>
    %c0_129 = arith.constant 0 : index
    %c0_130 = arith.constant 0 : index
    %148 = vector.load %arg6[%c0_129, %c0_130] : memref<2048x128xbf16, #tpu.memory_space<vmem>>, vector<2048x128xbf16>
    %cst_131 = arith.constant dense<0.000000e+00> : vector<1x128xf32>
    %149 = tpu.matmul %147, %148, %cst_131 {dimension_numbers = #tpu.dot_dimension_numbers<[1], [0], [0], [1], [0, 0, 1, 1], [], []>} : vector<1x2048xbf16>, vector<2048x128xbf16>, vector<1x128xf32> -> vector<1x128xf32>
    %c0_132 = arith.constant 0 : index
    %c0_133 = arith.constant 0 : index
    %150 = vector.load %arg7[%c0_132, %c0_133] : memref<1x128xf32, #tpu.memory_space<vmem>>, vector<1x128xf32>
    %151 = arith.addf %149, %150 : vector<1x128xf32>
    %c0_134 = arith.constant 0 : index
    %c0_135 = arith.constant 0 : index
    %c0_136 = arith.constant 0 : index
    %152 = vector.load %arg8[%c0_134, %c0_135, %c0_136] : memref<1x1x128xf32, #tpu.memory_space<vmem>>, vector<1x1x128xf32>
    %153 = vector.shape_cast %152 : vector<1x1x128xf32> to vector<1x128xf32>
    %154 = vector.shape_cast %151 : vector<1x128xf32> to vector<1x1x128xf32>
    tpu.vector_store %arg8[%c0_134, %c0_135, %c0_136], %154 {strides = array<i32>} : memref<1x1x128xf32, #tpu.memory_space<vmem>>, vector<1x1x128xf32>,
    return
  }
  func.func @transform_0(%arg0: i32) -> (i32, i32, i32, i32) {
    %c0_i32 = arith.constant 0 : i32
    %c0_i32_0 = arith.constant 0 : i32
    %c0_i32_1 = arith.constant 0 : i32
    %c0_i32_2 = arith.constant 0 : i32
    return %arg0, %c0_i32, %c0_i32_0, %c0_i32_1 : i32, i32, i32, i32
  }
  func.func @transform_1(%arg0: i32) -> (i32, i32, i32) {
    %c0_i32 = arith.constant 0 : i32
    %c0_i32_0 = arith.constant 0 : i32
    %c0_i32_1 = arith.constant 0 : i32
    %c0_i32_2 = arith.constant 0 : i32
    return %c0_i32, %c0_i32_0, %c0_i32_1 : i32, i32, i32
  }
  func.func @transform_2(%arg0: i32) -> (i32, i32) {
    %c0_i32 = arith.constant 0 : i32
    %c0_i32_0 = arith.constant 0 : i32
    %c0_i32_1 = arith.constant 0 : i32
    return %c0_i32, %c0_i32_0 : i32, i32
  }
  func.func @transform_3(%arg0: i32) -> (i32, i32) {
    %c0_i32 = arith.constant 0 : i32
    %c0_i32_0 = arith.constant 0 : i32
    %c0_i32_1 = arith.constant 0 : i32
    return %c0_i32, %c0_i32_0 : i32, i32
  }
  func.func @transform_4(%arg0: i32) -> (i32, i32) {
    %c0_i32 = arith.constant 0 : i32
    %c0_i32_0 = arith.constant 0 : i32
    %c0_i32_1 = arith.constant 0 : i32
    return %c0_i32, %c0_i32_0 : i32, i32
  }
  func.func @transform_5(%arg0: i32) -> (i32, i32) {
    %c0_i32 = arith.constant 0 : i32
    %c0_i32_0 = arith.constant 0 : i32
    %c0_i32_1 = arith.constant 0 : i32
    return %c0_i32, %c0_i32_0 : i32, i32
  }
  func.func @transform_6(%arg0: i32) -> (i32, i32) {
    %c0_i32 = arith.constant 0 : i32
    %c0_i32_0 = arith.constant 0 : i32
    %c0_i32_1 = arith.constant 0 : i32
    return %c0_i32, %c0_i32_0 : i32, i32
  }
  func.func @transform_7(%arg0: i32) -> (i32, i32, i32) {
    %c0_i32 = arith.constant 0 : i32
    %c0_i32_0 = arith.constant 0 : i32
    %c0_i32_1 = arith.constant 0 : i32
    return %arg0, %c0_i32, %c0_i32_0 : i32, i32, i32
  }
}

</mosaic_0001>

<llo_original>
// kernel: classifier_forward.1
$region0: #{classifier_forward.1}
  #allocation0 [shape = 'u32[]', space=smem, size = 0x4, offset = 0x4, fixed_abs, tag = 'smem constant byte address 0x4 - core index']
  #allocation1 [shape = 'u32[144,128]{1,0:T(1,128)}', space=vmem, size = 0x12000, scoped, tag = 'internal scratch']
  #allocation2 [shape = 'f32[128,128]{1,0:T(8,128)}', space=vmem, size = 0x10000, scoped, tag = 'scratch operand']
  #allocation3 [shape = 'f32[32,128]{1,0:T(8,128)}', space=vmem, size = 0x4000, scoped, tag = 'scratch operand']
  #allocation4 [shape = 'f32[1,10,10,128]{3,2,1,0:T(8,128)}', space=vmem, size = 0x14000, scoped, tag = 'scratch operand']
  %s0 = inlined_call_operand.vmem [shape: f32[2,18,18,8], index: 0, kind: input, shape index: {}]
  %s1 = inlined_call_operand.vmem [shape: f32[9,8,128], index: 1, kind: input, shape index: {}]
  %s2 = inlined_call_operand.vmem [shape: f32[1,128], index: 2, kind: input, shape index: {}]
  %s3 = inlined_call_operand.vmem [shape: bf16[1152,128], index: 3, kind: input, shape index: {}]
  %s4 = inlined_call_operand.vmem [shape: f32[1,128], index: 4, kind: input, shape index: {}]
  %s5 = inlined_call_operand.vmem [shape: bf16[2048,128], index: 5, kind: input, shape index: {}]
  %s6 = inlined_call_operand.vmem [shape: f32[1,128], index: 6, kind: input, shape index: {}]
  %s7 = inlined_call_operand.hbm [shape: f32[2,1,128], index: 7, kind: output, shape index: {}]
  %s8 = sld [smem:[#allocation0]]
  $region61: #{classifier_forward.1} parent=0
    _
  %s10 = ssub.s32 1, %s8
  %s11 = scalar_select 0, %s10, %s8
  $region1: #{classifier_forward.1} parent=0
    #allocation5 [shape = 'u8[1024]{0}', space=vmem, size = 0x400, scoped, tag = 'output window, operand 0']
    #allocation6 [shape = 's32[2]{0}', space=sflag, size = 0x8, scoped, tag = 'scoped memory for classifier_forward.1']
    %12 = vsyncpa [#allocation6], 0
    %s13 = scalar_lea.sflag [#allocation6], 1
    %14 = vsyncpa %s13, 0
    loop: start=0, step=1, limit=4
    $region2: #{classifier_forward.1} parent=1 // loop_pre_header
      _
    $region3: #{classifier_forward.1} parent=1 // loop_header
      %s16 = sphi 0, %s20
      %p17 = scmp.ge.s32.totalorder %s16, 4
      %s26 = sphi 0, %s28
      %s29 = sphi 0, %s26
      %s30 = sphi 0, %s29
      %s46 = sphi 0, %s30
      %s50 = sphi 0, %s50
      %s52 = sphi 0, %s50
      %s53 = sphi 0, %s52
      %s67 = sphi 0, %s53
      %s71 = sphi 0, %s71
      %s73 = sphi 0, %s71
      %s74 = sphi 0, %s73
      %s88 = sphi 0, %s74
      %s92 = sphi 0, %s92
      %s94 = sphi 0, %s92
      %s95 = sphi 0, %s94
      %s109 = sphi 0, %s95
      %s113 = sphi 0, %s113
      %s115 = sphi 0, %s113
      %s116 = sphi 0, %s115
      %s130 = sphi 0, %s116
      %s134 = sphi 0, %s134
      %s136 = sphi 0, %s134
      %s137 = sphi 0, %s136
      %s151 = sphi 0, %s137
      %s155 = sphi 0, %s155
      %s157 = sphi 0, %s155
      %s158 = sphi 0, %s157
      %s172 = sphi 0, %s158
      %s178 = sphi 0, %s180
      %s181 = sphi 0, %s178
      %s182 = sphi 0, %s181
      %s198 = sphi 0, %s182
    $region4: #{classifier_forward.1} parent=1 // loop_header_branch
      %19 = sbr.rel (%p17) target = $region8
    $region5: #{classifier_forward.1} parent=1 // loop_body
      %s21 = ssub.s32 %s16, 1
      %s22 = ssub.s32 %s16, 2
      %s23 = sadd.s32 %s16, 1
      %s24 = ssub.s32 %s16, %s23
      %p25 = scmp.eq.s32.totalorder %s24, 0
      %s27 = sadd.s32 %s26, 1
      %s28 = scalar_select %p25, %s26, %s27
      %p31 = pneg %p25
      %p32 = scmp.eq.s32.totalorder %s16, 1
      %p33 = por %p31, %p32
      %p34 = scmp.ne.s32.totalorder %s26, %s29
      %p35 = scmp.eq.s32.totalorder %s16, 0
      %p36 = por %p34, %p35
      %p37 = scmp.ne.s32.totalorder %s26, %s29
      %p38 = scmp.eq.s32.totalorder %s21, 1
      %p39 = por %p37, %p38
      %p40 = scmp.ne.s32.totalorder %s29, %s30
      %p41 = scmp.eq.s32.totalorder %s21, 0
      %p42 = por %p40, %p41
      %p43 = scmp.ne.s32.totalorder %s29, %s30
      %p44 = scmp.eq.s32.totalorder %s22, 1
      %p45 = por %p43, %p44
      %p47 = scmp.ne.s32.totalorder %s30, %s46
      %p48 = scmp.eq.s32.totalorder %s22, 0
      %p49 = por %p47, %p48
      %s51 = sadd.s32 %s50, 1
      %p54 = scmp.eq.s32.totalorder %s16, 1
      %p55 = scmp.ne.s32.totalorder %s50, %s52
      %p56 = scmp.eq.s32.totalorder %s16, 0
      %p57 = por %p55, %p56
      %p58 = scmp.ne.s32.totalorder %s50, %s52
      %p59 = scmp.eq.s32.totalorder %s21, 1
      %p60 = por %p58, %p59
      %p61 = scmp.ne.s32.totalorder %s52, %s53
      %p62 = scmp.eq.s32.totalorder %s21, 0
      %p63 = por %p61, %p62
      %p64 = scmp.ne.s32.totalorder %s52, %s53
      %p65 = scmp.eq.s32.totalorder %s22, 1
      %p66 = por %p64, %p65
      %p68 = scmp.ne.s32.totalorder %s53, %s67
      %p69 = scmp.eq.s32.totalorder %s22, 0
      %p70 = por %p68, %p69
      %s72 = sadd.s32 %s71, 1
      %p75 = scmp.eq.s32.totalorder %s16, 1
      %p76 = scmp.ne.s32.totalorder %s71, %s73
      %p77 = scmp.eq.s32.totalorder %s16, 0
      %p78 = por %p76, %p77
      %p79 = scmp.ne.s32.totalorder %s71, %s73
      %p80 = scmp.eq.s32.totalorder %s21, 1
      %p81 = por %p79, %p80
      %p82 = scmp.ne.s32.totalorder %s73, %s74
      %p83 = scmp.eq.s32.totalorder %s21, 0
      %p84 = por %p82, %p83
      %p85 = scmp.ne.s32.totalorder %s73, %s74
      %p86 = scmp.eq.s32.totalorder %s22, 1
      %p87 = por %p85, %p86
      %p89 = scmp.ne.s32.totalorder %s74, %s88
      %p90 = scmp.eq.s32.totalorder %s22, 0
      %p91 = por %p89, %p90
      %s93 = sadd.s32 %s92, 1
      %p96 = scmp.eq.s32.totalorder %s16, 1
      %p97 = scmp.ne.s32.totalorder %s92, %s94
      %p98 = scmp.eq.s32.totalorder %s16, 0
      %p99 = por %p97, %p98
      %p100 = scmp.ne.s32.totalorder %s92, %s94
      %p101 = scmp.eq.s32.totalorder %s21, 1
      %p102 = por %p100, %p101
      %p103 = scmp.ne.s32.totalorder %s94, %s95
      %p104 = scmp.eq.s32.totalorder %s21, 0
      %p105 = por %p103, %p104
      %p106 = scmp.ne.s32.totalorder %s94, %s95
      %p107 = scmp.eq.s32.totalorder %s22, 1
      %p108 = por %p106, %p107
      %p110 = scmp.ne.s32.totalorder %s95, %s109
      %p111 = scmp.eq.s32.totalorder %s22, 0
      %p112 = por %p110, %p111
      %s114 = sadd.s32 %s113, 1
      %p117 = scmp.eq.s32.totalorder %s16, 1
      %p118 = scmp.ne.s32.totalorder %s113, %s115
      %p119 = scmp.eq.s32.totalorder %s16, 0
      %p120 = por %p118, %p119
      %p121 = scmp.ne.s32.totalorder %s113, %s115
      %p122 = scmp.eq.s32.totalorder %s21, 1
      %p123 = por %p121, %p122
      %p124 = scmp.ne.s32.totalorder %s115, %s116
      %p125 = scmp.eq.s32.totalorder %s21, 0
      %p126 = por %p124, %p125
      %p127 = scmp.ne.s32.totalorder %s115, %s116
      %p128 = scmp.eq.s32.totalorder %s22, 1
      %p129 = por %p127, %p128
      %p131 = scmp.ne.s32.totalorder %s116, %s130
      %p132 = scmp.eq.s32.totalorder %s22, 0
      %p133 = por %p131, %p132
      %s135 = sadd.s32 %s134, 1
      %p138 = scmp.eq.s32.totalorder %s16, 1
      %p139 = scmp.ne.s32.totalorder %s134, %s136
      %p140 = scmp.eq.s32.totalorder %s16, 0
      %p141 = por %p139, %p140
      %p142 = scmp.ne.s32.totalorder %s134, %s136
      %p143 = scmp.eq.s32.totalorder %s21, 1
      %p144 = por %p142, %p143
      %p145 = scmp.ne.s32.totalorder %s136, %s137
      %p146 = scmp.eq.s32.totalorder %s21, 0
      %p147 = por %p145, %p146
      %p148 = scmp.ne.s32.totalorder %s136, %s137
      %p149 = scmp.eq.s32.totalorder %s22, 1
      %p150 = por %p148, %p149
      %p152 = scmp.ne.s32.totalorder %s137, %s151
      %p153 = scmp.eq.s32.totalorder %s22, 0
      %p154 = por %p152, %p153
      %s156 = sadd.s32 %s155, 1
      %p159 = scmp.eq.s32.totalorder %s16, 1
      %p160 = scmp.ne.s32.totalorder %s155, %s157
      %p161 = scmp.eq.s32.totalorder %s16, 0
      %p162 = por %p160, %p161
      %p163 = scmp.ne.s32.totalorder %s155, %s157
      %p164 = scmp.eq.s32.totalorder %s21, 1
      %p165 = por %p163, %p164
      %p166 = scmp.ne.s32.totalorder %s157, %s158
      %p167 = scmp.eq.s32.totalorder %s21, 0
      %p168 = por %p166, %p167
      %p169 = scmp.ne.s32.totalorder %s157, %s158
      %p170 = scmp.eq.s32.totalorder %s22, 1
      %p171 = por %p169, %p170
      %p173 = scmp.ne.s32.totalorder %s158, %s172
      %p174 = scmp.eq.s32.totalorder %s22, 0
      %p175 = por %p173, %p174
      %s176 = ssub.s32 %s16, %s23
      %p177 = scmp.eq.s32.totalorder %s176, 0
      %s179 = sadd.s32 %s178, 1
      %s180 = scalar_select %p177, %s178, %s179
      %p183 = pneg %p177
      %p184 = scmp.eq.s32.totalorder %s16, 1
      %p185 = por %p183, %p184
      %p186 = scmp.ne.s32.totalorder %s178, %s181
      %p187 = scmp.eq.s32.totalorder %s16, 0
      %p188 = por %p186, %p187
      %p189 = scmp.ne.s32.totalorder %s178, %s181
      %p190 = scmp.eq.s32.totalorder %s21, 1
      %p191 = por %p189, %p190
      %p192 = scmp.ne.s32.totalorder %s181, %s182
      %p193 = scmp.eq.s32.totalorder %s21, 0
      %p194 = por %p192, %p193
      %p195 = scmp.ne.s32.totalorder %s181, %s182
      %p196 = scmp.eq.s32.totalorder %s22, 1
      %p197 = por %p195, %p196
      %p199 = scmp.ne.s32.totalorder %s182, %s198
      %p200 = scmp.eq.s32.totalorder %s22, 0
      %p201 = por %p199, %p200
      %p202 = scmp.le.s32.totalorder 1, %s16
      %p203 = scmp.lt.s32.totalorder %s16, 3
      %p204 = pnand %p202, %p203
      %p205 = pneg %p204
      // Predicated region
      $region9: #{classifier_forward.1} parent=5 // pred_check
        _
      $region10: #{classifier_forward.1} parent=5 // pred_check_branch
        %207 = sbr.rel (%p204) target = $region12
      $region11: #{classifier_forward.1} parent=5 // pred_region
        %s208 = ssub.s32 %s16, 1
        // Predicated region
        $region13: #{classifier_forward.1} parent=11 // pred_check
          %p209 = pneg %p63
        $region14: #{classifier_forward.1} parent=11 // pred_check_branch
          %211 = sbr.rel (%p209) target = $region16
        $region15: #{classifier_forward.1} parent=11 // pred_region
          _
        $region16: #{classifier_forward.1} parent=11 // pred_fallthru
          _
        // Predicated region
        $region17: #{classifier_forward.1} parent=11 // pred_check
          %p212 = pneg %p84
        $region18: #{classifier_forward.1} parent=11 // pred_check_branch
          %214 = sbr.rel (%p212) target = $region20
        $region19: #{classifier_forward.1} parent=11 // pred_region
          _
        $region20: #{classifier_forward.1} parent=11 // pred_fallthru
          _
        // Predicated region
        $region21: #{classifier_forward.1} parent=11 // pred_check
          %p215 = pneg %p105
        $region22: #{classifier_forward.1} parent=11 // pred_check_branch
          %217 = sbr.rel (%p215) target = $region24
        $region23: #{classifier_forward.1} parent=11 // pred_region
          _
        $region24: #{classifier_forward.1} parent=11 // pred_fallthru
          _
        // Predicated region
        $region25: #{classifier_forward.1} parent=11 // pred_check
          %p218 = pneg %p126
        $region26: #{classifier_forward.1} parent=11 // pred_check_branch
          %220 = sbr.rel (%p218) target = $region28
        $region27: #{classifier_forward.1} parent=11 // pred_region
          _
        $region28: #{classifier_forward.1} parent=11 // pred_fallthru
          _
        // Predicated region
        $region29: #{classifier_forward.1} parent=11 // pred_check
          %p221 = pneg %p147
        $region30: #{classifier_forward.1} parent=11 // pred_check_branch
          %223 = sbr.rel (%p221) target = $region32
        $region31: #{classifier_forward.1} parent=11 // pred_region
          _
        $region32: #{classifier_forward.1} parent=11 // pred_fallthru
          _
        // Predicated region
        $region33: #{classifier_forward.1} parent=11 // pred_check
          %p224 = pneg %p168
        $region34: #{classifier_forward.1} parent=11 // pred_check_branch
          %226 = sbr.rel (%p224) target = $region36
        $region35: #{classifier_forward.1} parent=11 // pred_region
          _
        $region36: #{classifier_forward.1} parent=11 // pred_fallthru
          _
      $region12: #{classifier_forward.1} parent=5 // pred_fallthru
        _
      %p227 = scmp.lt.s32.totalorder %s16, 2
      // Predicated region
      $region37: #{classifier_forward.1} parent=5 // pred_check
        %p228 = pneg %p227
      $region38: #{classifier_forward.1} parent=5 // pred_check_branch
        %230 = sbr.rel (%p228) target = $region40
      $region39: #{classifier_forward.1} parent=5 // pred_region
        // Predicated region
        $region41: #{classifier_forward.1} parent=39 // pred_check
          %p231 = pneg %p36
        $region42: #{classifier_forward.1} parent=39 // pred_check_branch
          %233 = sbr.rel (%p231) target = $region44
        $region43: #{classifier_forward.1} parent=39 // pred_region
          %p234 = scmp.lt.s32.totalorder %s16, 1
          %s235 = scalar_select %p234, %s16, 1
          %s236 = smul.addr %s235, 54
          %s237 = smul.addr %s236, 8
          %s238 = scalar_lea.vmem %s0, %s237
        $region44: #{classifier_forward.1} parent=39 // pred_fallthru
          _
      $region40: #{classifier_forward.1} parent=5 // pred_fallthru
        _
      %p239 = scmp.le.s32.totalorder 1, %s16
      %p240 = scmp.lt.s32.totalorder %s16, 3
      %p241 = pnand %p239, %p240
      %p242 = pneg %p241
      // Predicated region
      $region45: #{classifier_forward.1} parent=5 // pred_check
        _
      $region46: #{classifier_forward.1} parent=5 // pred_check_branch
        %244 = sbr.rel (%p241) target = $region48
      $region47: #{classifier_forward.1} parent=5 // pred_region
        %s245 = ssub.s32 %s16, 1
        %p246 = scmp.lt.s32.totalorder %s21, 1
        %s247 = scalar_select %p246, %s21, 1
        %s248 = smul.addr %s247, 54
        %s249 = smul.addr %s248, 8
        %s250 = scalar_lea.vmem %s0, %s249
        %p251 = pneg %p42
        %p252 = pneg %p39
        %p253 = pneg %p63
        %p254 = pneg %p60
        %p255 = pneg %p84
        %p256 = pneg %p81
        %p257 = pneg %p105
        %p258 = pneg %p102
        %p259 = pneg %p126
        %p260 = pneg %p123
        %p261 = pneg %p147
        %p262 = pneg %p144
        %p263 = pneg %p168
        %p264 = pneg %p165
        %p265 = pneg %p194
        %p266 = pneg %p191
        %s267 = sand.u32 %s181, 1
        %s268 = scalar_lea.sflag [#allocation6], %s267
        %s269 = sand.u32 %s181, 1
        %s270 = scalar_lea.vmem [#allocation5], %s269
        %p271 = scmp.lt.s32.totalorder %s21, 1
        %s272 = scalar_select %p271, %s21, 1
        %s273 = smul.addr %s272, 54
        %s274 = smul.addr %s273, 8
        %s275 = scalar_lea.vmem %s0, %s274
        %v277 = vld [vmem:[%s275] sm:$0xff]
        %v278 = vld [vmem:[%s275 + $0x8] sm:$0xff]
        %v279 = vld [vmem:[%s275 + $0x18] sm:$0xff]
        %v280 = vld [vmem:[%s275 + $0x20] sm:$0xff]
        %v281 = vld [vmem:[%s275 + $0x30] sm:$0xff]
        %v282 = vld [vmem:[%s275 + $0x38] sm:$0xff]
        %v283 = vld [vmem:[%s275 + $0x48] sm:$0xff]
        %v284 = vld [vmem:[%s275 + $0x50] sm:$0xff]
        %v285 = vld [vmem:[%s275 + $0x60] sm:$0xff]
        %v286 = vld [vmem:[%s275 + $0x68] sm:$0xff]
        %v287 = vld [vmem:[%s275 + $0x78] sm:$0xff]
        %v288 = vld [vmem:[%s275 + $0x80] sm:$0xff]
        %v289 = vld [vmem:[%s275 + $0x90] sm:$0xff]
        %v290 = vld [vmem:[%s275 + $0x98] sm:$0xff]
        %v291 = vld [vmem:[%s275 + $0xa8] sm:$0xff]
        %v292 = vld [vmem:[%s275 + $0xb0] sm:$0xff]
        %v293 = vld [vmem:[%s275 + $0xc0] sm:$0xff]
        %v294 = vld [vmem:[%s275 + $0xc8] sm:$0xff]
        %v295 = vld [vmem:[%s275 + $0xd8] sm:$0xff]
        %v296 = vld [vmem:[%s275 + $0xe0] sm:$0xff]
        %v297 = vld [vmem:[%s275 + $0xf0] sm:$0xff]
        %v298 = vld [vmem:[%s275 + $0xf8] sm:$0xff]
        %v299 = vld [vmem:[%s275 + $0x108] sm:$0xff]
        %v300 = vld [vmem:[%s275 + $0x110] sm:$0xff]
        %v301 = vld [vmem:[%s275 + $0x120] sm:$0xff]
        %v302 = vld [vmem:[%s275 + $0x128] sm:$0xff]
        %v303 = vld [vmem:[%s275 + $0x138] sm:$0xff]
        %v304 = vld [vmem:[%s275 + $0x140] sm:$0xff]
        %v305 = vld [vmem:[%s275 + $0x150] sm:$0xff]
        %v306 = vld [vmem:[%s275 + $0x158] sm:$0xff]
        %v307 = vld [vmem:[%s275 + $0x168] sm:$0xff]
        %v308 = vld [vmem:[%s275 + $0x170] sm:$0xff]
        %v309 = vld [vmem:[%s1] sm:$0xff]
        %v310 = vld [vmem:[%s275 + $0x1] sm:$0xff]
        %v311 = vld [vmem:[%s275 + $0x9] sm:$0xff]
        %v312 = vld [vmem:[%s275 + $0x19] sm:$0xff]
        %v313 = vld [vmem:[%s275 + $0x21] sm:$0xff]
        %v314 = vld [vmem:[%s275 + $0x31] sm:$0xff]
        %v315 = vld [vmem:[%s275 + $0x39] sm:$0xff]
        %v316 = vld [vmem:[%s275 + $0x49] sm:$0xff]
        %v317 = vld [vmem:[%s275 + $0x51] sm:$0xff]
        %v318 = vld [vmem:[%s275 + $0x61] sm:$0xff]
        %v319 = vld [vmem:[%s275 + $0x69] sm:$0xff]
        %v320 = vld [vmem:[%s275 + $0x79] sm:$0xff]
        %v321 = vld [vmem:[%s275 + $0x81] sm:$0xff]
        %v322 = vld [vmem:[%s275 + $0x91] sm:$0xff]
        %v323 = vld [vmem:[%s275 + $0x99] sm:$0xff]
        %v324 = vld [vmem:[%s275 + $0xa9] sm:$0xff]
        %v325 = vld [vmem:[%s275 + $0xb1] sm:$0xff]
        %v326 = vld [vmem:[%s275 + $0xc1] sm:$0xff]
        %v327 = vld [vmem:[%s275 + $0xc9] sm:$0xff]
        %v328 = vld [vmem:[%s275 + $0xd9] sm:$0xff]
        %v329 = vld [vmem:[%s275 + $0xe1] sm:$0xff]
        %v330 = vld [vmem:[%s275 + $0xf1] sm:$0xff]
        %v331 = vld [vmem:[%s275 + $0xf9] sm:$0xff]
        %v332 = vld [vmem:[%s275 + $0x109] sm:$0xff]
        %v333 = vld [vmem:[%s275 + $0x111] sm:$0xff]
        %v334 = vld [vmem:[%s275 + $0x121] sm:$0xff]
        %v335 = vld [vmem:[%s275 + $0x129] sm:$0xff]
        %v336 = vld [vmem:[%s275 + $0x139] sm:$0xff]
        %v337 = vld [vmem:[%s275 + $0x141] sm:$0xff]
        %v338 = vld [vmem:[%s275 + $0x151] sm:$0xff]
        %v339 = vld [vmem:[%s275 + $0x159] sm:$0xff]
        %v340 = vld [vmem:[%s275 + $0x169] sm:$0xff]
        %v341 = vld [vmem:[%s275 + $0x171] sm:$0xff]
        %s342 = scalar_lea.vmem %s1, 8
        %v343 = vld [vmem:[%s342] sm:$0xff]
        %vm344 = vcmask 64512
        %v346 = vsel %vm344, %v310, 0
        %v349 = vsel %vm344, %v311, 0
        %v352 = vsel %vm344, %v312, 0
        %v355 = vsel %vm344, %v313, 0
        %v358 = vsel %vm344, %v314, 0
        %v361 = vsel %vm344, %v315, 0
        %v364 = vsel %vm344, %v316, 0
        %v367 = vsel %vm344, %v317, 0
        %v370 = vsel %vm344, %v318, 0
        %v373 = vsel %vm344, %v319, 0
        %v376 = vsel %vm344, %v320, 0
        %v379 = vsel %vm344, %v321, 0
        %v382 = vsel %vm344, %v322, 0
        %v385 = vsel %vm344, %v323, 0
        %v388 = vsel %vm344, %v324, 0
        %v391 = vsel %vm344, %v325, 0
        %v394 = vsel %vm344, %v326, 0
        %v397 = vsel %vm344, %v327, 0
        %v400 = vsel %vm344, %v328, 0
        %v403 = vsel %vm344, %v329, 0
        %v406 = vsel %vm344, %v330, 0
        %v409 = vsel %vm344, %v331, 0
        %v412 = vsel %vm344, %v332, 0
        %v415 = vsel %vm344, %v333, 0
        %v418 = vsel %vm344, %v334, 0
        %v421 = vsel %vm344, %v335, 0
        %v424 = vsel %vm344, %v336, 0
        %v427 = vsel %vm344, %v337, 0
        %v430 = vsel %vm344, %v338, 0
        %v433 = vsel %vm344, %v339, 0
        %v436 = vsel %vm344, %v340, 0
        %v439 = vsel %vm344, %v341, 0
        %441 = vmatprep.subr.mxu0 0.0
        %442 = vmatpush1.msra.mxu0 %v343
        %443 = vmatprep.subr.mxu0 0.0
        %444 = vmatpush1.msra.mxu0 0.0
        %445 = vmatprep.subr.mxu0 0.0
        %446 = vmatpush1.msra.mxu0 0.0
        %447 = vmatprep.subr.mxu0 0.0
        %448 = vmatpush1.msra.mxu0 0.0
        %449 = vmatprep.subr.mxu0 0.0
        %450 = vmatpush1.msra.mxu0 0.0
        %451 = vmatprep.subr.mxu0 0.0
        %452 = vmatpush1.msra.mxu0 0.0
        %453 = vmatprep.subr.mxu0 0.0
        %454 = vmatpush1.msra.mxu0 0.0
        %455 = vmatprep.subr.mxu0 0.0
        %456 = vmatpush1.msra.mxu0 0.0
        %457 = vmatprep.subr.mxu0 0.0
        %458 = vmatpush1.msra.mxu0 0.0
        %459 = vmatprep.subr.mxu0 0.0
        %460 = vmatpush1.msra.mxu0 0.0
        %461 = vmatprep.subr.mxu0 0.0
        %462 = vmatpush1.msra.mxu0 0.0
        %463 = vmatprep.subr.mxu0 0.0
        %464 = vmatpush1.msra.mxu0 0.0
        %465 = vmatprep.subr.mxu0 0.0
        %466 = vmatpush1.msra.mxu0 0.0
        %467 = vmatprep.subr.mxu0 0.0
        %468 = vmatpush1.msra.mxu0 0.0
        %469 = vmatprep.subr.mxu0 0.0
        %470 = vmatpush1.msra.mxu0 0.0
        %471 = vmatprep.subr.mxu0 0.0
        %472 = vmatpush1.msra.mxu0 0.0
        %473 = vmatprep.subr.mxu0 0.0
        %474 = vmatpush1.msra.mxu0 0.0
        %475 = vmatprep.subr.mxu0 0.0
        %476 = vmatpush1.msra.mxu0 0.0
        %477 = vmatprep.subr.mxu0 0.0
        %478 = vmatpush1.msra.mxu0 0.0
        %479 = vmatprep.subr.mxu0 0.0
        %480 = vmatpush1.msra.mxu0 0.0
        %481 = vmatprep.subr.mxu0 0.0
        %482 = vmatpush1.msra.mxu0 0.0
        %483 = vmatprep.subr.mxu0 0.0
        %484 = vmatpush1.msra.mxu0 0.0
        %485 = vmatprep.subr.mxu0 0.0
        %486 = vmatpush1.msra.mxu0 0.0
        %487 = vmatprep.subr.mxu0 0.0
        %488 = vmatpush1.msra.mxu0 0.0
        %489 = vmatprep.subr.mxu0 0.0
        %490 = vmatpush1.msra.mxu0 0.0
        %491 = vmatprep.subr.mxu0 0.0
        %492 = vmatpush1.msra.mxu0 0.0
        %493 = vmatprep.subr.mxu0 0.0
        %494 = vmatpush1.msra.mxu0 0.0
        %495 = vmatprep.subr.mxu0 0.0
        %496 = vmatpush1.msra.mxu0 0.0
        %497 = vmatprep.subr.mxu0 0.0
        %498 = vmatpush1.msra.mxu0 0.0
        %499 = vmatprep.subr.mxu0 0.0
        %500 = vmatpush1.msra.mxu0 0.0
        %501 = vmatprep.subr.mxu0 0.0
        %502 = vmatpush1.msra.mxu0 0.0
        %503 = vmatprep.subr.mxu0 0.0
        %504 = vmatpush1.msra.mxu0 0.0
        %505 = vmatprep.mubr.f32.mxu0 0.0
        %506 = vmatmul.mubr.f32.gmra.mrb[0].mxu0 %v346
        %v507 = vpop.f32.mrb[0].mxu0
        %v508 = vadd.f32 0.0, %v507
        %v509 = vpop.f32.mrb[0].mxu0
        %510 = vmatprep.mubr.f32.mxu0 0.0
        %511 = vmatmul.mubr.f32.gmra.mrb[0].mxu0 %v349
        %v512 = vpop.f32.mrb[0].mxu0
        %v513 = vadd.f32 0.0, %v512
        %v514 = vpop.f32.mrb[0].mxu0
        %515 = vmatprep.mubr.f32.mxu0 0.0
        %516 = vmatmul.mubr.f32.gmra.mrb[0].mxu0 %v352
        %v517 = vpop.f32.mrb[0].mxu0
        %v518 = vadd.f32 0.0, %v517
        %v519 = vpop.f32.mrb[0].mxu0
        %520 = vmatprep.mubr.f32.mxu0 0.0
        %521 = vmatmul.mubr.f32.gmra.mrb[0].mxu0 %v355
        %v522 = vpop.f32.mrb[0].mxu0
        %v523 = vadd.f32 0.0, %v522
        %v524 = vpop.f32.mrb[0].mxu0
        %525 = vmatprep.mubr.f32.mxu0 0.0
        %526 = vmatmul.mubr.f32.gmra.mrb[0].mxu0 %v358
        %v527 = vpop.f32.mrb[0].mxu0
        %v528 = vadd.f32 0.0, %v527
        %v529 = vpop.f32.mrb[0].mxu0
        %530 = vmatprep.mubr.f32.mxu0 0.0
        %531 = vmatmul.mubr.f32.gmra.mrb[0].mxu0 %v361
        %v532 = vpop.f32.mrb[0].mxu0
        %v533 = vadd.f32 0.0, %v532
        %v534 = vpop.f32.mrb[0].mxu0
        %535 = vmatprep.mubr.f32.mxu0 0.0
        %536 = vmatmul.mubr.f32.gmra.mrb[0].mxu0 %v364
        %v537 = vpop.f32.mrb[0].mxu0
        %v538 = vadd.f32 0.0, %v537
        %v539 = vpop.f32.mrb[0].mxu0
        %540 = vmatprep.mubr.f32.mxu0 0.0
        %541 = vmatmul.mubr.f32.gmra.mrb[0].mxu0 %v367
        %v542 = vpop.f32.mrb[0].mxu0
        %v543 = vadd.f32 0.0, %v542
        %v544 = vpop.f32.mrb[0].mxu0
        %545 = vmatprep.mubr.f32.mxu0 0.0
        %546 = vmatmul.mubr.f32.gmra.mrb[0].mxu0 %v370
        %v547 = vpop.f32.mrb[0].mxu0
        %v548 = vadd.f32 0.0, %v547
        %v549 = vpop.f32.mrb[0].mxu0
        %550 = vmatprep.mubr.f32.mxu0 0.0
        %551 = vmatmul.mubr.f32.gmra.mrb[0].mxu0 %v373
        %v552 = vpop.f32.mrb[0].mxu0
        %v553 = vadd.f32 0.0, %v552
        %v554 = vpop.f32.mrb[0].mxu0
        %555 = vmatprep.mubr.f32.mxu0 0.0
        %556 = vmatmul.mubr.f32.gmra.mrb[0].mxu0 %v376
        %v557 = vpop.f32.mrb[0].mxu0
        %v558 = vadd.f32 0.0, %v557
        %v559 = vpop.f32.mrb[0].mxu0
        %560 = vmatprep.mubr.f32.mxu0 0.0
        %561 = vmatmul.mubr.f32.gmra.mrb[0].mxu0 %v379
        %v562 = vpop.f32.mrb[0].mxu0
        %v563 = vadd.f32 0.0, %v562
        %v564 = vpop.f32.mrb[0].mxu0
        %565 = vmatprep.mubr.f32.mxu0 0.0
        %566 = vmatmul.mubr.f32.gmra.mrb[0].mxu0 %v382
        %v567 = vpop.f32.mrb[0].mxu0
        %v568 = vadd.f32 0.0, %v567
        %v569 = vpop.f32.mrb[0].mxu0
        %570 = vmatprep.mubr.f32.mxu0 0.0
        %571 = vmatmul.mubr.f32.gmra.mrb[0].mxu0 %v385
        %v572 = vpop.f32.mrb[0].mxu0
        %v573 = vadd.f32 0.0, %v572
        %v574 = vpop.f32.mrb[0].mxu0
        %575 = vmatprep.mubr.f32.mxu0 0.0
        %576 = vmatmul.mubr.f32.gmra.mrb[0].mxu0 %v388
        %v577 = vpop.f32.mrb[0].mxu0
        %v578 = vadd.f32 0.0, %v577
        %v579 = vpop.f32.mrb[0].mxu0
        %580 = vmatprep.mubr.f32.mxu0 0.0
        %581 = vmatmul.mubr.f32.gmra.mrb[0].mxu0 %v391
        %v582 = vpop.f32.mrb[0].mxu0
        %v583 = vadd.f32 0.0, %v582
        %v584 = vpop.f32.mrb[0].mxu0
        %585 = vmatprep.mubr.f32.mxu0 0.0
        %586 = vmatmul.mubr.f32.gmra.mrb[0].mxu0 %v394
        %v587 = vpop.f32.mrb[0].mxu0
        %v588 = vadd.f32 0.0, %v587
        %v589 = vpop.f32.mrb[0].mxu0
        %590 = vmatprep.mubr.f32.mxu0 0.0
        %591 = vmatmul.mubr.f32.gmra.mrb[0].mxu0 %v397
        %v592 = vpop.f32.mrb[0].mxu0
        %v593 = vadd.f32 0.0, %v592
        %v594 = vpop.f32.mrb[0].mxu0
        %595 = vmatprep.mubr.f32.mxu0 0.0
        %596 = vmatmul.mubr.f32.gmra.mrb[0].mxu0 %v400
        %v597 = vpop.f32.mrb[0].mxu0
        %v598 = vadd.f32 0.0, %v597
        %v599 = vpop.f32.mrb[0].mxu0
        %600 = vmatprep.mubr.f32.mxu0 0.0
        %601 = vmatmul.mubr.f32.gmra.mrb[0].mxu0 %v403
        %v602 = vpop.f32.mrb[0].mxu0
        %v603 = vadd.f32 0.0, %v602
        %v604 = vpop.f32.mrb[0].mxu0
        %605 = vmatprep.mubr.f32.mxu0 0.0
        %606 = vmatmul.mubr.f32.gmra.mrb[0].mxu0 %v406
        %v607 = vpop.f32.mrb[0].mxu0
        %v608 = vadd.f32 0.0, %v607
        %v609 = vpop.f32.mrb[0].mxu0
        %610 = vmatprep.mubr.f32.mxu0 0.0
        %611 = vmatmul.mubr.f32.gmra.mrb[0].mxu0 %v409
        %v612 = vpop.f32.mrb[0].mxu0
        %v613 = vadd.f32 0.0, %v612
        %v614 = vpop.f32.mrb[0].mxu0
        %615 = vmatprep.mubr.f32.mxu0 0.0
        %616 = vmatmul.mubr.f32.gmra.mrb[0].mxu0 %v412
        %v617 = vpop.f32.mrb[0].mxu0
        %v618 = vadd.f32 0.0, %v617
        %v619 = vpop.f32.mrb[0].mxu0
        %620 = vmatprep.mubr.f32.mxu0 0.0
        %621 = vmatmul.mubr.f32.gmra.mrb[0].mxu0 %v415
        %v622 = vpop.f32.mrb[0].mxu0
        %v623 = vadd.f32 0.0, %v622
        %v624 = vpop.f32.mrb[0].mxu0
        %625 = vmatprep.mubr.f32.mxu0 0.0
        %626 = vmatmul.mubr.f32.gmra.mrb[0].mxu0 %v418
        %v627 = vpop.f32.mrb[0].mxu0
        %v628 = vadd.f32 0.0, %v627
        %v629 = vpop.f32.mrb[0].mxu0
        %630 = vmatprep.mubr.f32.mxu0 0.0
        %631 = vmatmul.mubr.f32.gmra.mrb[0].mxu0 %v421
        %v632 = vpop.f32.mrb[0].mxu0
        %v633 = vadd.f32 0.0, %v632
        %v634 = vpop.f32.mrb[0].mxu0
        %635 = vmatprep.mubr.f32.mxu0 0.0
        %636 = vmatmul.mubr.f32.gmra.mrb[0].mxu0 %v424
        %v637 = vpop.f32.mrb[0].mxu0
        %v638 = vadd.f32 0.0, %v637
        %v639 = vpop.f32.mrb[0].mxu0
        %640 = vmatprep.mubr.f32.mxu0 0.0
        %641 = vmatmul.mubr.f32.gmra.mrb[0].mxu0 %v427
        %v642 = vpop.f32.mrb[0].mxu0
        %v643 = vadd.f32 0.0, %v642
        %v644 = vpop.f32.mrb[0].mxu0
        %645 = vmatprep.mubr.f32.mxu0 0.0
        %646 = vmatmul.mubr.f32.gmra.mrb[0].mxu0 %v430
        %v647 = vpop.f32.mrb[0].mxu0
        %v648 = vadd.f32 0.0, %v647
        %v649 = vpop.f32.mrb[0].mxu0
        %650 = vmatprep.mubr.f32.mxu0 0.0
        %651 = vmatmul.mubr.f32.gmra.mrb[0].mxu0 %v433
        %v652 = vpop.f32.mrb[0].mxu0
        %v653 = vadd.f32 0.0, %v652
        %v654 = vpop.f32.mrb[0].mxu0
        %655 = vmatprep.mubr.f32.mxu0 0.0
        %656 = vmatmul.mubr.f32.gmra.mrb[0].mxu0 %v436
        %v657 = vpop.f32.mrb[0].mxu0
        %v658 = vadd.f32 0.0, %v657
        %v659 = vpop.f32.mrb[0].mxu0
        %660 = vmatprep.mubr.f32.mxu0 0.0
        %661 = vmatmul.mubr.f32.gmra.mrb[0].mxu0 %v439
        %v662 = vpop.f32.mrb[0].mxu0
        %v663 = vadd.f32 0.0, %v662
        %v664 = vpop.f32.mrb[0].mxu0
        %665 = vdwg.mxu0
        %v667 = vsel %vm344, %v277, 0
        %v670 = vsel %vm344, %v278, 0
        %v673 = vsel %vm344, %v279, 0
        %v676 = vsel %vm344, %v280, 0
        %v679 = vsel %vm344, %v281, 0
        %v682 = vsel %vm344, %v282, 0
        %v685 = vsel %vm344, %v283, 0
        %v688 = vsel %vm344, %v284, 0
        %v691 = vsel %vm344, %v285, 0
        %v694 = vsel %vm344, %v286, 0
        %v697 = vsel %vm344, %v287, 0
        %v700 = vsel %vm344, %v288, 0
        %v703 = vsel %vm344, %v289, 0
        %v706 = vsel %vm344, %v290, 0
        %v709 = vsel %vm344, %v291, 0
        %v712 = vsel %vm344, %v292, 0
        %v715 = vsel %vm344, %v293, 0
        %v718 = vsel %vm344, %v294, 0
        %v721 = vsel %vm344, %v295, 0
        %v724 = vsel %vm344, %v296, 0
        %v727 = vsel %vm344, %v297, 0
        %v730 = vsel %vm344, %v298, 0
        %v733 = vsel %vm344, %v299, 0
        %v736 = vsel %vm344, %v300, 0
        %v739 = vsel %vm344, %v301, 0
        %v742 = vsel %vm344, %v302, 0
        %v745 = vsel %vm344, %v303, 0
        %v748 = vsel %vm344, %v304, 0
        %v751 = vsel %vm344, %v305, 0
        %v754 = vsel %vm344, %v306, 0
        %v757 = vsel %vm344, %v307, 0
        %v760 = vsel %vm344, %v308, 0
        %762 = vmatprep.subr.mxu0 0.0
        %763 = vmatpush1.msra.mxu0 %v309
        %764 = vmatprep.subr.mxu0 0.0
        %765 = vmatpush1.msra.mxu0 0.0
        %766 = vmatprep.subr.mxu0 0.0
        %767 = vmatpush1.msra.mxu0 0.0
        %768 = vmatprep.subr.mxu0 0.0
        %769 = vmatpush1.msra.mxu0 0.0
        %770 = vmatprep.subr.mxu0 0.0
        %771 = vmatpush1.msra.mxu0 0.0
        %772 = vmatprep.subr.mxu0 0.0
        %773 = vmatpush1.msra.mxu0 0.0
        %774 = vmatprep.subr.mxu0 0.0
        %775 = vmatpush1.msra.mxu0 0.0
        %776 = vmatprep.subr.mxu0 0.0
        %777 = vmatpush1.msra.mxu0 0.0
        %778 = vmatprep.subr.mxu0 0.0
        %779 = vmatpush1.msra.mxu0 0.0
        %780 = vmatprep.subr.mxu0 0.0
        %781 = vmatpush1.msra.mxu0 0.0
        %782 = vmatprep.subr.mxu0 0.0
        %783 = vmatpush1.msra.mxu0 0.0
        %784 = vmatprep.subr.mxu0 0.0
        %785 = vmatpush1.msra.mxu0 0.0
        %786 = vmatprep.subr.mxu0 0.0
        %787 = vmatpush1.msra.mxu0 0.0
        %788 = vmatprep.subr.mxu0 0.0
        %789 = vmatpush1.msra.mxu0 0.0
        %790 = vmatprep.subr.mxu0 0.0
        %791 = vmatpush1.msra.mxu0 0.0
        %792 = vmatprep.subr.mxu0 0.0
        %793 = vmatpush1.msra.mxu0 0.0
        %794 = vmatprep.subr.mxu0 0.0
        %795 = vmatpush1.msra.mxu0 0.0
        %796 = vmatprep.subr.mxu0 0.0
        %797 = vmatpush1.msra.mxu0 0.0
        %798 = vmatprep.subr.mxu0 0.0
        %799 = vmatpush1.msra.mxu0 0.0
        %800 = vmatprep.subr.mxu0 0.0
        %801 = vmatpush1.msra.mxu0 0.0
        %802 = vmatprep.subr.mxu0 0.0
        %803 = vmatpush1.msra.mxu0 0.0
        %804 = vmatprep.subr.mxu0 0.0
        %805 = vmatpush1.msra.mxu0 0.0
        %806 = vmatprep.subr.mxu0 0.0
        %807 = vmatpush1.msra.mxu0 0.0
        %808 = vmatprep.subr.mxu0 0.0
        %809 = vmatpush1.msra.mxu0 0.0
        %810 = vmatprep.subr.mxu0 0.0
        %811 = vmatpush1.msra.mxu0 0.0
        %812 = vmatprep.subr.mxu0 0.0
        %813 = vmatpush1.msra.mxu0 0.0
        %814 = vmatprep.subr.mxu0 0.0
        %815 = vmatpush1.msra.mxu0 0.0
        %816 = vmatprep.subr.mxu0 0.0
        %817 = vmatpush1.msra.mxu0 0.0
        %818 = vmatprep.subr.mxu0 0.0
        %819 = vmatpush1.msra.mxu0 0.0
        %820 = vmatprep.subr.mxu0 0.0
        %821 = vmatpush1.msra.mxu0 0.0
        %822 = vmatprep.subr.mxu0 0.0
        %823 = vmatpush1.msra.mxu0 0.0
        %824 = vmatprep.subr.mxu0 0.0
        %825 = vmatpush1.msra.mxu0 0.0
        %826 = vmatprep.mubr.f32.mxu0 0.0
        %827 = vmatmul.mubr.f32.gmra.mrb[0].mxu0 %v667
        %v828 = vpop.f32.mrb[0].mxu0
        %v829 = vadd.f32 %v508, %v828
        %v830 = vpop.f32.mrb[0].mxu0
        %831 = vmatprep.mubr.f32.mxu0 0.0
        %832 = vmatmul.mubr.f32.gmra.mrb[0].mxu0 %v670
        %v833 = vpop.f32.mrb[0].mxu0
        %v834 = vadd.f32 %v513, %v833
        %v835 = vpop.f32.mrb[0].mxu0
        %836 = vmatprep.mubr.f32.mxu0 0.0
        %837 = vmatmul.mubr.f32.gmra.mrb[0].mxu0 %v673
        %v838 = vpop.f32.mrb[0].mxu0
        %v839 = vadd.f32 %v518, %v838
        %v840 = vpop.f32.mrb[0].mxu0
        %841 = vmatprep.mubr.f32.mxu0 0.0
        %842 = vmatmul.mubr.f32.gmra.mrb[0].mxu0 %v676
        %v843 = vpop.f32.mrb[0].mxu0
        %v844 = vadd.f32 %v523, %v843
        %v845 = vpop.f32.mrb[0].mxu0
        %846 = vmatprep.mubr.f32.mxu0 0.0
        %847 = vmatmul.mubr.f32.gmra.mrb[0].mxu0 %v679
        %v848 = vpop.f32.mrb[0].mxu0
        %v849 = vadd.f32 %v528, %v848
        %v850 = vpop.f32.mrb[0].mxu0
        %851 = vmatprep.mubr.f32.mxu0 0.0
        %852 = vmatmul.mubr.f32.gmra.mrb[0].mxu0 %v682
        %v853 = vpop.f32.mrb[0].mxu0
        %v854 = vadd.f32 %v533, %v853
        %v855 = vpop.f32.mrb[0].mxu0
        %856 = vmatprep.mubr.f32.mxu0 0.0
        %857 = vmatmul.mubr.f32.gmra.mrb[0].mxu0 %v685
        %v858 = vpop.f32.mrb[0].mxu0
        %v859 = vadd.f32 %v538, %v858
        %v860 = vpop.f32.mrb[0].mxu0
        %861 = vmatprep.mubr.f32.mxu0 0.0
        %862 = vmatmul.mubr.f32.gmra.mrb[0].mxu0 %v688
        %v863 = vpop.f32.mrb[0].mxu0
        %v864 = vadd.f32 %v543, %v863
        %v865 = vpop.f32.mrb[0].mxu0
        %866 = vmatprep.mubr.f32.mxu0 0.0
        %867 = vmatmul.mubr.f32.gmra.mrb[0].mxu0 %v691
        %v868 = vpop.f32.mrb[0].mxu0
        %v869 = vadd.f32 %v548, %v868
        %v870 = vpop.f32.mrb[0].mxu0
        %871 = vmatprep.mubr.f32.mxu0 0.0
        %872 = vmatmul.mubr.f32.gmra.mrb[0].mxu0 %v694
        %v873 = vpop.f32.mrb[0].mxu0
        %v874 = vadd.f32 %v553, %v873
        %v875 = vpop.f32.mrb[0].mxu0
        %876 = vmatprep.mubr.f32.mxu0 0.0
        %877 = vmatmul.mubr.f32.gmra.mrb[0].mxu0 %v697
        %v878 = vpop.f32.mrb[0].mxu0
        %v879 = vadd.f32 %v558, %v878
        %v880 = vpop.f32.mrb[0].mxu0
        %881 = vmatprep.mubr.f32.mxu0 0.0
        %882 = vmatmul.mubr.f32.gmra.mrb[0].mxu0 %v700
        %v883 = vpop.f32.mrb[0].mxu0
        %v884 = vadd.f32 %v563, %v883
        %v885 = vpop.f32.mrb[0].mxu0
        %886 = vmatprep.mubr.f32.mxu0 0.0
        %887 = vmatmul.mubr.f32.gmra.mrb[0].mxu0 %v703
        %v888 = vpop.f32.mrb[0].mxu0
        %v889 = vadd.f32 %v568, %v888
        %v890 = vpop.f32.mrb[0].mxu0
        %891 = vmatprep.mubr.f32.mxu0 0.0
        %892 = vmatmul.mubr.f32.gmra.mrb[0].mxu0 %v706
        %v893 = vpop.f32.mrb[0].mxu0
        %v894 = vadd.f32 %v573, %v893
        %v895 = vpop.f32.mrb[0].mxu0
        %896 = vmatprep.mubr.f32.mxu0 0.0
        %897 = vmatmul.mubr.f32.gmra.mrb[0].mxu0 %v709
        %v898 = vpop.f32.mrb[0].mxu0
        %v899 = vadd.f32 %v578, %v898
        %v900 = vpop.f32.mrb[0].mxu0
        %901 = vmatprep.mubr.f32.mxu0 0.0
        %902 = vmatmul.mubr.f32.gmra.mrb[0].mxu0 %v712
        %v903 = vpop.f32.mrb[0].mxu0
        %v904 = vadd.f32 %v583, %v903
        %v905 = vpop.f32.mrb[0].mxu0
        %906 = vmatprep.mubr.f32.mxu0 0.0
        %907 = vmatmul.mubr.f32.gmra.mrb[0].mxu0 %v715
        %v908 = vpop.f32.mrb[0].mxu0
        %v909 = vadd.f32 %v588, %v908
        %v910 = vpop.f32.mrb[0].mxu0
        %911 = vmatprep.mubr.f32.mxu0 0.0
        %912 = vmatmul.mubr.f32.gmra.mrb[0].mxu0 %v718
        %v913 = vpop.f32.mrb[0].mxu0
        %v914 = vadd.f32 %v593, %v913
        %v915 = vpop.f32.mrb[0].mxu0
        %916 = vmatprep.mubr.f32.mxu0 0.0
        %917 = vmatmul.mubr.f32.gmra.mrb[0].mxu0 %v721
        %v918 = vpop.f32.mrb[0].mxu0
        %v919 = vadd.f32 %v598, %v918
        %v920 = vpop.f32.mrb[0].mxu0
        %921 = vmatprep.mubr.f32.mxu0 0.0
        %922 = vmatmul.mubr.f32.gmra.mrb[0].mxu0 %v724
        %v923 = vpop.f32.mrb[0].mxu0
        %v924 = vadd.f32 %v603, %v923
        %v925 = vpop.f32.mrb[0].mxu0
        %926 = vmatprep.mubr.f32.mxu0 0.0
        %927 = vmatmul.mubr.f32.gmra.mrb[0].mxu0 %v727
        %v928 = vpop.f32.mrb[0].mxu0
        %v929 = vadd.f32 %v608, %v928
        %v930 = vpop.f32.mrb[0].mxu0
        %931 = vmatprep.mubr.f32.mxu0 0.0
        %932 = vmatmul.mubr.f32.gmra.mrb[0].mxu0 %v730
        %v933 = vpop.f32.mrb[0].mxu0
        %v934 = vadd.f32 %v613, %v933
        %v935 = vpop.f32.mrb[0].mxu0
        %936 = vmatprep.mubr.f32.mxu0 0.0
        %937 = vmatmul.mubr.f32.gmra.mrb[0].mxu0 %v733
        %v938 = vpop.f32.mrb[0].mxu0
        %v939 = vadd.f32 %v618, %v938
        %v940 = vpop.f32.mrb[0].mxu0
        %941 = vmatprep.mubr.f32.mxu0 0.0
        %942 = vmatmul.mubr.f32.gmra.mrb[0].mxu0 %v736
        %v943 = vpop.f32.mrb[0].mxu0
        %v944 = vadd.f32 %v623, %v943
        %v945 = vpop.f32.mrb[0].mxu0
        %946 = vmatprep.mubr.f32.mxu0 0.0
        %947 = vmatmul.mubr.f32.gmra.mrb[0].mxu0 %v739
        %v948 = vpop.f32.mrb[0].mxu0
        %v949 = vadd.f32 %v628, %v948
        %v950 = vpop.f32.mrb[0].mxu0
        %951 = vmatprep.mubr.f32.mxu0 0.0
        %952 = vmatmul.mubr.f32.gmra.mrb[0].mxu0 %v742
        %v953 = vpop.f32.mrb[0].mxu0
        %v954 = vadd.f32 %v633, %v953
        %v955 = vpop.f32.mrb[0].mxu0
        %956 = vmatprep.mubr.f32.mxu0 0.0
        %957 = vmatmul.mubr.f32.gmra.mrb[0].mxu0 %v745
        %v958 = vpop.f32.mrb[0].mxu0
        %v959 = vadd.f32 %v638, %v958
        %v960 = vpop.f32.mrb[0].mxu0
        %961 = vmatprep.mubr.f32.mxu0 0.0
        %962 = vmatmul.mubr.f32.gmra.mrb[0].mxu0 %v748
        %v963 = vpop.f32.mrb[0].mxu0
        %v964 = vadd.f32 %v643, %v963
        %v965 = vpop.f32.mrb[0].mxu0
        %966 = vmatprep.mubr.f32.mxu0 0.0
        %967 = vmatmul.mubr.f32.gmra.mrb[0].mxu0 %v751
        %v968 = vpop.f32.mrb[0].mxu0
        %v969 = vadd.f32 %v648, %v968
        %v970 = vpop.f32.mrb[0].mxu0
        %971 = vmatprep.mubr.f32.mxu0 0.0
        %972 = vmatmul.mubr.f32.gmra.mrb[0].mxu0 %v754
        %v973 = vpop.f32.mrb[0].mxu0
        %v974 = vadd.f32 %v653, %v973
        %v975 = vpop.f32.mrb[0].mxu0
        %976 = vmatprep.mubr.f32.mxu0 0.0
        %977 = vmatmul.mubr.f32.gmra.mrb[0].mxu0 %v757
        %v978 = vpop.f32.mrb[0].mxu0
        %v979 = vadd.f32 %v658, %v978
        %v980 = vpop.f32.mrb[0].mxu0
        %981 = vmatprep.mubr.f32.mxu0 0.0
        %982 = vmatmul.mubr.f32.gmra.mrb[0].mxu0 %v760
        %v983 = vpop.f32.mrb[0].mxu0
        %v984 = vadd.f32 %v663, %v983
        %v985 = vpop.f32.mrb[0].mxu0
        %986 = vdwg.mxu0
        %v987 = vld [vmem:[%s275 + $0x2] sm:$0xff]
        %v988 = vld [vmem:[%s275 + $0xa] sm:$0xff]
        %v989 = vld [vmem:[%s275 + $0x1a] sm:$0xff]
        %v990 = vld [vmem:[%s275 + $0x22] sm:$0xff]
        %v991 = vld [vmem:[%s275 + $0x32] sm:$0xff]
        %v992 = vld [vmem:[%s275 + $0x3a] sm:$0xff]
        %v993 = vld [vmem:[%s275 + $0x4a] sm:$0xff]
        %v994 = vld [vmem:[%s275 + $0x52] sm:$0xff]
        %v995 = vld [vmem:[%s275 + $0x62] sm:$0xff]
        %v996 = vld [vmem:[%s275 + $0x6a] sm:$0xff]
        %v997 = vld [vmem:[%s275 + $0x7a] sm:$0xff]
        %v998 = vld [vmem:[%s275 + $0x82] sm:$0xff]
        %v999 = vld [vmem:[%s275 + $0x92] sm:$0xff]
        %v1000 = vld [vmem:[%s275 + $0x9a] sm:$0xff]
        %v1001 = vld [vmem:[%s275 + $0xaa] sm:$0xff]
        %v1002 = vld [vmem:[%s275 + $0xb2] sm:$0xff]
        %v1003 = vld [vmem:[%s275 + $0xc2] sm:$0xff]
        %v1004 = vld [vmem:[%s275 + $0xca] sm:$0xff]
        %v1005 = vld [vmem:[%s275 + $0xda] sm:$0xff]
        %v1006 = vld [vmem:[%s275 + $0xe2] sm:$0xff]
        %v1007 = vld [vmem:[%s275 + $0xf2] sm:$0xff]
        %v1008 = vld [vmem:[%s275 + $0xfa] sm:$0xff]
        %v1009 = vld [vmem:[%s275 + $0x10a] sm:$0xff]
        %v1010 = vld [vmem:[%s275 + $0x112] sm:$0xff]
        %v1011 = vld [vmem:[%s275 + $0x122] sm:$0xff]
        %v1012 = vld [vmem:[%s275 + $0x12a] sm:$0xff]
        %v1013 = vld [vmem:[%s275 + $0x13a] sm:$0xff]
        %v1014 = vld [vmem:[%s275 + $0x142] sm:$0xff]
        %v1015 = vld [vmem:[%s275 + $0x152] sm:$0xff]
        %v1016 = vld [vmem:[%s275 + $0x15a] sm:$0xff]
        %v1017 = vld [vmem:[%s275 + $0x16a] sm:$0xff]
        %v1018 = vld [vmem:[%s275 + $0x172] sm:$0xff]
        %s1019 = scalar_lea.vmem %s1, 16
        %v1020 = vld [vmem:[%s1019] sm:$0xff]
        %v1022 = vsel %vm344, %v987, 0
        %v1025 = vsel %vm344, %v988, 0
        %v1028 = vsel %vm344, %v989, 0
        %v1031 = vsel %vm344, %v990, 0
        %v1034 = vsel %vm344, %v991, 0
        %v1037 = vsel %vm344, %v992, 0
        %v1040 = vsel %vm344, %v993, 0
        %v1043 = vsel %vm344, %v994, 0
        %v1046 = vsel %vm344, %v995, 0
        %v1049 = vsel %vm344, %v996, 0
        %v1052 = vsel %vm344, %v997, 0
        %v1055 = vsel %vm344, %v998, 0
        %v1058 = vsel %vm344, %v999, 0
        %v1061 = vsel %vm344, %v1000, 0
        %v1064 = vsel %vm344, %v1001, 0
        %v1067 = vsel %vm344, %v1002, 0
        %v1070 = vsel %vm344, %v1003, 0
        %v1073 = vsel %vm344, %v1004, 0
        %v1076 = vsel %vm344, %v1005, 0
        %v1079 = vsel %vm344, %v1006, 0
        %v1082 = vsel %vm344, %v1007, 0
        %v1085 = vsel %vm344, %v1008, 0
        %v1088 = vsel %vm344, %v1009, 0
        %v1091 = vsel %vm344, %v1010, 0
        %v1094 = vsel %vm344, %v1011, 0
        %v1097 = vsel %vm344, %v1012, 0
        %v1100 = vsel %vm344, %v1013, 0
        %v1103 = vsel %vm344, %v1014, 0
        %v1106 = vsel %vm344, %v1015, 0
        %v1109 = vsel %vm344, %v1016, 0
        %v1112 = vsel %vm344, %v1017, 0
        %v1115 = vsel %vm344, %v1018, 0
        %1117 = vmatprep.subr.mxu0 0.0
        %1118 = vmatpush1.msra.mxu0 %v1020
        %1119 = vmatprep.subr.mxu0 0.0
        %1120 = vmatpush1.msra.mxu0 0.0
        %1121 = vmatprep.subr.mxu0 0.0
        %1122 = vmatpush1.msra.mxu0 0.0
        %1123 = vmatprep.subr.mxu0 0.0
        %1124 = vmatpush1.msra.mxu0 0.0
        %1125 = vmatprep.subr.mxu0 0.0
        %1126 = vmatpush1.msra.mxu0 0.0
        %1127 = vmatprep.subr.mxu0 0.0
        %1128 = vmatpush1.msra.mxu0 0.0
        %1129 = vmatprep.subr.mxu0 0.0
        %1130 = vmatpush1.msra.mxu0 0.0
        %1131 = vmatprep.subr.mxu0 0.0
        %1132 = vmatpush1.msra.mxu0 0.0
        %1133 = vmatprep.subr.mxu0 0.0
        %1134 = vmatpush1.msra.mxu0 0.0
        %1135 = vmatprep.subr.mxu0 0.0
        %1136 = vmatpush1.msra.mxu0 0.0
        %1137 = vmatprep.subr.mxu0 0.0
        %1138 = vmatpush1.msra.mxu0 0.0
        %1139 = vmatprep.subr.mxu0 0.0
        %1140 = vmatpush1.msra.mxu0 0.0
        %1141 = vmatprep.subr.mxu0 0.0
        %1142 = vmatpush1.msra.mxu0 0.0
        %1143 = vmatprep.subr.mxu0 0.0
        %1144 = vmatpush1.msra.mxu0 0.0
        %1145 = vmatprep.subr.mxu0 0.0
        %1146 = vmatpush1.msra.mxu0 0.0
        %1147 = vmatprep.subr.mxu0 0.0
        %1148 = vmatpush1.msra.mxu0 0.0
        %1149 = vmatprep.subr.mxu0 0.0
        %1150 = vmatpush1.msra.mxu0 0.0
        %1151 = vmatprep.subr.mxu0 0.0
        %1152 = vmatpush1.msra.mxu0 0.0
        %1153 = vmatprep.subr.mxu0 0.0
        %1154 = vmatpush1.msra.mxu0 0.0
        %1155 = vmatprep.subr.mxu0 0.0
        %1156 = vmatpush1.msra.mxu0 0.0
        %1157 = vmatprep.subr.mxu0 0.0
        %1158 = vmatpush1.msra.mxu0 0.0
        %1159 = vmatprep.subr.mxu0 0.0
        %1160 = vmatpush1.msra.mxu0 0.0
        %1161 = vmatprep.subr.mxu0 0.0
        %1162 = vmatpush1.msra.mxu0 0.0
        %1163 = vmatprep.subr.mxu0 0.0
        %1164 = vmatpush1.msra.mxu0 0.0
        %1165 = vmatprep.subr.mxu0 0.0
        %1166 = vmatpush1.msra.mxu0 0.0
        %1167 = vmatprep.subr.mxu0 0.0
        %1168 = vmatpush1.msra.mxu0 0.0
        %1169 = vmatprep.subr.mxu0 0.0
        %1170 = vmatpush1.msra.mxu0 0.0
        %1171 = vmatprep.subr.mxu0 0.0
        %1172 = vmatpush1.msra.mxu0 0.0
        %1173 = vmatprep.subr.mxu0 0.0
        %1174 = vmatpush1.msra.mxu0 0.0
        %1175 = vmatprep.subr.mxu0 0.0
        %1176 = vmatpush1.msra.mxu0 0.0
        %1177 = vmatprep.subr.mxu0 0.0
        %1178 = vmatpush1.msra.mxu0 0.0
        %1179 = vmatprep.subr.mxu0 0.0
        %1180 = vmatpush1.msra.mxu0 0.0
        %1181 = vmatprep.mubr.f32.mxu0 0.0
        %1182 = vmatmul.mubr.f32.gmra.mrb[0].mxu0 %v1022
        %v1183 = vpop.f32.mrb[0].mxu0
        %v1184 = vadd.f32 0.0, %v1183
        %v1185 = vpop.f32.mrb[0].mxu0
        %1186 = vmatprep.mubr.f32.mxu0 0.0
        %1187 = vmatmul.mubr.f32.gmra.mrb[0].mxu0 %v1025
        %v1188 = vpop.f32.mrb[0].mxu0
        %v1189 = vadd.f32 0.0, %v1188
        %v1190 = vpop.f32.mrb[0].mxu0
        %1191 = vmatprep.mubr.f32.mxu0 0.0
        %1192 = vmatmul.mubr.f32.gmra.mrb[0].mxu0 %v1028
        %v1193 = vpop.f32.mrb[0].mxu0
        %v1194 = vadd.f32 0.0, %v1193
        %v1195 = vpop.f32.mrb[0].mxu0
        %1196 = vmatprep.mubr.f32.mxu0 0.0
        %1197 = vmatmul.mubr.f32.gmra.mrb[0].mxu0 %v1031
        %v1198 = vpop.f32.mrb[0].mxu0
        %v1199 = vadd.f32 0.0, %v1198
        %v1200 = vpop.f32.mrb[0].mxu0
        %1201 = vmatprep.mubr.f32.mxu0 0.0
        %1202 = vmatmul.mubr.f32.gmra.mrb[0].mxu0 %v1034
        %v1203 = vpop.f32.mrb[0].mxu0
        %v1204 = vadd.f32 0.0, %v1203
        %v1205 = vpop.f32.mrb[0].mxu0
        %1206 = vmatprep.mubr.f32.mxu0 0.0
        %1207 = vmatmul.mubr.f32.gmra.mrb[0].mxu0 %v1037
        %v1208 = vpop.f32.mrb[0].mxu0
        %v1209 = vadd.f32 0.0, %v1208
        %v1210 = vpop.f32.mrb[0].mxu0
        %1211 = vmatprep.mubr.f32.mxu0 0.0
        %1212 = vmatmul.mubr.f32.gmra.mrb[0].mxu0 %v1040
        %v1213 = vpop.f32.mrb[0].mxu0
        %v1214 = vadd.f32 0.0, %v1213
        %v1215 = vpop.f32.mrb[0].mxu0
        %1216 = vmatprep.mubr.f32.mxu0 0.0
        %1217 = vmatmul.mubr.f32.gmra.mrb[0].mxu0 %v1043
        %v1218 = vpop.f32.mrb[0].mxu0
        %v1219 = vadd.f32 0.0, %v1218
        %v1220 = vpop.f32.mrb[0].mxu0
        %1221 = vmatprep.mubr.f32.mxu0 0.0
        %1222 = vmatmul.mubr.f32.gmra.mrb[0].mxu0 %v1046
        %v1223 = vpop.f32.mrb[0].mxu0
        %v1224 = vadd.f32 0.0, %v1223
        %v1225 = vpop.f32.mrb[0].mxu0
        %1226 = vmatprep.mubr.f32.mxu0 0.0
        %1227 = vmatmul.mubr.f32.gmra.mrb[0].mxu0 %v1049
        %v1228 = vpop.f32.mrb[0].mxu0
        %v1229 = vadd.f32 0.0, %v1228
        %v1230 = vpop.f32.mrb[0].mxu0
        %1231 = vmatprep.mubr.f32.mxu0 0.0
        %1232 = vmatmul.mubr.f32.gmra.mrb[0].mxu0 %v1052
        %v1233 = vpop.f32.mrb[0].mxu0
        %v1234 = vadd.f32 0.0, %v1233
        %v1235 = vpop.f32.mrb[0].mxu0
        %1236 = vmatprep.mubr.f32.mxu0 0.0
        %1237 = vmatmul.mubr.f32.gmra.mrb[0].mxu0 %v1055
        %v1238 = vpop.f32.mrb[0].mxu0
        %v1239 = vadd.f32 0.0, %v1238
        %v1240 = vpop.f32.mrb[0].mxu0
        %1241 = vmatprep.mubr.f32.mxu0 0.0
        %1242 = vmatmul.mubr.f32.gmra.mrb[0].mxu0 %v1058
        %v1243 = vpop.f32.mrb[0].mxu0
        %v1244 = vadd.f32 0.0, %v1243
        %v1245 = vpop.f32.mrb[0].mxu0
        %1246 = vmatprep.mubr.f32.mxu0 0.0
        %1247 = vmatmul.mubr.f32.gmra.mrb[0].mxu0 %v1061
        %v1248 = vpop.f32.mrb[0].mxu0
        %v1249 = vadd.f32 0.0, %v1248
        %v1250 = vpop.f32.mrb[0].mxu0
        %1251 = vmatprep.mubr.f32.mxu0 0.0
        %1252 = vmatmul.mubr.f32.gmra.mrb[0].mxu0 %v1064
        %v1253 = vpop.f32.mrb[0].mxu0
        %v1254 = vadd.f32 0.0, %v1253
        %v1255 = vpop.f32.mrb[0].mxu0
        %1256 = vmatprep.mubr.f32.mxu0 0.0
        %1257 = vmatmul.mubr.f32.gmra.mrb[0].mxu0 %v1067
        %v1258 = vpop.f32.mrb[0].mxu0
        %v1259 = vadd.f32 0.0, %v1258
        %v1260 = vpop.f32.mrb[0].mxu0
        %1261 = vmatprep.mubr.f32.mxu0 0.0
        %1262 = vmatmul.mubr.f32.gmra.mrb[0].mxu0 %v1070
        %v1263 = vpop.f32.mrb[0].mxu0
        %v1264 = vadd.f32 0.0, %v1263
        %v1265 = vpop.f32.mrb[0].mxu0
        %1266 = vmatprep.mubr.f32.mxu0 0.0
        %1267 = vmatmul.mubr.f32.gmra.mrb[0].mxu0 %v1073
        %v1268 = vpop.f32.mrb[0].mxu0
        %v1269 = vadd.f32 0.0, %v1268
        %v1270 = vpop.f32.mrb[0].mxu0
        %1271 = vmatprep.mubr.f32.mxu0 0.0
        %1272 = vmatmul.mubr.f32.gmra.mrb[0].mxu0 %v1076
        %v1273 = vpop.f32.mrb[0].mxu0
        %v1274 = vadd.f32 0.0, %v1273
        %v1275 = vpop.f32.mrb[0].mxu0
        %1276 = vmatprep.mubr.f32.mxu0 0.0
        %1277 = vmatmul.mubr.f32.gmra.mrb[0].mxu0 %v1079
        %v1278 = vpop.f32.mrb[0].mxu0
        %v1279 = vadd.f32 0.0, %v1278
        %v1280 = vpop.f32.mrb[0].mxu0
        %1281 = vmatprep.mubr.f32.mxu0 0.0
        %1282 = vmatmul.mubr.f32.gmra.mrb[0].mxu0 %v1082
        %v1283 = vpop.f32.mrb[0].mxu0
        %v1284 = vadd.f32 0.0, %v1283
        %v1285 = vpop.f32.mrb[0].mxu0
        %1286 = vmatprep.mubr.f32.mxu0 0.0
        %1287 = vmatmul.mubr.f32.gmra.mrb[0].mxu0 %v1085
        %v1288 = vpop.f32.mrb[0].mxu0
        %v1289 = vadd.f32 0.0, %v1288
        %v1290 = vpop.f32.mrb[0].mxu0
        %1291 = vmatprep.mubr.f32.mxu0 0.0
        %1292 = vmatmul.mubr.f32.gmra.mrb[0].mxu0 %v1088
        %v1293 = vpop.f32.mrb[0].mxu0
        %v1294 = vadd.f32 0.0, %v1293
        %v1295 = vpop.f32.mrb[0].mxu0
        %1296 = vmatprep.mubr.f32.mxu0 0.0
        %1297 = vmatmul.mubr.f32.gmra.mrb[0].mxu0 %v1091
        %v1298 = vpop.f32.mrb[0].mxu0
        %v1299 = vadd.f32 0.0, %v1298
        %v1300 = vpop.f32.mrb[0].mxu0
        %1301 = vmatprep.mubr.f32.mxu0 0.0
        %1302 = vmatmul.mubr.f32.gmra.mrb[0].mxu0 %v1094
        %v1303 = vpop.f32.mrb[0].mxu0
        %v1304 = vadd.f32 0.0, %v1303
        %v1305 = vpop.f32.mrb[0].mxu0
        %1306 = vmatprep.mubr.f32.mxu0 0.0
        %1307 = vmatmul.mubr.f32.gmra.mrb[0].mxu0 %v1097
        %v1308 = vpop.f32.mrb[0].mxu0
        %v1309 = vadd.f32 0.0, %v1308
        %v1310 = vpop.f32.mrb[0].mxu0
        %1311 = vmatprep.mubr.f32.mxu0 0.0
        %1312 = vmatmul.mubr.f32.gmra.mrb[0].mxu0 %v1100
        %v1313 = vpop.f32.mrb[0].mxu0
        %v1314 = vadd.f32 0.0, %v1313
        %v1315 = vpop.f32.mrb[0].mxu0
        %1316 = vmatprep.mubr.f32.mxu0 0.0
        %1317 = vmatmul.mubr.f32.gmra.mrb[0].mxu0 %v1103
        %v1318 = vpop.f32.mrb[0].mxu0
        %v1319 = vadd.f32 0.0, %v1318
        %v1320 = vpop.f32.mrb[0].mxu0
        %1321 = vmatprep.mubr.f32.mxu0 0.0
        %1322 = vmatmul.mubr.f32.gmra.mrb[0].mxu0 %v1106
        %v1323 = vpop.f32.mrb[0].mxu0
        %v1324 = vadd.f32 0.0, %v1323
        %v1325 = vpop.f32.mrb[0].mxu0
        %1326 = vmatprep.mubr.f32.mxu0 0.0
        %1327 = vmatmul.mubr.f32.gmra.mrb[0].mxu0 %v1109
        %v1328 = vpop.f32.mrb[0].mxu0
        %v1329 = vadd.f32 0.0, %v1328
        %v1330 = vpop.f32.mrb[0].mxu0
        %1331 = vmatprep.mubr.f32.mxu0 0.0
        %1332 = vmatmul.mubr.f32.gmra.mrb[0].mxu0 %v1112
        %v1333 = vpop.f32.mrb[0].mxu0
        %v1334 = vadd.f32 0.0, %v1333
        %v1335 = vpop.f32.mrb[0].mxu0
        %1336 = vmatprep.mubr.f32.mxu0 0.0
        %1337 = vmatmul.mubr.f32.gmra.mrb[0].mxu0 %v1115
        %v1338 = vpop.f32.mrb[0].mxu0
        %v1339 = vadd.f32 0.0, %v1338
        %v1340 = vpop.f32.mrb[0].mxu0
        %1341 = vdwg.mxu0
        %v1342 = vadd.f32 %v829, %v1184
        %v1343 = vadd.f32 %v834, %v1189
        %v1344 = vadd.f32 %v839, %v1194
        %v1345 = vadd.f32 %v844, %v1199
        %v1346 = vadd.f32 %v849, %v1204
        %v1347 = vadd.f32 %v854, %v1209
        %v1348 = vadd.f32 %v859, %v1214
        %v1349 = vadd.f32 %v864, %v1219
        %v1350 = vadd.f32 %v869, %v1224
        %v1351 = vadd.f32 %v874, %v1229
        %v1352 = vadd.f32 %v879, %v1234
        %v1353 = vadd.f32 %v884, %v1239
        %v1354 = vadd.f32 %v889, %v1244
        %v1355 = vadd.f32 %v894, %v1249
        %v1356 = vadd.f32 %v899, %v1254
        %v1357 = vadd.f32 %v904, %v1259
        %v1358 = vadd.f32 %v909, %v1264
        %v1359 = vadd.f32 %v914, %v1269
        %v1360 = vadd.f32 %v919, %v1274
        %v1361 = vadd.f32 %v924, %v1279
        %v1362 = vadd.f32 %v929, %v1284
        %v1363 = vadd.f32 %v934, %v1289
        %v1364 = vadd.f32 %v939, %v1294
        %v1365 = vadd.f32 %v944, %v1299
        %v1366 = vadd.f32 %v949, %v1304
        %v1367 = vadd.f32 %v954, %v1309
        %v1368 = vadd.f32 %v959, %v1314
        %v1369 = vadd.f32 %v964, %v1319
        %v1370 = vadd.f32 %v969, %v1324
        %v1371 = vadd.f32 %v974, %v1329
        %v1372 = vadd.f32 %v979, %v1334
        %v1373 = vadd.f32 %v984, %v1339
        %s1374 = scalar_lea.vmem %s275, 24
        %v1375 = vld [vmem:[%s1374] sm:$0xff]
        %v1376 = vld [vmem:[%s1374 + $0x8] sm:$0xff]
        %v1377 = vld [vmem:[%s1374 + $0x18] sm:$0xff]
        %v1378 = vld [vmem:[%s1374 + $0x20] sm:$0xff]
        %v1379 = vld [vmem:[%s1374 + $0x30] sm:$0xff]
        %v1380 = vld [vmem:[%s1374 + $0x38] sm:$0xff]
        %v1381 = vld [vmem:[%s1374 + $0x48] sm:$0xff]
        %v1382 = vld [vmem:[%s1374 + $0x50] sm:$0xff]
        %v1383 = vld [vmem:[%s1374 + $0x60] sm:$0xff]
        %v1384 = vld [vmem:[%s1374 + $0x68] sm:$0xff]
        %v1385 = vld [vmem:[%s1374 + $0x78] sm:$0xff]
        %v1386 = vld [vmem:[%s1374 + $0x80] sm:$0xff]
        %v1387 = vld [vmem:[%s1374 + $0x90] sm:$0xff]
        %v1388 = vld [vmem:[%s1374 + $0x98] sm:$0xff]
        %v1389 = vld [vmem:[%s1374 + $0xa8] sm:$0xff]
        %v1390 = vld [vmem:[%s1374 + $0xb0] sm:$0xff]
        %v1391 = vld [vmem:[%s1374 + $0xc0] sm:$0xff]
        %v1392 = vld [vmem:[%s1374 + $0xc8] sm:$0xff]
        %v1393 = vld [vmem:[%s1374 + $0xd8] sm:$0xff]
        %v1394 = vld [vmem:[%s1374 + $0xe0] sm:$0xff]
        %v1395 = vld [vmem:[%s1374 + $0xf0] sm:$0xff]
        %v1396 = vld [vmem:[%s1374 + $0xf8] sm:$0xff]
        %v1397 = vld [vmem:[%s1374 + $0x108] sm:$0xff]
        %v1398 = vld [vmem:[%s1374 + $0x110] sm:$0xff]
        %v1399 = vld [vmem:[%s1374 + $0x120] sm:$0xff]
        %v1400 = vld [vmem:[%s1374 + $0x128] sm:$0xff]
        %v1401 = vld [vmem:[%s1374 + $0x138] sm:$0xff]
        %v1402 = vld [vmem:[%s1374 + $0x140] sm:$0xff]
        %v1403 = vld [vmem:[%s1374 + $0x150] sm:$0xff]
        %v1404 = vld [vmem:[%s1374 + $0x158] sm:$0xff]
        %v1405 = vld [vmem:[%s1374 + $0x168] sm:$0xff]
        %v1406 = vld [vmem:[%s1374 + $0x170] sm:$0xff]
        %s1407 = scalar_lea.vmem %s1, 24
        %v1408 = vld [vmem:[%s1407] sm:$0xff]
        %v1410 = vsel %vm344, %v1375, 0
        %v1413 = vsel %vm344, %v1376, 0
        %v1416 = vsel %vm344, %v1377, 0
        %v1419 = vsel %vm344, %v1378, 0
        %v1422 = vsel %vm344, %v1379, 0
        %v1425 = vsel %vm344, %v1380, 0
        %v1428 = vsel %vm344, %v1381, 0
        %v1431 = vsel %vm344, %v1382, 0
        %v1434 = vsel %vm344, %v1383, 0
        %v1437 = vsel %vm344, %v1384, 0
        %v1440 = vsel %vm344, %v1385, 0
        %v1443 = vsel %vm344, %v1386, 0
        %v1446 = vsel %vm344, %v1387, 0
        %v1449 = vsel %vm344, %v1388, 0
        %v1452 = vsel %vm344, %v1389, 0
        %v1455 = vsel %vm344, %v1390, 0
        %v1458 = vsel %vm344, %v1391, 0
        %v1461 = vsel %vm344, %v1392, 0
        %v1464 = vsel %vm344, %v1393, 0
        %v1467 = vsel %vm344, %v1394, 0
        %v1470 = vsel %vm344, %v1395, 0
        %v1473 = vsel %vm344, %v1396, 0
        %v1476 = vsel %vm344, %v1397, 0
        %v1479 = vsel %vm344, %v1398, 0
        %v1482 = vsel %vm344, %v1399, 0
        %v1485 = vsel %vm344, %v1400, 0
        %v1488 = vsel %vm344, %v1401, 0
        %v1491 = vsel %vm344, %v1402, 0
        %v1494 = vsel %vm344, %v1403, 0
        %v1497 = vsel %vm344, %v1404, 0
        %v1500 = vsel %vm344, %v1405, 0
        %v1503 = vsel %vm344, %v1406, 0
        %1505 = vmatprep.subr.mxu0 0.0
        %1506 = vmatpush1.msra.mxu0 %v1408
        %1507 = vmatprep.subr.mxu0 0.0
        %1508 = vmatpush1.msra.mxu0 0.0
        %1509 = vmatprep.subr.mxu0 0.0
        %1510 = vmatpush1.msra.mxu0 0.0
        %1511 = vmatprep.subr.mxu0 0.0
        %1512 = vmatpush1.msra.mxu0 0.0
        %1513 = vmatprep.subr.mxu0 0.0
        %1514 = vmatpush1.msra.mxu0 0.0
        %1515 = vmatprep.subr.mxu0 0.0
        %1516 = vmatpush1.msra.mxu0 0.0
        %1517 = vmatprep.subr.mxu0 0.0
        %1518 = vmatpush1.msra.mxu0 0.0
        %1519 = vmatprep.subr.mxu0 0.0
        %1520 = vmatpush1.msra.mxu0 0.0
        %1521 = vmatprep.subr.mxu0 0.0
        %1522 = vmatpush1.msra.mxu0 0.0
        %1523 = vmatprep.subr.mxu0 0.0
        %1524 = vmatpush1.msra.mxu0 0.0
        %1525 = vmatprep.subr.mxu0 0.0
        %1526 = vmatpush1.msra.mxu0 0.0
        %1527 = vmatprep.subr.mxu0 0.0
        %1528 = vmatpush1.msra.mxu0 0.0
        %1529 = vmatprep.subr.mxu0 0.0
        %1530 = vmatpush1.msra.mxu0 0.0
        %1531 = vmatprep.subr.mxu0 0.0
        %1532 = vmatpush1.msra.mxu0 0.0
        %1533 = vmatprep.subr.mxu0 0.0
        %1534 = vmatpush1.msra.mxu0 0.0
        %1535 = vmatprep.subr.mxu0 0.0
        %1536 = vmatpush1.msra.mxu0 0.0
        %1537 = vmatprep.subr.mxu0 0.0
        %1538 = vmatpush1.msra.mxu0 0.0
        %1539 = vmatprep.subr.mxu0 0.0
        %1540 = vmatpush1.msra.mxu0 0.0
        %1541 = vmatprep.subr.mxu0 0.0
        %1542 = vmatpush1.msra.mxu0 0.0
        %1543 = vmatprep.subr.mxu0 0.0
        %1544 = vmatpush1.msra.mxu0 0.0
        %1545 = vmatprep.subr.mxu0 0.0
        %1546 = vmatpush1.msra.mxu0 0.0
        %1547 = vmatprep.subr.mxu0 0.0
        %1548 = vmatpush1.msra.mxu0 0.0
        %1549 = vmatprep.subr.mxu0 0.0
        %1550 = vmatpush1.msra.mxu0 0.0
        %1551 = vmatprep.subr.mxu0 0.0
        %1552 = vmatpush1.msra.mxu0 0.0
        %1553 = vmatprep.subr.mxu0 0.0
        %1554 = vmatpush1.msra.mxu0 0.0
        %1555 = vmatprep.subr.mxu0 0.0
        %1556 = vmatpush1.msra.mxu0 0.0
        %1557 = vmatprep.subr.mxu0 0.0
        %1558 = vmatpush1.msra.mxu0 0.0
        %1559 = vmatprep.subr.mxu0 0.0
        %1560 = vmatpush1.msra.mxu0 0.0
        %1561 = vmatprep.subr.mxu0 0.0
        %1562 = vmatpush1.msra.mxu0 0.0
        %1563 = vmatprep.subr.mxu0 0.0
        %1564 = vmatpush1.msra.mxu0 0.0
        %1565 = vmatprep.subr.mxu0 0.0
        %1566 = vmatpush1.msra.mxu0 0.0
        %1567 = vmatprep.subr.mxu0 0.0
        %1568 = vmatpush1.msra.mxu0 0.0
        %1569 = vmatprep.mubr.f32.mxu0 0.0
        %1570 = vmatmul.mubr.f32.gmra.mrb[0].mxu0 %v1410
        %v1571 = vpop.f32.mrb[0].mxu0
        %v1572 = vadd.f32 0.0, %v1571
        %v1573 = vpop.f32.mrb[0].mxu0
        %1574 = vmatprep.mubr.f32.mxu0 0.0
        %1575 = vmatmul.mubr.f32.gmra.mrb[0].mxu0 %v1413
        %v1576 = vpop.f32.mrb[0].mxu0
        %v1577 = vadd.f32 0.0, %v1576
        %v1578 = vpop.f32.mrb[0].mxu0
        %1579 = vmatprep.mubr.f32.mxu0 0.0
        %1580 = vmatmul.mubr.f32.gmra.mrb[0].mxu0 %v1416
        %v1581 = vpop.f32.mrb[0].mxu0
        %v1582 = vadd.f32 0.0, %v1581
        %v1583 = vpop.f32.mrb[0].mxu0
        %1584 = vmatprep.mubr.f32.mxu0 0.0
        %1585 = vmatmul.mubr.f32.gmra.mrb[0].mxu0 %v1419
        %v1586 = vpop.f32.mrb[0].mxu0
        %v1587 = vadd.f32 0.0, %v1586
        %v1588 = vpop.f32.mrb[0].mxu0
        %1589 = vmatprep.mubr.f32.mxu0 0.0
        %1590 = vmatmul.mubr.f32.gmra.mrb[0].mxu0 %v1422
        %v1591 = vpop.f32.mrb[0].mxu0
        %v1592 = vadd.f32 0.0, %v1591
        %v1593 = vpop.f32.mrb[0].mxu0
        %1594 = vmatprep.mubr.f32.mxu0 0.0
        %1595 = vmatmul.mubr.f32.gmra.mrb[0].mxu0 %v1425
        %v1596 = vpop.f32.mrb[0].mxu0
        %v1597 = vadd.f32 0.0, %v1596
        %v1598 = vpop.f32.mrb[0].mxu0
        %1599 = vmatprep.mubr.f32.mxu0 0.0
        %1600 = vmatmul.mubr.f32.gmra.mrb[0].mxu0 %v1428
        %v1601 = vpop.f32.mrb[0].mxu0
        %v1602 = vadd.f32 0.0, %v1601
        %v1603 = vpop.f32.mrb[0].mxu0
        %1604 = vmatprep.mubr.f32.mxu0 0.0
        %1605 = vmatmul.mubr.f32.gmra.mrb[0].mxu0 %v1431
        %v1606 = vpop.f32.mrb[0].mxu0
        %v1607 = vadd.f32 0.0, %v1606
        %v1608 = vpop.f32.mrb[0].mxu0
        %1609 = vmatprep.mubr.f32.mxu0 0.0
        %1610 = vmatmul.mubr.f32.gmra.mrb[0].mxu0 %v1434
        %v1611 = vpop.f32.mrb[0].mxu0
        %v1612 = vadd.f32 0.0, %v1611
        %v1613 = vpop.f32.mrb[0].mxu0
        %1614 = vmatprep.mubr.f32.mxu0 0.0
        %1615 = vmatmul.mubr.f32.gmra.mrb[0].mxu0 %v1437
        %v1616 = vpop.f32.mrb[0].mxu0
        %v1617 = vadd.f32 0.0, %v1616
        %v1618 = vpop.f32.mrb[0].mxu0
        %1619 = vmatprep.mubr.f32.mxu0 0.0
        %1620 = vmatmul.mubr.f32.gmra.mrb[0].mxu0 %v1440
        %v1621 = vpop.f32.mrb[0].mxu0
        %v1622 = vadd.f32 0.0, %v1621
        %v1623 = vpop.f32.mrb[0].mxu0
        %1624 = vmatprep.mubr.f32.mxu0 0.0
        %1625 = vmatmul.mubr.f32.gmra.mrb[0].mxu0 %v1443
        %v1626 = vpop.f32.mrb[0].mxu0
        %v1627 = vadd.f32 0.0, %v1626
        %v1628 = vpop.f32.mrb[0].mxu0
        %1629 = vmatprep.mubr.f32.mxu0 0.0
        %1630 = vmatmul.mubr.f32.gmra.mrb[0].mxu0 %v1446
        %v1631 = vpop.f32.mrb[0].mxu0
        %v1632 = vadd.f32 0.0, %v1631
        %v1633 = vpop.f32.mrb[0].mxu0
        %1634 = vmatprep.mubr.f32.mxu0 0.0
        %1635 = vmatmul.mubr.f32.gmra.mrb[0].mxu0 %v1449
        %v1636 = vpop.f32.mrb[0].mxu0
        %v1637 = vadd.f32 0.0, %v1636
        %v1638 = vpop.f32.mrb[0].mxu0
        %1639 = vmatprep.mubr.f32.mxu0 0.0
        %1640 = vmatmul.mubr.f32.gmra.mrb[0].mxu0 %v1452
        %v1641 = vpop.f32.mrb[0].mxu0
        %v1642 = vadd.f32 0.0, %v1641
        %v1643 = vpop.f32.mrb[0].mxu0
        %1644 = vmatprep.mubr.f32.mxu0 0.0
        %1645 = vmatmul.mubr.f32.gmra.mrb[0].mxu0 %v1455
        %v1646 = vpop.f32.mrb[0].mxu0
        %v1647 = vadd.f32 0.0, %v1646
        %v1648 = vpop.f32.mrb[0].mxu0
        %1649 = vmatprep.mubr.f32.mxu0 0.0
        %1650 = vmatmul.mubr.f32.gmra.mrb[0].mxu0 %v1458
        %v1651 = vpop.f32.mrb[0].mxu0
        %v1652 = vadd.f32 0.0, %v1651
        %v1653 = vpop.f32.mrb[0].mxu0
        %1654 = vmatprep.mubr.f32.mxu0 0.0
        %1655 = vmatmul.mubr.f32.gmra.mrb[0].mxu0 %v1461
        %v1656 = vpop.f32.mrb[0].mxu0
        %v1657 = vadd.f32 0.0, %v1656
        %v1658 = vpop.f32.mrb[0].mxu0
        %1659 = vmatprep.mubr.f32.mxu0 0.0
        %1660 = vmatmul.mubr.f32.gmra.mrb[0].mxu0 %v1464
        %v1661 = vpop.f32.mrb[0].mxu0
        %v1662 = vadd.f32 0.0, %v1661
        %v1663 = vpop.f32.mrb[0].mxu0
        %1664 = vmatprep.mubr.f32.mxu0 0.0
        %1665 = vmatmul.mubr.f32.gmra.mrb[0].mxu0 %v1467
        %v1666 = vpop.f32.mrb[0].mxu0
        %v1667 = vadd.f32 0.0, %v1666
        %v1668 = vpop.f32.mrb[0].mxu0
        %1669 = vmatprep.mubr.f32.mxu0 0.0
        %1670 = vmatmul.mubr.f32.gmra.mrb[0].mxu0 %v1470
        %v1671 = vpop.f32.mrb[0].mxu0
        %v1672 = vadd.f32 0.0, %v1671
        %v1673 = vpop.f32.mrb[0].mxu0
        %1674 = vmatprep.mubr.f32.mxu0 0.0
        %1675 = vmatmul.mubr.f32.gmra.mrb[0].mxu0 %v1473
        %v1676 = vpop.f32.mrb[0].mxu0
        %v1677 = vadd.f32 0.0, %v1676
        %v1678 = vpop.f32.mrb[0].mxu0
        %1679 = vmatprep.mubr.f32.mxu0 0.0
        %1680 = vmatmul.mubr.f32.gmra.mrb[0].mxu0 %v1476
        %v1681 = vpop.f32.mrb[0].mxu0
        %v1682 = vadd.f32 0.0, %v1681
        %v1683 = vpop.f32.mrb[0].mxu0
        %1684 = vmatprep.mubr.f32.mxu0 0.0
        %1685 = vmatmul.mubr.f32.gmra.mrb[0].mxu0 %v1479
        %v1686 = vpop.f32.mrb[0].mxu0
        %v1687 = vadd.f32 0.0, %v1686
        %v1688 = vpop.f32.mrb[0].mxu0
        %1689 = vmatprep.mubr.f32.mxu0 0.0
        %1690 = vmatmul.mubr.f32.gmra.mrb[0].mxu0 %v1482
        %v1691 = vpop.f32.mrb[0].mxu0
        %v1692 = vadd.f32 0.0, %v1691
        %v1693 = vpop.f32.mrb[0].mxu0
        %1694 = vmatprep.mubr.f32.mxu0 0.0
        %1695 = vmatmul.mubr.f32.gmra.mrb[0].mxu0 %v1485
        %v1696 = vpop.f32.mrb[0].mxu0
        %v1697 = vadd.f32 0.0, %v1696
        %v1698 = vpop.f32.mrb[0].mxu0
        %1699 = vmatprep.mubr.f32.mxu0 0.0
        %1700 = vmatmul.mubr.f32.gmra.mrb[0].mxu0 %v1488
        %v1701 = vpop.f32.mrb[0].mxu0
        %v1702 = vadd.f32 0.0, %v1701
        %v1703 = vpop.f32.mrb[0].mxu0
        %1704 = vmatprep.mubr.f32.mxu0 0.0
        %1705 = vmatmul.mubr.f32.gmra.mrb[0].mxu0 %v1491
        %v1706 = vpop.f32.mrb[0].mxu0
        %v1707 = vadd.f32 0.0, %v1706
        %v1708 = vpop.f32.mrb[0].mxu0
        %1709 = vmatprep.mubr.f32.mxu0 0.0
        %1710 = vmatmul.mubr.f32.gmra.mrb[0].mxu0 %v1494
        %v1711 = vpop.f32.mrb[0].mxu0
        %v1712 = vadd.f32 0.0, %v1711
        %v1713 = vpop.f32.mrb[0].mxu0
        %1714 = vmatprep.mubr.f32.mxu0 0.0
        %1715 = vmatmul.mubr.f32.gmra.mrb[0].mxu0 %v1497
        %v1716 = vpop.f32.mrb[0].mxu0
        %v1717 = vadd.f32 0.0, %v1716
        %v1718 = vpop.f32.mrb[0].mxu0
        %1719 = vmatprep.mubr.f32.mxu0 0.0
        %1720 = vmatmul.mubr.f32.gmra.mrb[0].mxu0 %v1500
        %v1721 = vpop.f32.mrb[0].mxu0
        %v1722 = vadd.f32 0.0, %v1721
        %v1723 = vpop.f32.mrb[0].mxu0
        %1724 = vmatprep.mubr.f32.mxu0 0.0
        %1725 = vmatmul.mubr.f32.gmra.mrb[0].mxu0 %v1503
        %v1726 = vpop.f32.mrb[0].mxu0
        %v1727 = vadd.f32 0.0, %v1726
        %v1728 = vpop.f32.mrb[0].mxu0
        %1729 = vdwg.mxu0
        %v1730 = vadd.f32 %v1342, %v1572
        %v1731 = vadd.f32 %v1343, %v1577
        %v1732 = vadd.f32 %v1344, %v1582
        %v1733 = vadd.f32 %v1345, %v1587
        %v1734 = vadd.f32 %v1346, %v1592
        %v1735 = vadd.f32 %v1347, %v1597
        %v1736 = vadd.f32 %v1348, %v1602
        %v1737 = vadd.f32 %v1349, %v1607
        %v1738 = vadd.f32 %v1350, %v1612
        %v1739 = vadd.f32 %v1351, %v1617
        %v1740 = vadd.f32 %v1352, %v1622
        %v1741 = vadd.f32 %v1353, %v1627
        %v1742 = vadd.f32 %v1354, %v1632
        %v1743 = vadd.f32 %v1355, %v1637
        %v1744 = vadd.f32 %v1356, %v1642
        %v1745 = vadd.f32 %v1357, %v1647
        %v1746 = vadd.f32 %v1358, %v1652
        %v1747 = vadd.f32 %v1359, %v1657
        %v1748 = vadd.f32 %v1360, %v1662
        %v1749 = vadd.f32 %v1361, %v1667
        %v1750 = vadd.f32 %v1362, %v1672
        %v1751 = vadd.f32 %v1363, %v1677
        %v1752 = vadd.f32 %v1364, %v1682
        %v1753 = vadd.f32 %v1365, %v1687
        %v1754 = vadd.f32 %v1366, %v1692
        %v1755 = vadd.f32 %v1367, %v1697
        %v1756 = vadd.f32 %v1368, %v1702
        %v1757 = vadd.f32 %v1369, %v1707
        %v1758 = vadd.f32 %v1370, %v1712
        %v1759 = vadd.f32 %v1371, %v1717
        %v1760 = vadd.f32 %v1372, %v1722
        %v1761 = vadd.f32 %v1373, %v1727
        %v1762 = vld [vmem:[%s1374 + $0x1] sm:$0xff]
        %v1763 = vld [vmem:[%s1374 + $0x9] sm:$0xff]
        %v1764 = vld [vmem:[%s1374 + $0x19] sm:$0xff]
        %v1765 = vld [vmem:[%s1374 + $0x21] sm:$0xff]
        %v1766 = vld [vmem:[%s1374 + $0x31] sm:$0xff]
        %v1767 = vld [vmem:[%s1374 + $0x39] sm:$0xff]
        %v1768 = vld [vmem:[%s1374 + $0x49] sm:$0xff]
        %v1769 = vld [vmem:[%s1374 + $0x51] sm:$0xff]
        %v1770 = vld [vmem:[%s1374 + $0x61] sm:$0xff]
        %v1771 = vld [vmem:[%s1374 + $0x69] sm:$0xff]
        %v1772 = vld [vmem:[%s1374 + $0x79] sm:$0xff]
        %v1773 = vld [vmem:[%s1374 + $0x81] sm:$0xff]
        %v1774 = vld [vmem:[%s1374 + $0x91] sm:$0xff]
        %v1775 = vld [vmem:[%s1374 + $0x99] sm:$0xff]
        %v1776 = vld [vmem:[%s1374 + $0xa9] sm:$0xff]
        %v1777 = vld [vmem:[%s1374 + $0xb1] sm:$0xff]
        %v1778 = vld [vmem:[%s1374 + $0xc1] sm:$0xff]
        %v1779 = vld [vmem:[%s1374 + $0xc9] sm:$0xff]
        %v1780 = vld [vmem:[%s1374 + $0xd9] sm:$0xff]
        %v1781 = vld [vmem:[%s1374 + $0xe1] sm:$0xff]
        %v1782 = vld [vmem:[%s1374 + $0xf1] sm:$0xff]
        %v1783 = vld [vmem:[%s1374 + $0xf9] sm:$0xff]
        %v1784 = vld [vmem:[%s1374 + $0x109] sm:$0xff]
        %v1785 = vld [vmem:[%s1374 + $0x111] sm:$0xff]
        %v1786 = vld [vmem:[%s1374 + $0x121] sm:$0xff]
        %v1787 = vld [vmem:[%s1374 + $0x129] sm:$0xff]
        %v1788 = vld [vmem:[%s1374 + $0x139] sm:$0xff]
        %v1789 = vld [vmem:[%s1374 + $0x141] sm:$0xff]
        %v1790 = vld [vmem:[%s1374 + $0x151] sm:$0xff]
        %v1791 = vld [vmem:[%s1374 + $0x159] sm:$0xff]
        %v1792 = vld [vmem:[%s1374 + $0x169] sm:$0xff]
        %v1793 = vld [vmem:[%s1374 + $0x171] sm:$0xff]
        %s1794 = scalar_lea.vmem %s1, 32
        %v1795 = vld [vmem:[%s1794] sm:$0xff]
        %v1797 = vsel %vm344, %v1762, 0
        %v1800 = vsel %vm344, %v1763, 0
        %v1803 = vsel %vm344, %v1764, 0
        %v1806 = vsel %vm344, %v1765, 0
        %v1809 = vsel %vm344, %v1766, 0
        %v1812 = vsel %vm344, %v1767, 0
        %v1815 = vsel %vm344, %v1768, 0
        %v1818 = vsel %vm344, %v1769, 0
        %v1821 = vsel %vm344, %v1770, 0
        %v1824 = vsel %vm344, %v1771, 0
        %v1827 = vsel %vm344, %v1772, 0
        %v1830 = vsel %vm344, %v1773, 0
        %v1833 = vsel %vm344, %v1774, 0
        %v1836 = vsel %vm344, %v1775, 0
        %v1839 = vsel %vm344, %v1776, 0
        %v1842 = vsel %vm344, %v1777, 0
        %v1845 = vsel %vm344, %v1778, 0
        %v1848 = vsel %vm344, %v1779, 0
        %v1851 = vsel %vm344, %v1780, 0
        %v1854 = vsel %vm344, %v1781, 0
        %v1857 = vsel %vm344, %v1782, 0
        %v1860 = vsel %vm344, %v1783, 0
        %v1863 = vsel %vm344, %v1784, 0
        %v1866 = vsel %vm344, %v1785, 0
        %v1869 = vsel %vm344, %v1786, 0
        %v1872 = vsel %vm344, %v1787, 0
        %v1875 = vsel %vm344, %v1788, 0
        %v1878 = vsel %vm344, %v1789, 0
        %v1881 = vsel %vm344, %v1790, 0
        %v1884 = vsel %vm344, %v1791, 0
        %v1887 = vsel %vm344, %v1792, 0
        %v1890 = vsel %vm344, %v1793, 0
        %1892 = vmatprep.subr.mxu0 0.0
        %1893 = vmatpush1.msra.mxu0 %v1795
        %1894 = vmatprep.subr.mxu0 0.0
        %1895 = vmatpush1.msra.mxu0 0.0
        %1896 = vmatprep.subr.mxu0 0.0
        %1897 = vmatpush1.msra.mxu0 0.0
        %1898 = vmatprep.subr.mxu0 0.0
        %1899 = vmatpush1.msra.mxu0 0.0
        %1900 = vmatprep.subr.mxu0 0.0
        %1901 = vmatpush1.msra.mxu0 0.0
        %1902 = vmatprep.subr.mxu0 0.0
        %1903 = vmatpush1.msra.mxu0 0.0
        %1904 = vmatprep.subr.mxu0 0.0
        %1905 = vmatpush1.msra.mxu0 0.0
        %1906 = vmatprep.subr.mxu0 0.0
        %1907 = vmatpush1.msra.mxu0 0.0
        %1908 = vmatprep.subr.mxu0 0.0
        %1909 = vmatpush1.msra.mxu0 0.0
        %1910 = vmatprep.subr.mxu0 0.0
        %1911 = vmatpush1.msra.mxu0 0.0
        %1912 = vmatprep.subr.mxu0 0.0
        %1913 = vmatpush1.msra.mxu0 0.0
        %1914 = vmatprep.subr.mxu0 0.0
        %1915 = vmatpush1.msra.mxu0 0.0
        %1916 = vmatprep.subr.mxu0 0.0
        %1917 = vmatpush1.msra.mxu0 0.0
        %1918 = vmatprep.subr.mxu0 0.0
        %1919 = vmatpush1.msra.mxu0 0.0
        %1920 = vmatprep.subr.mxu0 0.0
        %1921 = vmatpush1.msra.mxu0 0.0
        %1922 = vmatprep.subr.mxu0 0.0
        %1923 = vmatpush1.msra.mxu0 0.0
        %1924 = vmatprep.subr.mxu0 0.0
        %1925 = vmatpush1.msra.mxu0 0.0
        %1926 = vmatprep.subr.mxu0 0.0
        %1927 = vmatpush1.msra.mxu0 0.0
        %1928 = vmatprep.subr.mxu0 0.0
        %1929 = vmatpush1.msra.mxu0 0.0
        %1930 = vmatprep.subr.mxu0 0.0
        %1931 = vmatpush1.msra.mxu0 0.0
        %1932 = vmatprep.subr.mxu0 0.0
        %1933 = vmatpush1.msra.mxu0 0.0
        %1934 = vmatprep.subr.mxu0 0.0
        %1935 = vmatpush1.msra.mxu0 0.0
        %1936 = vmatprep.subr.mxu0 0.0
        %1937 = vmatpush1.msra.mxu0 0.0
        %1938 = vmatprep.subr.mxu0 0.0
        %1939 = vmatpush1.msra.mxu0 0.0
        %1940 = vmatprep.subr.mxu0 0.0
        %1941 = vmatpush1.msra.mxu0 0.0
        %1942 = vmatprep.subr.mxu0 0.0
        %1943 = vmatpush1.msra.mxu0 0.0
        %1944 = vmatprep.subr.mxu0 0.0
        %1945 = vmatpush1.msra.mxu0 0.0
        %1946 = vmatprep.subr.mxu0 0.0
        %1947 = vmatpush1.msra.mxu0 0.0
        %1948 = vmatprep.subr.mxu0 0.0
        %1949 = vmatpush1.msra.mxu0 0.0
        %1950 = vmatprep.subr.mxu0 0.0
        %1951 = vmatpush1.msra.mxu0 0.0
        %1952 = vmatprep.subr.mxu0 0.0
        %1953 = vmatpush1.msra.mxu0 0.0
        %1954 = vmatprep.subr.mxu0 0.0
        %1955 = vmatpush1.msra.mxu0 0.0
        %1956 = vmatprep.mubr.f32.mxu0 0.0
        %1957 = vmatmul.mubr.f32.gmra.mrb[0].mxu0 %v1797
        %v1958 = vpop.f32.mrb[0].mxu0
        %v1959 = vadd.f32 0.0, %v1958
        %v1960 = vpop.f32.mrb[0].mxu0
        %1961 = vmatprep.mubr.f32.mxu0 0.0
        %1962 = vmatmul.mubr.f32.gmra.mrb[0].mxu0 %v1800
        %v1963 = vpop.f32.mrb[0].mxu0
        %v1964 = vadd.f32 0.0, %v1963
        %v1965 = vpop.f32.mrb[0].mxu0
        %1966 = vmatprep.mubr.f32.mxu0 0.0
        %1967 = vmatmul.mubr.f32.gmra.mrb[0].mxu0 %v1803
        %v1968 = vpop.f32.mrb[0].mxu0
        %v1969 = vadd.f32 0.0, %v1968
        %v1970 = vpop.f32.mrb[0].mxu0
        %1971 = vmatprep.mubr.f32.mxu0 0.0
        %1972 = vmatmul.mubr.f32.gmra.mrb[0].mxu0 %v1806
        %v1973 = vpop.f32.mrb[0].mxu0
        %v1974 = vadd.f32 0.0, %v1973
        %v1975 = vpop.f32.mrb[0].mxu0
        %1976 = vmatprep.mubr.f32.mxu0 0.0
        %1977 = vmatmul.mubr.f32.gmra.mrb[0].mxu0 %v1809
        %v1978 = vpop.f32.mrb[0].mxu0
        %v1979 = vadd.f32 0.0, %v1978
        %v1980 = vpop.f32.mrb[0].mxu0
        %1981 = vmatprep.mubr.f32.mxu0 0.0
        %1982 = vmatmul.mubr.f32.gmra.mrb[0].mxu0 %v1812
        %v1983 = vpop.f32.mrb[0].mxu0
        %v1984 = vadd.f32 0.0, %v1983
        %v1985 = vpop.f32.mrb[0].mxu0
        %1986 = vmatprep.mubr.f32.mxu0 0.0
        %1987 = vmatmul.mubr.f32.gmra.mrb[0].mxu0 %v1815
        %v1988 = vpop.f32.mrb[0].mxu0
        %v1989 = vadd.f32 0.0, %v1988
        %v1990 = vpop.f32.mrb[0].mxu0
        %1991 = vmatprep.mubr.f32.mxu0 0.0
        %1992 = vmatmul.mubr.f32.gmra.mrb[0].mxu0 %v1818
        %v1993 = vpop.f32.mrb[0].mxu0
        %v1994 = vadd.f32 0.0, %v1993
        %v1995 = vpop.f32.mrb[0].mxu0
        %1996 = vmatprep.mubr.f32.mxu0 0.0
        %1997 = vmatmul.mubr.f32.gmra.mrb[0].mxu0 %v1821
        %v1998 = vpop.f32.mrb[0].mxu0
        %v1999 = vadd.f32 0.0, %v1998
        %v2000 = vpop.f32.mrb[0].mxu0
        %2001 = vmatprep.mubr.f32.mxu0 0.0
        %2002 = vmatmul.mubr.f32.gmra.mrb[0].mxu0 %v1824
        %v2003 = vpop.f32.mrb[0].mxu0
        %v2004 = vadd.f32 0.0, %v2003
        %v2005 = vpop.f32.mrb[0].mxu0
        %2006 = vmatprep.mubr.f32.mxu0 0.0
        %2007 = vmatmul.mubr.f32.gmra.mrb[0].mxu0 %v1827
        %v2008 = vpop.f32.mrb[0].mxu0
        %v2009 = vadd.f32 0.0, %v2008
        %v2010 = vpop.f32.mrb[0].mxu0
        %2011 = vmatprep.mubr.f32.mxu0 0.0
        %2012 = vmatmul.mubr.f32.gmra.mrb[0].mxu0 %v1830
        %v2013 = vpop.f32.mrb[0].mxu0
        %v2014 = vadd.f32 0.0, %v2013
        %v2015 = vpop.f32.mrb[0].mxu0
        %2016 = vmatprep.mubr.f32.mxu0 0.0
        %2017 = vmatmul.mubr.f32.gmra.mrb[0].mxu0 %v1833
        %v2018 = vpop.f32.mrb[0].mxu0
        %v2019 = vadd.f32 0.0, %v2018
        %v2020 = vpop.f32.mrb[0].mxu0
        %2021 = vmatprep.mubr.f32.mxu0 0.0
        %2022 = vmatmul.mubr.f32.gmra.mrb[0].mxu0 %v1836
        %v2023 = vpop.f32.mrb[0].mxu0
        %v2024 = vadd.f32 0.0, %v2023
        %v2025 = vpop.f32.mrb[0].mxu0
        %2026 = vmatprep.mubr.f32.mxu0 0.0
        %2027 = vmatmul.mubr.f32.gmra.mrb[0].mxu0 %v1839
        %v2028 = vpop.f32.mrb[0].mxu0
        %v2029 = vadd.f32 0.0, %v2028
        %v2030 = vpop.f32.mrb[0].mxu0
        %2031 = vmatprep.mubr.f32.mxu0 0.0
        %2032 = vmatmul.mubr.f32.gmra.mrb[0].mxu0 %v1842
        %v2033 = vpop.f32.mrb[0].mxu0
        %v2034 = vadd.f32 0.0, %v2033
        %v2035 = vpop.f32.mrb[0].mxu0
        %2036 = vmatprep.mubr.f32.mxu0 0.0
        %2037 = vmatmul.mubr.f32.gmra.mrb[0].mxu0 %v1845
        %v2038 = vpop.f32.mrb[0].mxu0
        %v2039 = vadd.f32 0.0, %v2038
        %v2040 = vpop.f32.mrb[0].mxu0
        %2041 = vmatprep.mubr.f32.mxu0 0.0
        %2042 = vmatmul.mubr.f32.gmra.mrb[0].mxu0 %v1848
        %v2043 = vpop.f32.mrb[0].mxu0
        %v2044 = vadd.f32 0.0, %v2043
        %v2045 = vpop.f32.mrb[0].mxu0
        %2046 = vmatprep.mubr.f32.mxu0 0.0
        %2047 = vmatmul.mubr.f32.gmra.mrb[0].mxu0 %v1851
        %v2048 = vpop.f32.mrb[0].mxu0
        %v2049 = vadd.f32 0.0, %v2048
        %v2050 = vpop.f32.mrb[0].mxu0
        %2051 = vmatprep.mubr.f32.mxu0 0.0
        %2052 = vmatmul.mubr.f32.gmra.mrb[0].mxu0 %v1854
        %v2053 = vpop.f32.mrb[0].mxu0
        %v2054 = vadd.f32 0.0, %v2053
        %v2055 = vpop.f32.mrb[0].mxu0
        %2056 = vmatprep.mubr.f32.mxu0 0.0
        %2057 = vmatmul.mubr.f32.gmra.mrb[0].mxu0 %v1857
        %v2058 = vpop.f32.mrb[0].mxu0
        %v2059 = vadd.f32 0.0, %v2058
        %v2060 = vpop.f32.mrb[0].mxu0
        %2061 = vmatprep.mubr.f32.mxu0 0.0
        %2062 = vmatmul.mubr.f32.gmra.mrb[0].mxu0 %v1860
        %v2063 = vpop.f32.mrb[0].mxu0
        %v2064 = vadd.f32 0.0, %v2063
        %v2065 = vpop.f32.mrb[0].mxu0
        %2066 = vmatprep.mubr.f32.mxu0 0.0
        %2067 = vmatmul.mubr.f32.gmra.mrb[0].mxu0 %v1863
        %v2068 = vpop.f32.mrb[0].mxu0
        %v2069 = vadd.f32 0.0, %v2068
        %v2070 = vpop.f32.mrb[0].mxu0
        %2071 = vmatprep.mubr.f32.mxu0 0.0
        %2072 = vmatmul.mubr.f32.gmra.mrb[0].mxu0 %v1866
        %v2073 = vpop.f32.mrb[0].mxu0
        %v2074 = vadd.f32 0.0, %v2073
        %v2075 = vpop.f32.mrb[0].mxu0
        %2076 = vmatprep.mubr.f32.mxu0 0.0
        %2077 = vmatmul.mubr.f32.gmra.mrb[0].mxu0 %v1869
        %v2078 = vpop.f32.mrb[0].mxu0
        %v2079 = vadd.f32 0.0, %v2078
        %v2080 = vpop.f32.mrb[0].mxu0
        %2081 = vmatprep.mubr.f32.mxu0 0.0
        %2082 = vmatmul.mubr.f32.gmra.mrb[0].mxu0 %v1872
        %v2083 = vpop.f32.mrb[0].mxu0
        %v2084 = vadd.f32 0.0, %v2083
        %v2085 = vpop.f32.mrb[0].mxu0
        %2086 = vmatprep.mubr.f32.mxu0 0.0
        %2087 = vmatmul.mubr.f32.gmra.mrb[0].mxu0 %v1875
        %v2088 = vpop.f32.mrb[0].mxu0
        %v2089 = vadd.f32 0.0, %v2088
        %v2090 = vpop.f32.mrb[0].mxu0
        %2091 = vmatprep.mubr.f32.mxu0 0.0
        %2092 = vmatmul.mubr.f32.gmra.mrb[0].mxu0 %v1878
        %v2093 = vpop.f32.mrb[0].mxu0
        %v2094 = vadd.f32 0.0, %v2093
        %v2095 = vpop.f32.mrb[0].mxu0
        %2096 = vmatprep.mubr.f32.mxu0 0.0
        %2097 = vmatmul.mubr.f32.gmra.mrb[0].mxu0 %v1881
        %v2098 = vpop.f32.mrb[0].mxu0
        %v2099 = vadd.f32 0.0, %v2098
        %v2100 = vpop.f32.mrb[0].mxu0
        %2101 = vmatprep.mubr.f32.mxu0 0.0
        %2102 = vmatmul.mubr.f32.gmra.mrb[0].mxu0 %v1884
        %v2103 = vpop.f32.mrb[0].mxu0
        %v2104 = vadd.f32 0.0, %v2103
        %v2105 = vpop.f32.mrb[0].mxu0
        %2106 = vmatprep.mubr.f32.mxu0 0.0
        %2107 = vmatmul.mubr.f32.gmra.mrb[0].mxu0 %v1887
        %v2108 = vpop.f32.mrb[0].mxu0
        %v2109 = vadd.f32 0.0, %v2108
        %v2110 = vpop.f32.mrb[0].mxu0
        %2111 = vmatprep.mubr.f32.mxu0 0.0
        %2112 = vmatmul.mubr.f32.gmra.mrb[0].mxu0 %v1890
        %v2113 = vpop.f32.mrb[0].mxu0
        %v2114 = vadd.f32 0.0, %v2113
        %v2115 = vpop.f32.mrb[0].mxu0
        %2116 = vdwg.mxu0
        %v2117 = vadd.f32 %v1730, %v1959
        %v2118 = vadd.f32 %v1731, %v1964
        %v2119 = vadd.f32 %v1732, %v1969
        %v2120 = vadd.f32 %v1733, %v1974
        %v2121 = vadd.f32 %v1734, %v1979
        %v2122 = vadd.f32 %v1735, %v1984
        %v2123 = vadd.f32 %v1736, %v1989
        %v2124 = vadd.f32 %v1737, %v1994
        %v2125 = vadd.f32 %v1738, %v1999
        %v2126 = vadd.f32 %v1739, %v2004
        %v2127 = vadd.f32 %v1740, %v2009
        %v2128 = vadd.f32 %v1741, %v2014
        %v2129 = vadd.f32 %v1742, %v2019
        %v2130 = vadd.f32 %v1743, %v2024
        %v2131 = vadd.f32 %v1744, %v2029
        %v2132 = vadd.f32 %v1745, %v2034
        %v2133 = vadd.f32 %v1746, %v2039
        %v2134 = vadd.f32 %v1747, %v2044
        %v2135 = vadd.f32 %v1748, %v2049
        %v2136 = vadd.f32 %v1749, %v2054
        %v2137 = vadd.f32 %v1750, %v2059
        %v2138 = vadd.f32 %v1751, %v2064
        %v2139 = vadd.f32 %v1752, %v2069
        %v2140 = vadd.f32 %v1753, %v2074
        %v2141 = vadd.f32 %v1754, %v2079
        %v2142 = vadd.f32 %v1755, %v2084
        %v2143 = vadd.f32 %v1756, %v2089
        %v2144 = vadd.f32 %v1757, %v2094
        %v2145 = vadd.f32 %v1758, %v2099
        %v2146 = vadd.f32 %v1759, %v2104
        %v2147 = vadd.f32 %v1760, %v2109
        %v2148 = vadd.f32 %v1761, %v2114
        %v2149 = vld [vmem:[%s1374 + $0x2] sm:$0xff]
        %v2150 = vld [vmem:[%s1374 + $0xa] sm:$0xff]
        %v2151 = vld [vmem:[%s1374 + $0x1a] sm:$0xff]
        %v2152 = vld [vmem:[%s1374 + $0x22] sm:$0xff]
        %v2153 = vld [vmem:[%s1374 + $0x32] sm:$0xff]
        %v2154 = vld [vmem:[%s1374 + $0x3a] sm:$0xff]
        %v2155 = vld [vmem:[%s1374 + $0x4a] sm:$0xff]
        %v2156 = vld [vmem:[%s1374 + $0x52] sm:$0xff]
        %v2157 = vld [vmem:[%s1374 + $0x62] sm:$0xff]
        %v2158 = vld [vmem:[%s1374 + $0x6a] sm:$0xff]
        %v2159 = vld [vmem:[%s1374 + $0x7a] sm:$0xff]
        %v2160 = vld [vmem:[%s1374 + $0x82] sm:$0xff]
        %v2161 = vld [vmem:[%s1374 + $0x92] sm:$0xff]
        %v2162 = vld [vmem:[%s1374 + $0x9a] sm:$0xff]
        %v2163 = vld [vmem:[%s1374 + $0xaa] sm:$0xff]
        %v2164 = vld [vmem:[%s1374 + $0xb2] sm:$0xff]
        %v2165 = vld [vmem:[%s1374 + $0xc2] sm:$0xff]
        %v2166 = vld [vmem:[%s1374 + $0xca] sm:$0xff]
        %v2167 = vld [vmem:[%s1374 + $0xda] sm:$0xff]
        %v2168 = vld [vmem:[%s1374 + $0xe2] sm:$0xff]
        %v2169 = vld [vmem:[%s1374 + $0xf2] sm:$0xff]
        %v2170 = vld [vmem:[%s1374 + $0xfa] sm:$0xff]
        %v2171 = vld [vmem:[%s1374 + $0x10a] sm:$0xff]
        %v2172 = vld [vmem:[%s1374 + $0x112] sm:$0xff]
        %v2173 = vld [vmem:[%s1374 + $0x122] sm:$0xff]
        %v2174 = vld [vmem:[%s1374 + $0x12a] sm:$0xff]
        %v2175 = vld [vmem:[%s1374 + $0x13a] sm:$0xff]
        %v2176 = vld [vmem:[%s1374 + $0x142] sm:$0xff]
        %v2177 = vld [vmem:[%s1374 + $0x152] sm:$0xff]
        %v2178 = vld [vmem:[%s1374 + $0x15a] sm:$0xff]
        %v2179 = vld [vmem:[%s1374 + $0x16a] sm:$0xff]
        %v2180 = vld [vmem:[%s1374 + $0x172] sm:$0xff]
        %s2181 = scalar_lea.vmem %s1, 40
        %v2182 = vld [vmem:[%s2181] sm:$0xff]
        %v2184 = vsel %vm344, %v2149, 0
        %v2187 = vsel %vm344, %v2150, 0
        %v2190 = vsel %vm344, %v2151, 0
        %v2193 = vsel %vm344, %v2152, 0
        %v2196 = vsel %vm344, %v2153, 0
        %v2199 = vsel %vm344, %v2154, 0
        %v2202 = vsel %vm344, %v2155, 0
        %v2205 = vsel %vm344, %v2156, 0
        %v2208 = vsel %vm344, %v2157, 0
        %v2211 = vsel %vm344, %v2158, 0
        %v2214 = vsel %vm344, %v2159, 0
        %v2217 = vsel %vm344, %v2160, 0
        %v2220 = vsel %vm344, %v2161, 0
        %v2223 = vsel %vm344, %v2162, 0
        %v2226 = vsel %vm344, %v2163, 0
        %v2229 = vsel %vm344, %v2164, 0
        %v2232 = vsel %vm344, %v2165, 0
        %v2235 = vsel %vm344, %v2166, 0
        %v2238 = vsel %vm344, %v2167, 0
        %v2241 = vsel %vm344, %v2168, 0
        %v2244 = vsel %vm344, %v2169, 0
        %v2247 = vsel %vm344, %v2170, 0
        %v2250 = vsel %vm344, %v2171, 0
        %v2253 = vsel %vm344, %v2172, 0
        %v2256 = vsel %vm344, %v2173, 0
        %v2259 = vsel %vm344, %v2174, 0
        %v2262 = vsel %vm344, %v2175, 0
        %v2265 = vsel %vm344, %v2176, 0
        %v2268 = vsel %vm344, %v2177, 0
        %v2271 = vsel %vm344, %v2178, 0
        %v2274 = vsel %vm344, %v2179, 0
        %v2277 = vsel %vm344, %v2180, 0
        %2279 = vmatprep.subr.mxu0 0.0
        %2280 = vmatpush1.msra.mxu0 %v2182
        %2281 = vmatprep.subr.mxu0 0.0
        %2282 = vmatpush1.msra.mxu0 0.0
        %2283 = vmatprep.subr.mxu0 0.0
        %2284 = vmatpush1.msra.mxu0 0.0
        %2285 = vmatprep.subr.mxu0 0.0
        %2286 = vmatpush1.msra.mxu0 0.0
        %2287 = vmatprep.subr.mxu0 0.0
        %2288 = vmatpush1.msra.mxu0 0.0
        %2289 = vmatprep.subr.mxu0 0.0
        %2290 = vmatpush1.msra.mxu0 0.0
        %2291 = vmatprep.subr.mxu0 0.0
        %2292 = vmatpush1.msra.mxu0 0.0
        %2293 = vmatprep.subr.mxu0 0.0
        %2294 = vmatpush1.msra.mxu0 0.0
        %2295 = vmatprep.subr.mxu0 0.0
        %2296 = vmatpush1.msra.mxu0 0.0
        %2297 = vmatprep.subr.mxu0 0.0
        %2298 = vmatpush1.msra.mxu0 0.0
        %2299 = vmatprep.subr.mxu0 0.0
        %2300 = vmatpush1.msra.mxu0 0.0
        %2301 = vmatprep.subr.mxu0 0.0
        %2302 = vmatpush1.msra.mxu0 0.0
        %2303 = vmatprep.subr.mxu0 0.0
        %2304 = vmatpush1.msra.mxu0 0.0
        %2305 = vmatprep.subr.mxu0 0.0
        %2306 = vmatpush1.msra.mxu0 0.0
        %2307 = vmatprep.subr.mxu0 0.0
        %2308 = vmatpush1.msra.mxu0 0.0
        %2309 = vmatprep.subr.mxu0 0.0
        %2310 = vmatpush1.msra.mxu0 0.0
        %2311 = vmatprep.subr.mxu0 0.0
        %2312 = vmatpush1.msra.mxu0 0.0
        %2313 = vmatprep.subr.mxu0 0.0
        %2314 = vmatpush1.msra.mxu0 0.0
        %2315 = vmatprep.subr.mxu0 0.0
        %2316 = vmatpush1.msra.mxu0 0.0
        %2317 = vmatprep.subr.mxu0 0.0
        %2318 = vmatpush1.msra.mxu0 0.0
        %2319 = vmatprep.subr.mxu0 0.0
        %2320 = vmatpush1.msra.mxu0 0.0
        %2321 = vmatprep.subr.mxu0 0.0
        %2322 = vmatpush1.msra.mxu0 0.0
        %2323 = vmatprep.subr.mxu0 0.0
        %2324 = vmatpush1.msra.mxu0 0.0
        %2325 = vmatprep.subr.mxu0 0.0
        %2326 = vmatpush1.msra.mxu0 0.0
        %2327 = vmatprep.subr.mxu0 0.0
        %2328 = vmatpush1.msra.mxu0 0.0
        %2329 = vmatprep.subr.mxu0 0.0
        %2330 = vmatpush1.msra.mxu0 0.0
        %2331 = vmatprep.subr.mxu0 0.0
        %2332 = vmatpush1.msra.mxu0 0.0
        %2333 = vmatprep.subr.mxu0 0.0
        %2334 = vmatpush1.msra.mxu0 0.0
        %2335 = vmatprep.subr.mxu0 0.0
        %2336 = vmatpush1.msra.mxu0 0.0
        %2337 = vmatprep.subr.mxu0 0.0
        %2338 = vmatpush1.msra.mxu0 0.0
        %2339 = vmatprep.subr.mxu0 0.0
        %2340 = vmatpush1.msra.mxu0 0.0
        %2341 = vmatprep.subr.mxu0 0.0
        %2342 = vmatpush1.msra.mxu0 0.0
        %2343 = vmatprep.mubr.f32.mxu0 0.0
        %2344 = vmatmul.mubr.f32.gmra.mrb[0].mxu0 %v2184
        %v2345 = vpop.f32.mrb[0].mxu0
        %v2346 = vadd.f32 0.0, %v2345
        %v2347 = vpop.f32.mrb[0].mxu0
        %2348 = vmatprep.mubr.f32.mxu0 0.0
        %2349 = vmatmul.mubr.f32.gmra.mrb[0].mxu0 %v2187
        %v2350 = vpop.f32.mrb[0].mxu0
        %v2351 = vadd.f32 0.0, %v2350
        %v2352 = vpop.f32.mrb[0].mxu0
        %2353 = vmatprep.mubr.f32.mxu0 0.0
        %2354 = vmatmul.mubr.f32.gmra.mrb[0].mxu0 %v2190
        %v2355 = vpop.f32.mrb[0].mxu0
        %v2356 = vadd.f32 0.0, %v2355
        %v2357 = vpop.f32.mrb[0].mxu0
        %2358 = vmatprep.mubr.f32.mxu0 0.0
        %2359 = vmatmul.mubr.f32.gmra.mrb[0].mxu0 %v2193
        %v2360 = vpop.f32.mrb[0].mxu0
        %v2361 = vadd.f32 0.0, %v2360
        %v2362 = vpop.f32.mrb[0].mxu0
        %2363 = vmatprep.mubr.f32.mxu0 0.0
        %2364 = vmatmul.mubr.f32.gmra.mrb[0].mxu0 %v2196
        %v2365 = vpop.f32.mrb[0].mxu0
        %v2366 = vadd.f32 0.0, %v2365
        %v2367 = vpop.f32.mrb[0].mxu0
        %2368 = vmatprep.mubr.f32.mxu0 0.0
        %2369 = vmatmul.mubr.f32.gmra.mrb[0].mxu0 %v2199
        %v2370 = vpop.f32.mrb[0].mxu0
        %v2371 = vadd.f32 0.0, %v2370
        %v2372 = vpop.f32.mrb[0].mxu0
        %2373 = vmatprep.mubr.f32.mxu0 0.0
        %2374 = vmatmul.mubr.f32.gmra.mrb[0].mxu0 %v2202
        %v2375 = vpop.f32.mrb[0].mxu0
        %v2376 = vadd.f32 0.0, %v2375
        %v2377 = vpop.f32.mrb[0].mxu0
        %2378 = vmatprep.mubr.f32.mxu0 0.0
        %2379 = vmatmul.mubr.f32.gmra.mrb[0].mxu0 %v2205
        %v2380 = vpop.f32.mrb[0].mxu0
        %v2381 = vadd.f32 0.0, %v2380
        %v2382 = vpop.f32.mrb[0].mxu0
        %2383 = vmatprep.mubr.f32.mxu0 0.0
        %2384 = vmatmul.mubr.f32.gmra.mrb[0].mxu0 %v2208
        %v2385 = vpop.f32.mrb[0].mxu0
        %v2386 = vadd.f32 0.0, %v2385
        %v2387 = vpop.f32.mrb[0].mxu0
        %2388 = vmatprep.mubr.f32.mxu0 0.0
        %2389 = vmatmul.mubr.f32.gmra.mrb[0].mxu0 %v2211
        %v2390 = vpop.f32.mrb[0].mxu0
        %v2391 = vadd.f32 0.0, %v2390
        %v2392 = vpop.f32.mrb[0].mxu0
        %2393 = vmatprep.mubr.f32.mxu0 0.0
        %2394 = vmatmul.mubr.f32.gmra.mrb[0].mxu0 %v2214
        %v2395 = vpop.f32.mrb[0].mxu0
        %v2396 = vadd.f32 0.0, %v2395
        %v2397 = vpop.f32.mrb[0].mxu0
        %2398 = vmatprep.mubr.f32.mxu0 0.0
        %2399 = vmatmul.mubr.f32.gmra.mrb[0].mxu0 %v2217
        %v2400 = vpop.f32.mrb[0].mxu0
        %v2401 = vadd.f32 0.0, %v2400
        %v2402 = vpop.f32.mrb[0].mxu0
        %2403 = vmatprep.mubr.f32.mxu0 0.0
        %2404 = vmatmul.mubr.f32.gmra.mrb[0].mxu0 %v2220
        %v2405 = vpop.f32.mrb[0].mxu0
        %v2406 = vadd.f32 0.0, %v2405
        %v2407 = vpop.f32.mrb[0].mxu0
        %2408 = vmatprep.mubr.f32.mxu0 0.0
        %2409 = vmatmul.mubr.f32.gmra.mrb[0].mxu0 %v2223
        %v2410 = vpop.f32.mrb[0].mxu0
        %v2411 = vadd.f32 0.0, %v2410
        %v2412 = vpop.f32.mrb[0].mxu0
        %2413 = vmatprep.mubr.f32.mxu0 0.0
        %2414 = vmatmul.mubr.f32.gmra.mrb[0].mxu0 %v2226
        %v2415 = vpop.f32.mrb[0].mxu0
        %v2416 = vadd.f32 0.0, %v2415
        %v2417 = vpop.f32.mrb[0].mxu0
        %2418 = vmatprep.mubr.f32.mxu0 0.0
        %2419 = vmatmul.mubr.f32.gmra.mrb[0].mxu0 %v2229
        %v2420 = vpop.f32.mrb[0].mxu0
        %v2421 = vadd.f32 0.0, %v2420
        %v2422 = vpop.f32.mrb[0].mxu0
        %2423 = vmatprep.mubr.f32.mxu0 0.0
        %2424 = vmatmul.mubr.f32.gmra.mrb[0].mxu0 %v2232
        %v2425 = vpop.f32.mrb[0].mxu0
        %v2426 = vadd.f32 0.0, %v2425
        %v2427 = vpop.f32.mrb[0].mxu0
        %2428 = vmatprep.mubr.f32.mxu0 0.0
        %2429 = vmatmul.mubr.f32.gmra.mrb[0].mxu0 %v2235
        %v2430 = vpop.f32.mrb[0].mxu0
        %v2431 = vadd.f32 0.0, %v2430
        %v2432 = vpop.f32.mrb[0].mxu0
        %2433 = vmatprep.mubr.f32.mxu0 0.0
        %2434 = vmatmul.mubr.f32.gmra.mrb[0].mxu0 %v2238
        %v2435 = vpop.f32.mrb[0].mxu0
        %v2436 = vadd.f32 0.0, %v2435
        %v2437 = vpop.f32.mrb[0].mxu0
        %2438 = vmatprep.mubr.f32.mxu0 0.0
        %2439 = vmatmul.mubr.f32.gmra.mrb[0].mxu0 %v2241
        %v2440 = vpop.f32.mrb[0].mxu0
        %v2441 = vadd.f32 0.0, %v2440
        %v2442 = vpop.f32.mrb[0].mxu0
        %2443 = vmatprep.mubr.f32.mxu0 0.0
        %2444 = vmatmul.mubr.f32.gmra.mrb[0].mxu0 %v2244
        %v2445 = vpop.f32.mrb[0].mxu0
        %v2446 = vadd.f32 0.0, %v2445
        %v2447 = vpop.f32.mrb[0].mxu0
        %2448 = vmatprep.mubr.f32.mxu0 0.0
        %2449 = vmatmul.mubr.f32.gmra.mrb[0].mxu0 %v2247
        %v2450 = vpop.f32.mrb[0].mxu0
        %v2451 = vadd.f32 0.0, %v2450
        %v2452 = vpop.f32.mrb[0].mxu0
        %2453 = vmatprep.mubr.f32.mxu0 0.0
        %2454 = vmatmul.mubr.f32.gmra.mrb[0].mxu0 %v2250
        %v2455 = vpop.f32.mrb[0].mxu0
        %v2456 = vadd.f32 0.0, %v2455
        %v2457 = vpop.f32.mrb[0].mxu0
        %2458 = vmatprep.mubr.f32.mxu0 0.0
        %2459 = vmatmul.mubr.f32.gmra.mrb[0].mxu0 %v2253
        %v2460 = vpop.f32.mrb[0].mxu0
        %v2461 = vadd.f32 0.0, %v2460
        %v2462 = vpop.f32.mrb[0].mxu0
        %2463 = vmatprep.mubr.f32.mxu0 0.0
        %2464 = vmatmul.mubr.f32.gmra.mrb[0].mxu0 %v2256
        %v2465 = vpop.f32.mrb[0].mxu0
        %v2466 = vadd.f32 0.0, %v2465
        %v2467 = vpop.f32.mrb[0].mxu0
        %2468 = vmatprep.mubr.f32.mxu0 0.0
        %2469 = vmatmul.mubr.f32.gmra.mrb[0].mxu0 %v2259
        %v2470 = vpop.f32.mrb[0].mxu0
        %v2471 = vadd.f32 0.0, %v2470
        %v2472 = vpop.f32.mrb[0].mxu0
        %2473 = vmatprep.mubr.f32.mxu0 0.0
        %2474 = vmatmul.mubr.f32.gmra.mrb[0].mxu0 %v2262
        %v2475 = vpop.f32.mrb[0].mxu0
        %v2476 = vadd.f32 0.0, %v2475
        %v2477 = vpop.f32.mrb[0].mxu0
        %2478 = vmatprep.mubr.f32.mxu0 0.0
        %2479 = vmatmul.mubr.f32.gmra.mrb[0].mxu0 %v2265
        %v2480 = vpop.f32.mrb[0].mxu0
        %v2481 = vadd.f32 0.0, %v2480
        %v2482 = vpop.f32.mrb[0].mxu0
        %2483 = vmatprep.mubr.f32.mxu0 0.0
        %2484 = vmatmul.mubr.f32.gmra.mrb[0].mxu0 %v2268
        %v2485 = vpop.f32.mrb[0].mxu0
        %v2486 = vadd.f32 0.0, %v2485
        %v2487 = vpop.f32.mrb[0].mxu0
        %2488 = vmatprep.mubr.f32.mxu0 0.0
        %2489 = vmatmul.mubr.f32.gmra.mrb[0].mxu0 %v2271
        %v2490 = vpop.f32.mrb[0].mxu0
        %v2491 = vadd.f32 0.0, %v2490
        %v2492 = vpop.f32.mrb[0].mxu0
        %2493 = vmatprep.mubr.f32.mxu0 0.0
        %2494 = vmatmul.mubr.f32.gmra.mrb[0].mxu0 %v2274
        %v2495 = vpop.f32.mrb[0].mxu0
        %v2496 = vadd.f32 0.0, %v2495
        %v2497 = vpop.f32.mrb[0].mxu0
        %2498 = vmatprep.mubr.f32.mxu0 0.0
        %2499 = vmatmul.mubr.f32.gmra.mrb[0].mxu0 %v2277
        %v2500 = vpop.f32.mrb[0].mxu0
        %v2501 = vadd.f32 0.0, %v2500
        %v2502 = vpop.f32.mrb[0].mxu0
        %2503 = vdwg.mxu0
        %v2504 = vadd.f32 %v2117, %v2346
        %v2505 = vadd.f32 %v2118, %v2351
        %v2506 = vadd.f32 %v2119, %v2356
        %v2507 = vadd.f32 %v2120, %v2361
        %v2508 = vadd.f32 %v2121, %v2366
        %v2509 = vadd.f32 %v2122, %v2371
        %v2510 = vadd.f32 %v2123, %v2376
        %v2511 = vadd.f32 %v2124, %v2381
        %v2512 = vadd.f32 %v2125, %v2386
        %v2513 = vadd.f32 %v2126, %v2391
        %v2514 = vadd.f32 %v2127, %v2396
        %v2515 = vadd.f32 %v2128, %v2401
        %v2516 = vadd.f32 %v2129, %v2406
        %v2517 = vadd.f32 %v2130, %v2411
        %v2518 = vadd.f32 %v2131, %v2416
        %v2519 = vadd.f32 %v2132, %v2421
        %v2520 = vadd.f32 %v2133, %v2426
        %v2521 = vadd.f32 %v2134, %v2431
        %v2522 = vadd.f32 %v2135, %v2436
        %v2523 = vadd.f32 %v2136, %v2441
        %v2524 = vadd.f32 %v2137, %v2446
        %v2525 = vadd.f32 %v2138, %v2451
        %v2526 = vadd.f32 %v2139, %v2456
        %v2527 = vadd.f32 %v2140, %v2461
        %v2528 = vadd.f32 %v2141, %v2466
        %v2529 = vadd.f32 %v2142, %v2471
        %v2530 = vadd.f32 %v2143, %v2476
        %v2531 = vadd.f32 %v2144, %v2481
        %v2532 = vadd.f32 %v2145, %v2486
        %v2533 = vadd.f32 %v2146, %v2491
        %v2534 = vadd.f32 %v2147, %v2496
        %v2535 = vadd.f32 %v2148, %v2501
        %s2536 = scalar_lea.vmem %s275, 48
        %v2537 = vld [vmem:[%s2536] sm:$0xff]
        %v2538 = vld [vmem:[%s2536 + $0x8] sm:$0xff]
        %v2539 = vld [vmem:[%s2536 + $0x18] sm:$0xff]
        %v2540 = vld [vmem:[%s2536 + $0x20] sm:$0xff]
        %v2541 = vld [vmem:[%s2536 + $0x30] sm:$0xff]
        %v2542 = vld [vmem:[%s2536 + $0x38] sm:$0xff]
        %v2543 = vld [vmem:[%s2536 + $0x48] sm:$0xff]
        %v2544 = vld [vmem:[%s2536 + $0x50] sm:$0xff]
        %v2545 = vld [vmem:[%s2536 + $0x60] sm:$0xff]
        %v2546 = vld [vmem:[%s2536 + $0x68] sm:$0xff]
        %v2547 = vld [vmem:[%s2536 + $0x78] sm:$0xff]
        %v2548 = vld [vmem:[%s2536 + $0x80] sm:$0xff]
        %v2549 = vld [vmem:[%s2536 + $0x90] sm:$0xff]
        %v2550 = vld [vmem:[%s2536 + $0x98] sm:$0xff]
        %v2551 = vld [vmem:[%s2536 + $0xa8] sm:$0xff]
        %v2552 = vld [vmem:[%s2536 + $0xb0] sm:$0xff]
        %v2553 = vld [vmem:[%s2536 + $0xc0] sm:$0xff]
        %v2554 = vld [vmem:[%s2536 + $0xc8] sm:$0xff]
        %v2555 = vld [vmem:[%s2536 + $0xd8] sm:$0xff]
        %v2556 = vld [vmem:[%s2536 + $0xe0] sm:$0xff]
        %v2557 = vld [vmem:[%s2536 + $0xf0] sm:$0xff]
        %v2558 = vld [vmem:[%s2536 + $0xf8] sm:$0xff]
        %v2559 = vld [vmem:[%s2536 + $0x108] sm:$0xff]
        %v2560 = vld [vmem:[%s2536 + $0x110] sm:$0xff]
        %v2561 = vld [vmem:[%s2536 + $0x120] sm:$0xff]
        %v2562 = vld [vmem:[%s2536 + $0x128] sm:$0xff]
        %v2563 = vld [vmem:[%s2536 + $0x138] sm:$0xff]
        %v2564 = vld [vmem:[%s2536 + $0x140] sm:$0xff]
        %v2565 = vld [vmem:[%s2536 + $0x150] sm:$0xff]
        %v2566 = vld [vmem:[%s2536 + $0x158] sm:$0xff]
        %v2567 = vld [vmem:[%s2536 + $0x168] sm:$0xff]
        %v2568 = vld [vmem:[%s2536 + $0x170] sm:$0xff]
        %s2569 = scalar_lea.vmem %s1, 48
        %v2570 = vld [vmem:[%s2569] sm:$0xff]
        %v2572 = vsel %vm344, %v2537, 0
        %v2575 = vsel %vm344, %v2538, 0
        %v2578 = vsel %vm344, %v2539, 0
        %v2581 = vsel %vm344, %v2540, 0
        %v2584 = vsel %vm344, %v2541, 0
        %v2587 = vsel %vm344, %v2542, 0
        %v2590 = vsel %vm344, %v2543, 0
        %v2593 = vsel %vm344, %v2544, 0
        %v2596 = vsel %vm344, %v2545, 0
        %v2599 = vsel %vm344, %v2546, 0
        %v2602 = vsel %vm344, %v2547, 0
        %v2605 = vsel %vm344, %v2548, 0
        %v2608 = vsel %vm344, %v2549, 0
        %v2611 = vsel %vm344, %v2550, 0
        %v2614 = vsel %vm344, %v2551, 0
        %v2617 = vsel %vm344, %v2552, 0
        %v2620 = vsel %vm344, %v2553, 0
        %v2623 = vsel %vm344, %v2554, 0
        %v2626 = vsel %vm344, %v2555, 0
        %v2629 = vsel %vm344, %v2556, 0
        %v2632 = vsel %vm344, %v2557, 0
        %v2635 = vsel %vm344, %v2558, 0
        %v2638 = vsel %vm344, %v2559, 0
        %v2641 = vsel %vm344, %v2560, 0
        %v2644 = vsel %vm344, %v2561, 0
        %v2647 = vsel %vm344, %v2562, 0
        %v2650 = vsel %vm344, %v2563, 0
        %v2653 = vsel %vm344, %v2564, 0
        %v2656 = vsel %vm344, %v2565, 0
        %v2659 = vsel %vm344, %v2566, 0
        %v2662 = vsel %vm344, %v2567, 0
        %v2665 = vsel %vm344, %v2568, 0
        %2667 = vmatprep.subr.mxu0 0.0
        %2668 = vmatpush1.msra.mxu0 %v2570
        %2669 = vmatprep.subr.mxu0 0.0
        %2670 = vmatpush1.msra.mxu0 0.0
        %2671 = vmatprep.subr.mxu0 0.0
        %2672 = vmatpush1.msra.mxu0 0.0
        %2673 = vmatprep.subr.mxu0 0.0
        %2674 = vmatpush1.msra.mxu0 0.0
        %2675 = vmatprep.subr.mxu0 0.0
        %2676 = vmatpush1.msra.mxu0 0.0
        %2677 = vmatprep.subr.mxu0 0.0
        %2678 = vmatpush1.msra.mxu0 0.0
        %2679 = vmatprep.subr.mxu0 0.0
        %2680 = vmatpush1.msra.mxu0 0.0
        %2681 = vmatprep.subr.mxu0 0.0
        %2682 = vmatpush1.msra.mxu0 0.0
        %2683 = vmatprep.subr.mxu0 0.0
        %2684 = vmatpush1.msra.mxu0 0.0
        %2685 = vmatprep.subr.mxu0 0.0
        %2686 = vmatpush1.msra.mxu0 0.0
        %2687 = vmatprep.subr.mxu0 0.0
        %2688 = vmatpush1.msra.mxu0 0.0
        %2689 = vmatprep.subr.mxu0 0.0
        %2690 = vmatpush1.msra.mxu0 0.0
        %2691 = vmatprep.subr.mxu0 0.0
        %2692 = vmatpush1.msra.mxu0 0.0
        %2693 = vmatprep.subr.mxu0 0.0
        %2694 = vmatpush1.msra.mxu0 0.0
        %2695 = vmatprep.subr.mxu0 0.0
        %2696 = vmatpush1.msra.mxu0 0.0
        %2697 = vmatprep.subr.mxu0 0.0
        %2698 = vmatpush1.msra.mxu0 0.0
        %2699 = vmatprep.subr.mxu0 0.0
        %2700 = vmatpush1.msra.mxu0 0.0
        %2701 = vmatprep.subr.mxu0 0.0
        %2702 = vmatpush1.msra.mxu0 0.0
        %2703 = vmatprep.subr.mxu0 0.0
        %2704 = vmatpush1.msra.mxu0 0.0
        %2705 = vmatprep.subr.mxu0 0.0
        %2706 = vmatpush1.msra.mxu0 0.0
        %2707 = vmatprep.subr.mxu0 0.0
        %2708 = vmatpush1.msra.mxu0 0.0
        %2709 = vmatprep.subr.mxu0 0.0
        %2710 = vmatpush1.msra.mxu0 0.0
        %2711 = vmatprep.subr.mxu0 0.0
        %2712 = vmatpush1.msra.mxu0 0.0
        %2713 = vmatprep.subr.mxu0 0.0
        %2714 = vmatpush1.msra.mxu0 0.0
        %2715 = vmatprep.subr.mxu0 0.0
        %2716 = vmatpush1.msra.mxu0 0.0
        %2717 = vmatprep.subr.mxu0 0.0
        %2718 = vmatpush1.msra.mxu0 0.0
        %2719 = vmatprep.subr.mxu0 0.0
        %2720 = vmatpush1.msra.mxu0 0.0
        %2721 = vmatprep.subr.mxu0 0.0
        %2722 = vmatpush1.msra.mxu0 0.0
        %2723 = vmatprep.subr.mxu0 0.0
        %2724 = vmatpush1.msra.mxu0 0.0
        %2725 = vmatprep.subr.mxu0 0.0
        %2726 = vmatpush1.msra.mxu0 0.0
        %2727 = vmatprep.subr.mxu0 0.0
        %2728 = vmatpush1.msra.mxu0 0.0
        %2729 = vmatprep.subr.mxu0 0.0
        %2730 = vmatpush1.msra.mxu0 0.0
        %2731 = vmatprep.mubr.f32.mxu0 0.0
        %2732 = vmatmul.mubr.f32.gmra.mrb[0].mxu0 %v2572
        %v2733 = vpop.f32.mrb[0].mxu0
        %v2734 = vadd.f32 0.0, %v2733
        %v2735 = vpop.f32.mrb[0].mxu0
        %2736 = vmatprep.mubr.f32.mxu0 0.0
        %2737 = vmatmul.mubr.f32.gmra.mrb[0].mxu0 %v2575
        %v2738 = vpop.f32.mrb[0].mxu0
        %v2739 = vadd.f32 0.0, %v2738
        %v2740 = vpop.f32.mrb[0].mxu0
        %2741 = vmatprep.mubr.f32.mxu0 0.0
        %2742 = vmatmul.mubr.f32.gmra.mrb[0].mxu0 %v2578
        %v2743 = vpop.f32.mrb[0].mxu0
        %v2744 = vadd.f32 0.0, %v2743
        %v2745 = vpop.f32.mrb[0].mxu0
        %2746 = vmatprep.mubr.f32.mxu0 0.0
        %2747 = vmatmul.mubr.f32.gmra.mrb[0].mxu0 %v2581
        %v2748 = vpop.f32.mrb[0].mxu0
        %v2749 = vadd.f32 0.0, %v2748
        %v2750 = vpop.f32.mrb[0].mxu0
        %2751 = vmatprep.mubr.f32.mxu0 0.0
        %2752 = vmatmul.mubr.f32.gmra.mrb[0].mxu0 %v2584
        %v2753 = vpop.f32.mrb[0].mxu0
        %v2754 = vadd.f32 0.0, %v2753
        %v2755 = vpop.f32.mrb[0].mxu0
        %2756 = vmatprep.mubr.f32.mxu0 0.0
        %2757 = vmatmul.mubr.f32.gmra.mrb[0].mxu0 %v2587
        %v2758 = vpop.f32.mrb[0].mxu0
        %v2759 = vadd.f32 0.0, %v2758
        %v2760 = vpop.f32.mrb[0].mxu0
        %2761 = vmatprep.mubr.f32.mxu0 0.0
        %2762 = vmatmul.mubr.f32.gmra.mrb[0].mxu0 %v2590
        %v2763 = vpop.f32.mrb[0].mxu0
        %v2764 = vadd.f32 0.0, %v2763
        %v2765 = vpop.f32.mrb[0].mxu0
        %2766 = vmatprep.mubr.f32.mxu0 0.0
        %2767 = vmatmul.mubr.f32.gmra.mrb[0].mxu0 %v2593
        %v2768 = vpop.f32.mrb[0].mxu0
        %v2769 = vadd.f32 0.0, %v2768
        %v2770 = vpop.f32.mrb[0].mxu0
        %2771 = vmatprep.mubr.f32.mxu0 0.0
        %2772 = vmatmul.mubr.f32.gmra.mrb[0].mxu0 %v2596
        %v2773 = vpop.f32.mrb[0].mxu0
        %v2774 = vadd.f32 0.0, %v2773
        %v2775 = vpop.f32.mrb[0].mxu0
        %2776 = vmatprep.mubr.f32.mxu0 0.0
        %2777 = vmatmul.mubr.f32.gmra.mrb[0].mxu0 %v2599
        %v2778 = vpop.f32.mrb[0].mxu0
        %v2779 = vadd.f32 0.0, %v2778
        %v2780 = vpop.f32.mrb[0].mxu0
        %2781 = vmatprep.mubr.f32.mxu0 0.0
        %2782 = vmatmul.mubr.f32.gmra.mrb[0].mxu0 %v2602
        %v2783 = vpop.f32.mrb[0].mxu0
        %v2784 = vadd.f32 0.0, %v2783
        %v2785 = vpop.f32.mrb[0].mxu0
        %2786 = vmatprep.mubr.f32.mxu0 0.0
        %2787 = vmatmul.mubr.f32.gmra.mrb[0].mxu0 %v2605
        %v2788 = vpop.f32.mrb[0].mxu0
        %v2789 = vadd.f32 0.0, %v2788
        %v2790 = vpop.f32.mrb[0].mxu0
        %2791 = vmatprep.mubr.f32.mxu0 0.0
        %2792 = vmatmul.mubr.f32.gmra.mrb[0].mxu0 %v2608
        %v2793 = vpop.f32.mrb[0].mxu0
        %v2794 = vadd.f32 0.0, %v2793
        %v2795 = vpop.f32.mrb[0].mxu0
        %2796 = vmatprep.mubr.f32.mxu0 0.0
        %2797 = vmatmul.mubr.f32.gmra.mrb[0].mxu0 %v2611
        %v2798 = vpop.f32.mrb[0].mxu0
        %v2799 = vadd.f32 0.0, %v2798
        %v2800 = vpop.f32.mrb[0].mxu0
        %2801 = vmatprep.mubr.f32.mxu0 0.0
        %2802 = vmatmul.mubr.f32.gmra.mrb[0].mxu0 %v2614
        %v2803 = vpop.f32.mrb[0].mxu0
        %v2804 = vadd.f32 0.0, %v2803
        %v2805 = vpop.f32.mrb[0].mxu0
        %2806 = vmatprep.mubr.f32.mxu0 0.0
        %2807 = vmatmul.mubr.f32.gmra.mrb[0].mxu0 %v2617
        %v2808 = vpop.f32.mrb[0].mxu0
        %v2809 = vadd.f32 0.0, %v2808
        %v2810 = vpop.f32.mrb[0].mxu0
        %2811 = vmatprep.mubr.f32.mxu0 0.0
        %2812 = vmatmul.mubr.f32.gmra.mrb[0].mxu0 %v2620
        %v2813 = vpop.f32.mrb[0].mxu0
        %v2814 = vadd.f32 0.0, %v2813
        %v2815 = vpop.f32.mrb[0].mxu0
        %2816 = vmatprep.mubr.f32.mxu0 0.0
        %2817 = vmatmul.mubr.f32.gmra.mrb[0].mxu0 %v2623
        %v2818 = vpop.f32.mrb[0].mxu0
        %v2819 = vadd.f32 0.0, %v2818
        %v2820 = vpop.f32.mrb[0].mxu0
        %2821 = vmatprep.mubr.f32.mxu0 0.0
        %2822 = vmatmul.mubr.f32.gmra.mrb[0].mxu0 %v2626
        %v2823 = vpop.f32.mrb[0].mxu0
        %v2824 = vadd.f32 0.0, %v2823
        %v2825 = vpop.f32.mrb[0].mxu0
        %2826 = vmatprep.mubr.f32.mxu0 0.0
        %2827 = vmatmul.mubr.f32.gmra.mrb[0].mxu0 %v2629
        %v2828 = vpop.f32.mrb[0].mxu0
        %v2829 = vadd.f32 0.0, %v2828
        %v2830 = vpop.f32.mrb[0].mxu0
        %2831 = vmatprep.mubr.f32.mxu0 0.0
        %2832 = vmatmul.mubr.f32.gmra.mrb[0].mxu0 %v2632
        %v2833 = vpop.f32.mrb[0].mxu0
        %v2834 = vadd.f32 0.0, %v2833
        %v2835 = vpop.f32.mrb[0].mxu0
        %2836 = vmatprep.mubr.f32.mxu0 0.0
        %2837 = vmatmul.mubr.f32.gmra.mrb[0].mxu0 %v2635
        %v2838 = vpop.f32.mrb[0].mxu0
        %v2839 = vadd.f32 0.0, %v2838
        %v2840 = vpop.f32.mrb[0].mxu0
        %2841 = vmatprep.mubr.f32.mxu0 0.0
        %2842 = vmatmul.mubr.f32.gmra.mrb[0].mxu0 %v2638
        %v2843 = vpop.f32.mrb[0].mxu0
        %v2844 = vadd.f32 0.0, %v2843
        %v2845 = vpop.f32.mrb[0].mxu0
        %2846 = vmatprep.mubr.f32.mxu0 0.0
        %2847 = vmatmul.mubr.f32.gmra.mrb[0].mxu0 %v2641
        %v2848 = vpop.f32.mrb[0].mxu0
        %v2849 = vadd.f32 0.0, %v2848
        %v2850 = vpop.f32.mrb[0].mxu0
        %2851 = vmatprep.mubr.f32.mxu0 0.0
        %2852 = vmatmul.mubr.f32.gmra.mrb[0].mxu0 %v2644
        %v2853 = vpop.f32.mrb[0].mxu0
        %v2854 = vadd.f32 0.0, %v2853
        %v2855 = vpop.f32.mrb[0].mxu0
        %2856 = vmatprep.mubr.f32.mxu0 0.0
        %2857 = vmatmul.mubr.f32.gmra.mrb[0].mxu0 %v2647
        %v2858 = vpop.f32.mrb[0].mxu0
        %v2859 = vadd.f32 0.0, %v2858
        %v2860 = vpop.f32.mrb[0].mxu0
        %2861 = vmatprep.mubr.f32.mxu0 0.0
        %2862 = vmatmul.mubr.f32.gmra.mrb[0].mxu0 %v2650
        %v2863 = vpop.f32.mrb[0].mxu0
        %v2864 = vadd.f32 0.0, %v2863
        %v2865 = vpop.f32.mrb[0].mxu0
        %2866 = vmatprep.mubr.f32.mxu0 0.0
        %2867 = vmatmul.mubr.f32.gmra.mrb[0].mxu0 %v2653
        %v2868 = vpop.f32.mrb[0].mxu0
        %v2869 = vadd.f32 0.0, %v2868
        %v2870 = vpop.f32.mrb[0].mxu0
        %2871 = vmatprep.mubr.f32.mxu0 0.0
        %2872 = vmatmul.mubr.f32.gmra.mrb[0].mxu0 %v2656
        %v2873 = vpop.f32.mrb[0].mxu0
        %v2874 = vadd.f32 0.0, %v2873
        %v2875 = vpop.f32.mrb[0].mxu0
        %2876 = vmatprep.mubr.f32.mxu0 0.0
        %2877 = vmatmul.mubr.f32.gmra.mrb[0].mxu0 %v2659
        %v2878 = vpop.f32.mrb[0].mxu0
        %v2879 = vadd.f32 0.0, %v2878
        %v2880 = vpop.f32.mrb[0].mxu0
        %2881 = vmatprep.mubr.f32.mxu0 0.0
        %2882 = vmatmul.mubr.f32.gmra.mrb[0].mxu0 %v2662
        %v2883 = vpop.f32.mrb[0].mxu0
        %v2884 = vadd.f32 0.0, %v2883
        %v2885 = vpop.f32.mrb[0].mxu0
        %2886 = vmatprep.mubr.f32.mxu0 0.0
        %2887 = vmatmul.mubr.f32.gmra.mrb[0].mxu0 %v2665
        %v2888 = vpop.f32.mrb[0].mxu0
        %v2889 = vadd.f32 0.0, %v2888
        %v2890 = vpop.f32.mrb[0].mxu0
        %2891 = vdwg.mxu0
        %v2892 = vadd.f32 %v2504, %v2734
        %v2893 = vadd.f32 %v2505, %v2739
        %v2894 = vadd.f32 %v2506, %v2744
        %v2895 = vadd.f32 %v2507, %v2749
        %v2896 = vadd.f32 %v2508, %v2754
        %v2897 = vadd.f32 %v2509, %v2759
        %v2898 = vadd.f32 %v2510, %v2764
        %v2899 = vadd.f32 %v2511, %v2769
        %v2900 = vadd.f32 %v2512, %v2774
        %v2901 = vadd.f32 %v2513, %v2779
        %v2902 = vadd.f32 %v2514, %v2784
        %v2903 = vadd.f32 %v2515, %v2789
        %v2904 = vadd.f32 %v2516, %v2794
        %v2905 = vadd.f32 %v2517, %v2799
        %v2906 = vadd.f32 %v2518, %v2804
        %v2907 = vadd.f32 %v2519, %v2809
        %v2908 = vadd.f32 %v2520, %v2814
        %v2909 = vadd.f32 %v2521, %v2819
        %v2910 = vadd.f32 %v2522, %v2824
        %v2911 = vadd.f32 %v2523, %v2829
        %v2912 = vadd.f32 %v2524, %v2834
        %v2913 = vadd.f32 %v2525, %v2839
        %v2914 = vadd.f32 %v2526, %v2844
        %v2915 = vadd.f32 %v2527, %v2849
        %v2916 = vadd.f32 %v2528, %v2854
        %v2917 = vadd.f32 %v2529, %v2859
        %v2918 = vadd.f32 %v2530, %v2864
        %v2919 = vadd.f32 %v2531, %v2869
        %v2920 = vadd.f32 %v2532, %v2874
        %v2921 = vadd.f32 %v2533, %v2879
        %v2922 = vadd.f32 %v2534, %v2884
        %v2923 = vadd.f32 %v2535, %v2889
        %v2924 = vld [vmem:[%s2536 + $0x1] sm:$0xff]
        %v2925 = vld [vmem:[%s2536 + $0x9] sm:$0xff]
        %v2926 = vld [vmem:[%s2536 + $0x19] sm:$0xff]
        %v2927 = vld [vmem:[%s2536 + $0x21] sm:$0xff]
        %v2928 = vld [vmem:[%s2536 + $0x31] sm:$0xff]
        %v2929 = vld [vmem:[%s2536 + $0x39] sm:$0xff]
        %v2930 = vld [vmem:[%s2536 + $0x49] sm:$0xff]
        %v2931 = vld [vmem:[%s2536 + $0x51] sm:$0xff]
        %v2932 = vld [vmem:[%s2536 + $0x61] sm:$0xff]
        %v2933 = vld [vmem:[%s2536 + $0x69] sm:$0xff]
        %v2934 = vld [vmem:[%s2536 + $0x79] sm:$0xff]
        %v2935 = vld [vmem:[%s2536 + $0x81] sm:$0xff]
        %v2936 = vld [vmem:[%s2536 + $0x91] sm:$0xff]
        %v2937 = vld [vmem:[%s2536 + $0x99] sm:$0xff]
        %v2938 = vld [vmem:[%s2536 + $0xa9] sm:$0xff]
        %v2939 = vld [vmem:[%s2536 + $0xb1] sm:$0xff]
        %v2940 = vld [vmem:[%s2536 + $0xc1] sm:$0xff]
        %v2941 = vld [vmem:[%s2536 + $0xc9] sm:$0xff]
        %v2942 = vld [vmem:[%s2536 + $0xd9] sm:$0xff]
        %v2943 = vld [vmem:[%s2536 + $0xe1] sm:$0xff]
        %v2944 = vld [vmem:[%s2536 + $0xf1] sm:$0xff]
        %v2945 = vld [vmem:[%s2536 + $0xf9] sm:$0xff]
        %v2946 = vld [vmem:[%s2536 + $0x109] sm:$0xff]
        %v2947 = vld [vmem:[%s2536 + $0x111] sm:$0xff]
        %v2948 = vld [vmem:[%s2536 + $0x121] sm:$0xff]
        %v2949 = vld [vmem:[%s2536 + $0x129] sm:$0xff]
        %v2950 = vld [vmem:[%s2536 + $0x139] sm:$0xff]
        %v2951 = vld [vmem:[%s2536 + $0x141] sm:$0xff]
        %v2952 = vld [vmem:[%s2536 + $0x151] sm:$0xff]
        %v2953 = vld [vmem:[%s2536 + $0x159] sm:$0xff]
        %v2954 = vld [vmem:[%s2536 + $0x169] sm:$0xff]
        %v2955 = vld [vmem:[%s2536 + $0x171] sm:$0xff]
        %s2956 = scalar_lea.vmem %s1, 56
        %v2957 = vld [vmem:[%s2956] sm:$0xff]
        %v2959 = vsel %vm344, %v2924, 0
        %v2962 = vsel %vm344, %v2925, 0
        %v2965 = vsel %vm344, %v2926, 0
        %v2968 = vsel %vm344, %v2927, 0
        %v2971 = vsel %vm344, %v2928, 0
        %v2974 = vsel %vm344, %v2929, 0
        %v2977 = vsel %vm344, %v2930, 0
        %v2980 = vsel %vm344, %v2931, 0
        %v2983 = vsel %vm344, %v2932, 0
        %v2986 = vsel %vm344, %v2933, 0
        %v2989 = vsel %vm344, %v2934, 0
        %v2992 = vsel %vm344, %v2935, 0
        %v2995 = vsel %vm344, %v2936, 0
        %v2998 = vsel %vm344, %v2937, 0
        %v3001 = vsel %vm344, %v2938, 0
        %v3004 = vsel %vm344, %v2939, 0
        %v3007 = vsel %vm344, %v2940, 0
        %v3010 = vsel %vm344, %v2941, 0
        %v3013 = vsel %vm344, %v2942, 0
        %v3016 = vsel %vm344, %v2943, 0
        %v3019 = vsel %vm344, %v2944, 0
        %v3022 = vsel %vm344, %v2945, 0
        %v3025 = vsel %vm344, %v2946, 0
        %v3028 = vsel %vm344, %v2947, 0
        %v3031 = vsel %vm344, %v2948, 0
        %v3034 = vsel %vm344, %v2949, 0
        %v3037 = vsel %vm344, %v2950, 0
        %v3040 = vsel %vm344, %v2951, 0
        %v3043 = vsel %vm344, %v2952, 0
        %v3046 = vsel %vm344, %v2953, 0
        %v3049 = vsel %vm344, %v2954, 0
        %v3052 = vsel %vm344, %v2955, 0
        %3054 = vmatprep.subr.mxu0 0.0
        %3055 = vmatpush1.msra.mxu0 %v2957
        %3056 = vmatprep.subr.mxu0 0.0
        %3057 = vmatpush1.msra.mxu0 0.0
        %3058 = vmatprep.subr.mxu0 0.0
        %3059 = vmatpush1.msra.mxu0 0.0
        %3060 = vmatprep.subr.mxu0 0.0
        %3061 = vmatpush1.msra.mxu0 0.0
        %3062 = vmatprep.subr.mxu0 0.0
        %3063 = vmatpush1.msra.mxu0 0.0
        %3064 = vmatprep.subr.mxu0 0.0
        %3065 = vmatpush1.msra.mxu0 0.0
        %3066 = vmatprep.subr.mxu0 0.0
        %3067 = vmatpush1.msra.mxu0 0.0
        %3068 = vmatprep.subr.mxu0 0.0
        %3069 = vmatpush1.msra.mxu0 0.0
        %3070 = vmatprep.subr.mxu0 0.0
        %3071 = vmatpush1.msra.mxu0 0.0
        %3072 = vmatprep.subr.mxu0 0.0
        %3073 = vmatpush1.msra.mxu0 0.0
        %3074 = vmatprep.subr.mxu0 0.0
        %3075 = vmatpush1.msra.mxu0 0.0
        %3076 = vmatprep.subr.mxu0 0.0
        %3077 = vmatpush1.msra.mxu0 0.0
        %3078 = vmatprep.subr.mxu0 0.0
        %3079 = vmatpush1.msra.mxu0 0.0
        %3080 = vmatprep.subr.mxu0 0.0
        %3081 = vmatpush1.msra.mxu0 0.0
        %3082 = vmatprep.subr.mxu0 0.0
        %3083 = vmatpush1.msra.mxu0 0.0
        %3084 = vmatprep.subr.mxu0 0.0
        %3085 = vmatpush1.msra.mxu0 0.0
        %3086 = vmatprep.subr.mxu0 0.0
        %3087 = vmatpush1.msra.mxu0 0.0
        %3088 = vmatprep.subr.mxu0 0.0
        %3089 = vmatpush1.msra.mxu0 0.0
        %3090 = vmatprep.subr.mxu0 0.0
        %3091 = vmatpush1.msra.mxu0 0.0
        %3092 = vmatprep.subr.mxu0 0.0
        %3093 = vmatpush1.msra.mxu0 0.0
        %3094 = vmatprep.subr.mxu0 0.0
        %3095 = vmatpush1.msra.mxu0 0.0
        %3096 = vmatprep.subr.mxu0 0.0
        %3097 = vmatpush1.msra.mxu0 0.0
        %3098 = vmatprep.subr.mxu0 0.0
        %3099 = vmatpush1.msra.mxu0 0.0
        %3100 = vmatprep.subr.mxu0 0.0
        %3101 = vmatpush1.msra.mxu0 0.0
        %3102 = vmatprep.subr.mxu0 0.0
        %3103 = vmatpush1.msra.mxu0 0.0
        %3104 = vmatprep.subr.mxu0 0.0
        %3105 = vmatpush1.msra.mxu0 0.0
        %3106 = vmatprep.subr.mxu0 0.0
        %3107 = vmatpush1.msra.mxu0 0.0
        %3108 = vmatprep.subr.mxu0 0.0
        %3109 = vmatpush1.msra.mxu0 0.0
        %3110 = vmatprep.subr.mxu0 0.0
        %3111 = vmatpush1.msra.mxu0 0.0
        %3112 = vmatprep.subr.mxu0 0.0
        %3113 = vmatpush1.msra.mxu0 0.0
        %3114 = vmatprep.subr.mxu0 0.0
        %3115 = vmatpush1.msra.mxu0 0.0
        %3116 = vmatprep.subr.mxu0 0.0
        %3117 = vmatpush1.msra.mxu0 0.0
        %3118 = vmatprep.mubr.f32.mxu0 0.0
        %3119 = vmatmul.mubr.f32.gmra.mrb[0].mxu0 %v2959
        %v3120 = vpop.f32.mrb[0].mxu0
        %v3121 = vadd.f32 0.0, %v3120
        %v3122 = vpop.f32.mrb[0].mxu0
        %3123 = vmatprep.mubr.f32.mxu0 0.0
        %3124 = vmatmul.mubr.f32.gmra.mrb[0].mxu0 %v2962
        %v3125 = vpop.f32.mrb[0].mxu0
        %v3126 = vadd.f32 0.0, %v3125
        %v3127 = vpop.f32.mrb[0].mxu0
        %3128 = vmatprep.mubr.f32.mxu0 0.0
        %3129 = vmatmul.mubr.f32.gmra.mrb[0].mxu0 %v2965
        %v3130 = vpop.f32.mrb[0].mxu0
        %v3131 = vadd.f32 0.0, %v3130
        %v3132 = vpop.f32.mrb[0].mxu0
        %3133 = vmatprep.mubr.f32.mxu0 0.0
        %3134 = vmatmul.mubr.f32.gmra.mrb[0].mxu0 %v2968
        %v3135 = vpop.f32.mrb[0].mxu0
        %v3136 = vadd.f32 0.0, %v3135
        %v3137 = vpop.f32.mrb[0].mxu0
        %3138 = vmatprep.mubr.f32.mxu0 0.0
        %3139 = vmatmul.mubr.f32.gmra.mrb[0].mxu0 %v2971
        %v3140 = vpop.f32.mrb[0].mxu0
        %v3141 = vadd.f32 0.0, %v3140
        %v3142 = vpop.f32.mrb[0].mxu0
        %3143 = vmatprep.mubr.f32.mxu0 0.0
        %3144 = vmatmul.mubr.f32.gmra.mrb[0].mxu0 %v2974
        %v3145 = vpop.f32.mrb[0].mxu0
        %v3146 = vadd.f32 0.0, %v3145
        %v3147 = vpop.f32.mrb[0].mxu0
        %3148 = vmatprep.mubr.f32.mxu0 0.0
        %3149 = vmatmul.mubr.f32.gmra.mrb[0].mxu0 %v2977
        %v3150 = vpop.f32.mrb[0].mxu0
        %v3151 = vadd.f32 0.0, %v3150
        %v3152 = vpop.f32.mrb[0].mxu0
        %3153 = vmatprep.mubr.f32.mxu0 0.0
        %3154 = vmatmul.mubr.f32.gmra.mrb[0].mxu0 %v2980
        %v3155 = vpop.f32.mrb[0].mxu0
        %v3156 = vadd.f32 0.0, %v3155
        %v3157 = vpop.f32.mrb[0].mxu0
        %3158 = vmatprep.mubr.f32.mxu0 0.0
        %3159 = vmatmul.mubr.f32.gmra.mrb[0].mxu0 %v2983
        %v3160 = vpop.f32.mrb[0].mxu0
        %v3161 = vadd.f32 0.0, %v3160
        %v3162 = vpop.f32.mrb[0].mxu0
        %3163 = vmatprep.mubr.f32.mxu0 0.0
        %3164 = vmatmul.mubr.f32.gmra.mrb[0].mxu0 %v2986
        %v3165 = vpop.f32.mrb[0].mxu0
        %v3166 = vadd.f32 0.0, %v3165
        %v3167 = vpop.f32.mrb[0].mxu0
        %3168 = vmatprep.mubr.f32.mxu0 0.0
        %3169 = vmatmul.mubr.f32.gmra.mrb[0].mxu0 %v2989
        %v3170 = vpop.f32.mrb[0].mxu0
        %v3171 = vadd.f32 0.0, %v3170
        %v3172 = vpop.f32.mrb[0].mxu0
        %3173 = vmatprep.mubr.f32.mxu0 0.0
        %3174 = vmatmul.mubr.f32.gmra.mrb[0].mxu0 %v2992
        %v3175 = vpop.f32.mrb[0].mxu0
        %v3176 = vadd.f32 0.0, %v3175
        %v3177 = vpop.f32.mrb[0].mxu0
        %3178 = vmatprep.mubr.f32.mxu0 0.0
        %3179 = vmatmul.mubr.f32.gmra.mrb[0].mxu0 %v2995
        %v3180 = vpop.f32.mrb[0].mxu0
        %v3181 = vadd.f32 0.0, %v3180
        %v3182 = vpop.f32.mrb[0].mxu0
        %3183 = vmatprep.mubr.f32.mxu0 0.0
        %3184 = vmatmul.mubr.f32.gmra.mrb[0].mxu0 %v2998
        %v3185 = vpop.f32.mrb[0].mxu0
        %v3186 = vadd.f32 0.0, %v3185
        %v3187 = vpop.f32.mrb[0].mxu0
        %3188 = vmatprep.mubr.f32.mxu0 0.0
        %3189 = vmatmul.mubr.f32.gmra.mrb[0].mxu0 %v3001
        %v3190 = vpop.f32.mrb[0].mxu0
        %v3191 = vadd.f32 0.0, %v3190
        %v3192 = vpop.f32.mrb[0].mxu0
        %3193 = vmatprep.mubr.f32.mxu0 0.0
        %3194 = vmatmul.mubr.f32.gmra.mrb[0].mxu0 %v3004
        %v3195 = vpop.f32.mrb[0].mxu0
        %v3196 = vadd.f32 0.0, %v3195
        %v3197 = vpop.f32.mrb[0].mxu0
        %3198 = vmatprep.mubr.f32.mxu0 0.0
        %3199 = vmatmul.mubr.f32.gmra.mrb[0].mxu0 %v3007
        %v3200 = vpop.f32.mrb[0].mxu0
        %v3201 = vadd.f32 0.0, %v3200
        %v3202 = vpop.f32.mrb[0].mxu0
        %3203 = vmatprep.mubr.f32.mxu0 0.0
        %3204 = vmatmul.mubr.f32.gmra.mrb[0].mxu0 %v3010
        %v3205 = vpop.f32.mrb[0].mxu0
        %v3206 = vadd.f32 0.0, %v3205
        %v3207 = vpop.f32.mrb[0].mxu0
        %3208 = vmatprep.mubr.f32.mxu0 0.0
        %3209 = vmatmul.mubr.f32.gmra.mrb[0].mxu0 %v3013
        %v3210 = vpop.f32.mrb[0].mxu0
        %v3211 = vadd.f32 0.0, %v3210
        %v3212 = vpop.f32.mrb[0].mxu0
        %3213 = vmatprep.mubr.f32.mxu0 0.0
        %3214 = vmatmul.mubr.f32.gmra.mrb[0].mxu0 %v3016
        %v3215 = vpop.f32.mrb[0].mxu0
        %v3216 = vadd.f32 0.0, %v3215
        %v3217 = vpop.f32.mrb[0].mxu0
        %3218 = vmatprep.mubr.f32.mxu0 0.0
        %3219 = vmatmul.mubr.f32.gmra.mrb[0].mxu0 %v3019
        %v3220 = vpop.f32.mrb[0].mxu0
        %v3221 = vadd.f32 0.0, %v3220
        %v3222 = vpop.f32.mrb[0].mxu0
        %3223 = vmatprep.mubr.f32.mxu0 0.0
        %3224 = vmatmul.mubr.f32.gmra.mrb[0].mxu0 %v3022
        %v3225 = vpop.f32.mrb[0].mxu0
        %v3226 = vadd.f32 0.0, %v3225
        %v3227 = vpop.f32.mrb[0].mxu0
        %3228 = vmatprep.mubr.f32.mxu0 0.0
        %3229 = vmatmul.mubr.f32.gmra.mrb[0].mxu0 %v3025
        %v3230 = vpop.f32.mrb[0].mxu0
        %v3231 = vadd.f32 0.0, %v3230
        %v3232 = vpop.f32.mrb[0].mxu0
        %3233 = vmatprep.mubr.f32.mxu0 0.0
        %3234 = vmatmul.mubr.f32.gmra.mrb[0].mxu0 %v3028
        %v3235 = vpop.f32.mrb[0].mxu0
        %v3236 = vadd.f32 0.0, %v3235
        %v3237 = vpop.f32.mrb[0].mxu0
        %3238 = vmatprep.mubr.f32.mxu0 0.0
        %3239 = vmatmul.mubr.f32.gmra.mrb[0].mxu0 %v3031
        %v3240 = vpop.f32.mrb[0].mxu0
        %v3241 = vadd.f32 0.0, %v3240
        %v3242 = vpop.f32.mrb[0].mxu0
        %3243 = vmatprep.mubr.f32.mxu0 0.0
        %3244 = vmatmul.mubr.f32.gmra.mrb[0].mxu0 %v3034
        %v3245 = vpop.f32.mrb[0].mxu0
        %v3246 = vadd.f32 0.0, %v3245
        %v3247 = vpop.f32.mrb[0].mxu0
        %3248 = vmatprep.mubr.f32.mxu0 0.0
        %3249 = vmatmul.mubr.f32.gmra.mrb[0].mxu0 %v3037
        %v3250 = vpop.f32.mrb[0].mxu0
        %v3251 = vadd.f32 0.0, %v3250
        %v3252 = vpop.f32.mrb[0].mxu0
        %3253 = vmatprep.mubr.f32.mxu0 0.0
        %3254 = vmatmul.mubr.f32.gmra.mrb[0].mxu0 %v3040
        %v3255 = vpop.f32.mrb[0].mxu0
        %v3256 = vadd.f32 0.0, %v3255
        %v3257 = vpop.f32.mrb[0].mxu0
        %3258 = vmatprep.mubr.f32.mxu0 0.0
        %3259 = vmatmul.mubr.f32.gmra.mrb[0].mxu0 %v3043
        %v3260 = vpop.f32.mrb[0].mxu0
        %v3261 = vadd.f32 0.0, %v3260
        %v3262 = vpop.f32.mrb[0].mxu0
        %3263 = vmatprep.mubr.f32.mxu0 0.0
        %3264 = vmatmul.mubr.f32.gmra.mrb[0].mxu0 %v3046
        %v3265 = vpop.f32.mrb[0].mxu0
        %v3266 = vadd.f32 0.0, %v3265
        %v3267 = vpop.f32.mrb[0].mxu0
        %3268 = vmatprep.mubr.f32.mxu0 0.0
        %3269 = vmatmul.mubr.f32.gmra.mrb[0].mxu0 %v3049
        %v3270 = vpop.f32.mrb[0].mxu0
        %v3271 = vadd.f32 0.0, %v3270
        %v3272 = vpop.f32.mrb[0].mxu0
        %3273 = vmatprep.mubr.f32.mxu0 0.0
        %3274 = vmatmul.mubr.f32.gmra.mrb[0].mxu0 %v3052
        %v3275 = vpop.f32.mrb[0].mxu0
        %v3276 = vadd.f32 0.0, %v3275
        %v3277 = vpop.f32.mrb[0].mxu0
        %3278 = vdwg.mxu0
        %v3279 = vadd.f32 %v2892, %v3121
        %v3280 = vadd.f32 %v2893, %v3126
        %v3281 = vadd.f32 %v2894, %v3131
        %v3282 = vadd.f32 %v2895, %v3136
        %v3283 = vadd.f32 %v2896, %v3141
        %v3284 = vadd.f32 %v2897, %v3146
        %v3285 = vadd.f32 %v2898, %v3151
        %v3286 = vadd.f32 %v2899, %v3156
        %v3287 = vadd.f32 %v2900, %v3161
        %v3288 = vadd.f32 %v2901, %v3166
        %v3289 = vadd.f32 %v2902, %v3171
        %v3290 = vadd.f32 %v2903, %v3176
        %v3291 = vadd.f32 %v2904, %v3181
        %v3292 = vadd.f32 %v2905, %v3186
        %v3293 = vadd.f32 %v2906, %v3191
        %v3294 = vadd.f32 %v2907, %v3196
        %v3295 = vadd.f32 %v2908, %v3201
        %v3296 = vadd.f32 %v2909, %v3206
        %v3297 = vadd.f32 %v2910, %v3211
        %v3298 = vadd.f32 %v2911, %v3216
        %v3299 = vadd.f32 %v2912, %v3221
        %v3300 = vadd.f32 %v2913, %v3226
        %v3301 = vadd.f32 %v2914, %v3231
        %v3302 = vadd.f32 %v2915, %v3236
        %v3303 = vadd.f32 %v2916, %v3241
        %v3304 = vadd.f32 %v2917, %v3246
        %v3305 = vadd.f32 %v2918, %v3251
        %v3306 = vadd.f32 %v2919, %v3256
        %v3307 = vadd.f32 %v2920, %v3261
        %v3308 = vadd.f32 %v2921, %v3266
        %v3309 = vadd.f32 %v2922, %v3271
        %v3310 = vadd.f32 %v2923, %v3276
        %v3311 = vld [vmem:[%s2536 + $0x2] sm:$0xff]
        %v3312 = vld [vmem:[%s2536 + $0xa] sm:$0xff]
        %v3313 = vld [vmem:[%s2536 + $0x1a] sm:$0xff]
        %v3314 = vld [vmem:[%s2536 + $0x22] sm:$0xff]
        %v3315 = vld [vmem:[%s2536 + $0x32] sm:$0xff]
        %v3316 = vld [vmem:[%s2536 + $0x3a] sm:$0xff]
        %v3317 = vld [vmem:[%s2536 + $0x4a] sm:$0xff]
        %v3318 = vld [vmem:[%s2536 + $0x52] sm:$0xff]
        %v3319 = vld [vmem:[%s2536 + $0x62] sm:$0xff]
        %v3320 = vld [vmem:[%s2536 + $0x6a] sm:$0xff]
        %v3321 = vld [vmem:[%s2536 + $0x7a] sm:$0xff]
        %v3322 = vld [vmem:[%s2536 + $0x82] sm:$0xff]
        %v3323 = vld [vmem:[%s2536 + $0x92] sm:$0xff]
        %v3324 = vld [vmem:[%s2536 + $0x9a] sm:$0xff]
        %v3325 = vld [vmem:[%s2536 + $0xaa] sm:$0xff]
        %v3326 = vld [vmem:[%s2536 + $0xb2] sm:$0xff]
        %v3327 = vld [vmem:[%s2536 + $0xc2] sm:$0xff]
        %v3328 = vld [vmem:[%s2536 + $0xca] sm:$0xff]
        %v3329 = vld [vmem:[%s2536 + $0xda] sm:$0xff]
        %v3330 = vld [vmem:[%s2536 + $0xe2] sm:$0xff]
        %v3331 = vld [vmem:[%s2536 + $0xf2] sm:$0xff]
        %v3332 = vld [vmem:[%s2536 + $0xfa] sm:$0xff]
        %v3333 = vld [vmem:[%s2536 + $0x10a] sm:$0xff]
        %v3334 = vld [vmem:[%s2536 + $0x112] sm:$0xff]
        %v3335 = vld [vmem:[%s2536 + $0x122] sm:$0xff]
        %v3336 = vld [vmem:[%s2536 + $0x12a] sm:$0xff]
        %v3337 = vld [vmem:[%s2536 + $0x13a] sm:$0xff]
        %v3338 = vld [vmem:[%s2536 + $0x142] sm:$0xff]
        %v3339 = vld [vmem:[%s2536 + $0x152] sm:$0xff]
        %v3340 = vld [vmem:[%s2536 + $0x15a] sm:$0xff]
        %v3341 = vld [vmem:[%s2536 + $0x16a] sm:$0xff]
        %v3342 = vld [vmem:[%s2536 + $0x172] sm:$0xff]
        %s3343 = scalar_lea.vmem %s1, 64
        %v3344 = vld [vmem:[%s3343] sm:$0xff]
        %v3346 = vsel %vm344, %v3311, 0
        %v3349 = vsel %vm344, %v3312, 0
        %v3352 = vsel %vm344, %v3313, 0
        %v3355 = vsel %vm344, %v3314, 0
        %v3358 = vsel %vm344, %v3315, 0
        %v3361 = vsel %vm344, %v3316, 0
        %v3364 = vsel %vm344, %v3317, 0
        %v3367 = vsel %vm344, %v3318, 0
        %v3370 = vsel %vm344, %v3319, 0
        %v3373 = vsel %vm344, %v3320, 0
        %v3376 = vsel %vm344, %v3321, 0
        %v3379 = vsel %vm344, %v3322, 0
        %v3382 = vsel %vm344, %v3323, 0
        %v3385 = vsel %vm344, %v3324, 0
        %v3388 = vsel %vm344, %v3325, 0
        %v3391 = vsel %vm344, %v3326, 0
        %v3394 = vsel %vm344, %v3327, 0
        %v3397 = vsel %vm344, %v3328, 0
        %v3400 = vsel %vm344, %v3329, 0
        %v3403 = vsel %vm344, %v3330, 0
        %v3406 = vsel %vm344, %v3331, 0
        %v3409 = vsel %vm344, %v3332, 0
        %v3412 = vsel %vm344, %v3333, 0
        %v3415 = vsel %vm344, %v3334, 0
        %v3418 = vsel %vm344, %v3335, 0
        %v3421 = vsel %vm344, %v3336, 0
        %v3424 = vsel %vm344, %v3337, 0
        %v3427 = vsel %vm344, %v3338, 0
        %v3430 = vsel %vm344, %v3339, 0
        %v3433 = vsel %vm344, %v3340, 0
        %v3436 = vsel %vm344, %v3341, 0
        %v3439 = vsel %vm344, %v3342, 0
        %3441 = vmatprep.subr.mxu0 0.0
        %3442 = vmatpush1.msra.mxu0 %v3344
        %3443 = vmatprep.subr.mxu0 0.0
        %3444 = vmatpush1.msra.mxu0 0.0
        %3445 = vmatprep.subr.mxu0 0.0
        %3446 = vmatpush1.msra.mxu0 0.0
        %3447 = vmatprep.subr.mxu0 0.0
        %3448 = vmatpush1.msra.mxu0 0.0
        %3449 = vmatprep.subr.mxu0 0.0
        %3450 = vmatpush1.msra.mxu0 0.0
        %3451 = vmatprep.subr.mxu0 0.0
        %3452 = vmatpush1.msra.mxu0 0.0
        %3453 = vmatprep.subr.mxu0 0.0
        %3454 = vmatpush1.msra.mxu0 0.0
        %3455 = vmatprep.subr.mxu0 0.0
        %3456 = vmatpush1.msra.mxu0 0.0
        %3457 = vmatprep.subr.mxu0 0.0
        %3458 = vmatpush1.msra.mxu0 0.0
        %3459 = vmatprep.subr.mxu0 0.0
        %3460 = vmatpush1.msra.mxu0 0.0
        %3461 = vmatprep.subr.mxu0 0.0
        %3462 = vmatpush1.msra.mxu0 0.0
        %3463 = vmatprep.subr.mxu0 0.0
        %3464 = vmatpush1.msra.mxu0 0.0
        %3465 = vmatprep.subr.mxu0 0.0
        %3466 = vmatpush1.msra.mxu0 0.0
        %3467 = vmatprep.subr.mxu0 0.0
        %3468 = vmatpush1.msra.mxu0 0.0
        %3469 = vmatprep.subr.mxu0 0.0
        %3470 = vmatpush1.msra.mxu0 0.0
        %3471 = vmatprep.subr.mxu0 0.0
        %3472 = vmatpush1.msra.mxu0 0.0
        %3473 = vmatprep.subr.mxu0 0.0
        %3474 = vmatpush1.msra.mxu0 0.0
        %3475 = vmatprep.subr.mxu0 0.0
        %3476 = vmatpush1.msra.mxu0 0.0
        %3477 = vmatprep.subr.mxu0 0.0
        %3478 = vmatpush1.msra.mxu0 0.0
        %3479 = vmatprep.subr.mxu0 0.0
        %3480 = vmatpush1.msra.mxu0 0.0
        %3481 = vmatprep.subr.mxu0 0.0
        %3482 = vmatpush1.msra.mxu0 0.0
        %3483 = vmatprep.subr.mxu0 0.0
        %3484 = vmatpush1.msra.mxu0 0.0
        %3485 = vmatprep.subr.mxu0 0.0
        %3486 = vmatpush1.msra.mxu0 0.0
        %3487 = vmatprep.subr.mxu0 0.0
        %3488 = vmatpush1.msra.mxu0 0.0
        %3489 = vmatprep.subr.mxu0 0.0
        %3490 = vmatpush1.msra.mxu0 0.0
        %3491 = vmatprep.subr.mxu0 0.0
        %3492 = vmatpush1.msra.mxu0 0.0
        %3493 = vmatprep.subr.mxu0 0.0
        %3494 = vmatpush1.msra.mxu0 0.0
        %3495 = vmatprep.subr.mxu0 0.0
        %3496 = vmatpush1.msra.mxu0 0.0
        %3497 = vmatprep.subr.mxu0 0.0
        %3498 = vmatpush1.msra.mxu0 0.0
        %3499 = vmatprep.subr.mxu0 0.0
        %3500 = vmatpush1.msra.mxu0 0.0
        %3501 = vmatprep.subr.mxu0 0.0
        %3502 = vmatpush1.msra.mxu0 0.0
        %3503 = vmatprep.subr.mxu0 0.0
        %3504 = vmatpush1.msra.mxu0 0.0
        %3505 = vmatprep.mubr.f32.mxu0 0.0
        %3506 = vmatmul.mubr.f32.gmra.mrb[0].mxu0 %v3346
        %v3507 = vpop.f32.mrb[0].mxu0
        %v3508 = vadd.f32 0.0, %v3507
        %v3509 = vpop.f32.mrb[0].mxu0
        %3510 = vmatprep.mubr.f32.mxu0 0.0
        %3511 = vmatmul.mubr.f32.gmra.mrb[0].mxu0 %v3349
        %v3512 = vpop.f32.mrb[0].mxu0
        %v3513 = vadd.f32 0.0, %v3512
        %v3514 = vpop.f32.mrb[0].mxu0
        %3515 = vmatprep.mubr.f32.mxu0 0.0
        %3516 = vmatmul.mubr.f32.gmra.mrb[0].mxu0 %v3352
        %v3517 = vpop.f32.mrb[0].mxu0
        %v3518 = vadd.f32 0.0, %v3517
        %v3519 = vpop.f32.mrb[0].mxu0
        %3520 = vmatprep.mubr.f32.mxu0 0.0
        %3521 = vmatmul.mubr.f32.gmra.mrb[0].mxu0 %v3355
        %v3522 = vpop.f32.mrb[0].mxu0
        %v3523 = vadd.f32 0.0, %v3522
        %v3524 = vpop.f32.mrb[0].mxu0
        %3525 = vmatprep.mubr.f32.mxu0 0.0
        %3526 = vmatmul.mubr.f32.gmra.mrb[0].mxu0 %v3358
        %v3527 = vpop.f32.mrb[0].mxu0
        %v3528 = vadd.f32 0.0, %v3527
        %v3529 = vpop.f32.mrb[0].mxu0
        %3530 = vmatprep.mubr.f32.mxu0 0.0
        %3531 = vmatmul.mubr.f32.gmra.mrb[0].mxu0 %v3361
        %v3532 = vpop.f32.mrb[0].mxu0
        %v3533 = vadd.f32 0.0, %v3532
        %v3534 = vpop.f32.mrb[0].mxu0
        %3535 = vmatprep.mubr.f32.mxu0 0.0
        %3536 = vmatmul.mubr.f32.gmra.mrb[0].mxu0 %v3364
        %v3537 = vpop.f32.mrb[0].mxu0
        %v3538 = vadd.f32 0.0, %v3537
        %v3539 = vpop.f32.mrb[0].mxu0
        %3540 = vmatprep.mubr.f32.mxu0 0.0
        %3541 = vmatmul.mubr.f32.gmra.mrb[0].mxu0 %v3367
        %v3542 = vpop.f32.mrb[0].mxu0
        %v3543 = vadd.f32 0.0, %v3542
        %v3544 = vpop.f32.mrb[0].mxu0
        %3545 = vmatprep.mubr.f32.mxu0 0.0
        %3546 = vmatmul.mubr.f32.gmra.mrb[0].mxu0 %v3370
        %v3547 = vpop.f32.mrb[0].mxu0
        %v3548 = vadd.f32 0.0, %v3547
        %v3549 = vpop.f32.mrb[0].mxu0
        %3550 = vmatprep.mubr.f32.mxu0 0.0
        %3551 = vmatmul.mubr.f32.gmra.mrb[0].mxu0 %v3373
        %v3552 = vpop.f32.mrb[0].mxu0
        %v3553 = vadd.f32 0.0, %v3552
        %v3554 = vpop.f32.mrb[0].mxu0
        %3555 = vmatprep.mubr.f32.mxu0 0.0
        %3556 = vmatmul.mubr.f32.gmra.mrb[0].mxu0 %v3376
        %v3557 = vpop.f32.mrb[0].mxu0
        %v3558 = vadd.f32 0.0, %v3557
        %v3559 = vpop.f32.mrb[0].mxu0
        %3560 = vmatprep.mubr.f32.mxu0 0.0
        %3561 = vmatmul.mubr.f32.gmra.mrb[0].mxu0 %v3379
        %v3562 = vpop.f32.mrb[0].mxu0
        %v3563 = vadd.f32 0.0, %v3562
        %v3564 = vpop.f32.mrb[0].mxu0
        %3565 = vmatprep.mubr.f32.mxu0 0.0
        %3566 = vmatmul.mubr.f32.gmra.mrb[0].mxu0 %v3382
        %v3567 = vpop.f32.mrb[0].mxu0
        %v3568 = vadd.f32 0.0, %v3567
        %v3569 = vpop.f32.mrb[0].mxu0
        %3570 = vmatprep.mubr.f32.mxu0 0.0
        %3571 = vmatmul.mubr.f32.gmra.mrb[0].mxu0 %v3385
        %v3572 = vpop.f32.mrb[0].mxu0
        %v3573 = vadd.f32 0.0, %v3572
        %v3574 = vpop.f32.mrb[0].mxu0
        %3575 = vmatprep.mubr.f32.mxu0 0.0
        %3576 = vmatmul.mubr.f32.gmra.mrb[0].mxu0 %v3388
        %v3577 = vpop.f32.mrb[0].mxu0
        %v3578 = vadd.f32 0.0, %v3577
        %v3579 = vpop.f32.mrb[0].mxu0
        %3580 = vmatprep.mubr.f32.mxu0 0.0
        %3581 = vmatmul.mubr.f32.gmra.mrb[0].mxu0 %v3391
        %v3582 = vpop.f32.mrb[0].mxu0
        %v3583 = vadd.f32 0.0, %v3582
        %v3584 = vpop.f32.mrb[0].mxu0
        %3585 = vmatprep.mubr.f32.mxu0 0.0
        %3586 = vmatmul.mubr.f32.gmra.mrb[0].mxu0 %v3394
        %v3587 = vpop.f32.mrb[0].mxu0
        %v3588 = vadd.f32 0.0, %v3587
        %v3589 = vpop.f32.mrb[0].mxu0
        %3590 = vmatprep.mubr.f32.mxu0 0.0
        %3591 = vmatmul.mubr.f32.gmra.mrb[0].mxu0 %v3397
        %v3592 = vpop.f32.mrb[0].mxu0
        %v3593 = vadd.f32 0.0, %v3592
        %v3594 = vpop.f32.mrb[0].mxu0
        %3595 = vmatprep.mubr.f32.mxu0 0.0
        %3596 = vmatmul.mubr.f32.gmra.mrb[0].mxu0 %v3400
        %v3597 = vpop.f32.mrb[0].mxu0
        %v3598 = vadd.f32 0.0, %v3597
        %v3599 = vpop.f32.mrb[0].mxu0
        %3600 = vmatprep.mubr.f32.mxu0 0.0
        %3601 = vmatmul.mubr.f32.gmra.mrb[0].mxu0 %v3403
        %v3602 = vpop.f32.mrb[0].mxu0
        %v3603 = vadd.f32 0.0, %v3602
        %v3604 = vpop.f32.mrb[0].mxu0
        %3605 = vmatprep.mubr.f32.mxu0 0.0
        %3606 = vmatmul.mubr.f32.gmra.mrb[0].mxu0 %v3406
        %v3607 = vpop.f32.mrb[0].mxu0
        %v3608 = vadd.f32 0.0, %v3607
        %v3609 = vpop.f32.mrb[0].mxu0
        %3610 = vmatprep.mubr.f32.mxu0 0.0
        %3611 = vmatmul.mubr.f32.gmra.mrb[0].mxu0 %v3409
        %v3612 = vpop.f32.mrb[0].mxu0
        %v3613 = vadd.f32 0.0, %v3612
        %v3614 = vpop.f32.mrb[0].mxu0
        %3615 = vmatprep.mubr.f32.mxu0 0.0
        %3616 = vmatmul.mubr.f32.gmra.mrb[0].mxu0 %v3412
        %v3617 = vpop.f32.mrb[0].mxu0
        %v3618 = vadd.f32 0.0, %v3617
        %v3619 = vpop.f32.mrb[0].mxu0
        %3620 = vmatprep.mubr.f32.mxu0 0.0
        %3621 = vmatmul.mubr.f32.gmra.mrb[0].mxu0 %v3415
        %v3622 = vpop.f32.mrb[0].mxu0
        %v3623 = vadd.f32 0.0, %v3622
        %v3624 = vpop.f32.mrb[0].mxu0
        %3625 = vmatprep.mubr.f32.mxu0 0.0
        %3626 = vmatmul.mubr.f32.gmra.mrb[0].mxu0 %v3418
        %v3627 = vpop.f32.mrb[0].mxu0
        %v3628 = vadd.f32 0.0, %v3627
        %v3629 = vpop.f32.mrb[0].mxu0
        %3630 = vmatprep.mubr.f32.mxu0 0.0
        %3631 = vmatmul.mubr.f32.gmra.mrb[0].mxu0 %v3421
        %v3632 = vpop.f32.mrb[0].mxu0
        %v3633 = vadd.f32 0.0, %v3632
        %v3634 = vpop.f32.mrb[0].mxu0
        %3635 = vmatprep.mubr.f32.mxu0 0.0
        %3636 = vmatmul.mubr.f32.gmra.mrb[0].mxu0 %v3424
        %v3637 = vpop.f32.mrb[0].mxu0
        %v3638 = vadd.f32 0.0, %v3637
        %v3639 = vpop.f32.mrb[0].mxu0
        %3640 = vmatprep.mubr.f32.mxu0 0.0
        %3641 = vmatmul.mubr.f32.gmra.mrb[0].mxu0 %v3427
        %v3642 = vpop.f32.mrb[0].mxu0
        %v3643 = vadd.f32 0.0, %v3642
        %v3644 = vpop.f32.mrb[0].mxu0
        %3645 = vmatprep.mubr.f32.mxu0 0.0
        %3646 = vmatmul.mubr.f32.gmra.mrb[0].mxu0 %v3430
        %v3647 = vpop.f32.mrb[0].mxu0
        %v3648 = vadd.f32 0.0, %v3647
        %v3649 = vpop.f32.mrb[0].mxu0
        %3650 = vmatprep.mubr.f32.mxu0 0.0
        %3651 = vmatmul.mubr.f32.gmra.mrb[0].mxu0 %v3433
        %v3652 = vpop.f32.mrb[0].mxu0
        %v3653 = vadd.f32 0.0, %v3652
        %v3654 = vpop.f32.mrb[0].mxu0
        %3655 = vmatprep.mubr.f32.mxu0 0.0
        %3656 = vmatmul.mubr.f32.gmra.mrb[0].mxu0 %v3436
        %v3657 = vpop.f32.mrb[0].mxu0
        %v3658 = vadd.f32 0.0, %v3657
        %v3659 = vpop.f32.mrb[0].mxu0
        %3660 = vmatprep.mubr.f32.mxu0 0.0
        %3661 = vmatmul.mubr.f32.gmra.mrb[0].mxu0 %v3439
        %v3662 = vpop.f32.mrb[0].mxu0
        %v3663 = vadd.f32 0.0, %v3662
        %v3664 = vpop.f32.mrb[0].mxu0
        %3665 = vdwg.mxu0
        %v3666 = vadd.f32 %v3279, %v3508
        %v3667 = vadd.f32 %v3280, %v3513
        %v3668 = vadd.f32 %v3281, %v3518
        %v3669 = vadd.f32 %v3282, %v3523
        %v3670 = vadd.f32 %v3283, %v3528
        %v3671 = vadd.f32 %v3284, %v3533
        %v3672 = vadd.f32 %v3285, %v3538
        %v3673 = vadd.f32 %v3286, %v3543
        %v3674 = vadd.f32 %v3287, %v3548
        %v3675 = vadd.f32 %v3288, %v3553
        %v3676 = vadd.f32 %v3289, %v3558
        %v3677 = vadd.f32 %v3290, %v3563
        %v3678 = vadd.f32 %v3291, %v3568
        %v3679 = vadd.f32 %v3292, %v3573
        %v3680 = vadd.f32 %v3293, %v3578
        %v3681 = vadd.f32 %v3294, %v3583
        %v3682 = vadd.f32 %v3295, %v3588
        %v3683 = vadd.f32 %v3296, %v3593
        %v3684 = vadd.f32 %v3297, %v3598
        %v3685 = vadd.f32 %v3298, %v3603
        %v3686 = vadd.f32 %v3299, %v3608
        %v3687 = vadd.f32 %v3300, %v3613
        %v3688 = vadd.f32 %v3301, %v3618
        %v3689 = vadd.f32 %v3302, %v3623
        %v3690 = vadd.f32 %v3303, %v3628
        %v3691 = vadd.f32 %v3304, %v3633
        %v3692 = vadd.f32 %v3305, %v3638
        %v3693 = vadd.f32 %v3306, %v3643
        %v3694 = vadd.f32 %v3307, %v3648
        %v3695 = vadd.f32 %v3308, %v3653
        %v3696 = vadd.f32 %v3309, %v3658
        %v3697 = vadd.f32 %v3310, %v3663
        %v3698 = vmax.f32 %v3666, %v3668
        %v3699 = vmax.f32 %v3667, %v3669
        %v3700 = vmax.f32 %v3670, %v3672
        %v3701 = vmax.f32 %v3671, %v3673
        %v3702 = vmax.f32 %v3674, %v3676
        %v3703 = vmax.f32 %v3675, %v3677
        %v3704 = vmax.f32 %v3678, %v3680
        %v3705 = vmax.f32 %v3679, %v3681
        %v3706 = vmax.f32 %v3682, %v3684
        %v3707 = vmax.f32 %v3683, %v3685
        %v3708 = vmax.f32 %v3686, %v3688
        %v3709 = vmax.f32 %v3687, %v3689
        %v3710 = vmax.f32 %v3690, %v3692
        %v3711 = vmax.f32 %v3691, %v3693
        %v3712 = vmax.f32 %v3694, %v3696
        %v3713 = vmax.f32 %v3695, %v3697
        %3714 = vst [vmem:[#allocation2] sm:$0xff] %v3698
        %3715 = vst [vmem:[#allocation2 + $0x8] sm:$0xff] %v3699
        %3716 = vst [vmem:[#allocation2 + $0x10] sm:$0xff] %v3700
        %3717 = vst [vmem:[#allocation2 + $0x18] sm:$0xff] %v3701
        %3718 = vst [vmem:[#allocation2 + $0x20] sm:$0xff] %v3702
        %3719 = vst [vmem:[#allocation2 + $0x28] sm:$0xff] %v3703
        %3720 = vst [vmem:[#allocation2 + $0x30] sm:$0xff] %v3704
        %3721 = vst [vmem:[#allocation2 + $0x38] sm:$0xff] %v3705
        %3722 = vst [vmem:[#allocation2 + $0x40] sm:$0xff] %v3706
        %3723 = vst [vmem:[#allocation2 + $0x48] sm:$0xff] %v3707
        %3724 = vst [vmem:[#allocation2 + $0x50] sm:$0xff] %v3708
        %3725 = vst [vmem:[#allocation2 + $0x58] sm:$0xff] %v3709
        %3726 = vst [vmem:[#allocation2 + $0x60] sm:$0xff] %v3710
        %3727 = vst [vmem:[#allocation2 + $0x68] sm:$0xff] %v3711
        %3728 = vst [vmem:[#allocation2 + $0x70] sm:$0xff] %v3712
        %3729 = vst [vmem:[#allocation2 + $0x78] sm:$0xff] %v3713
        %v3730 = vld [vmem:[#allocation2] ss:$2 sm:$0xff]
        %s3731 = scalar_lea.vmem [#allocation2], 16
        %v3732 = vld [vmem:[%s3731] ss:$2 sm:$0xff]
        %s3733 = scalar_lea.vmem [#allocation2], 32
        %v3734 = vld [vmem:[%s3733] ss:$2 sm:$0xff]
        %s3735 = scalar_lea.vmem [#allocation2], 48
        %v3736 = vld [vmem:[%s3735] ss:$2 sm:$0xff]
        %s3737 = scalar_lea.vmem [#allocation2], 64
        %v3738 = vld [vmem:[%s3737] ss:$2 sm:$0xff]
        %s3739 = scalar_lea.vmem [#allocation2], 80
        %v3740 = vld [vmem:[%s3739] ss:$2 sm:$0xff]
        %s3741 = scalar_lea.vmem [#allocation2], 96
        %v3742 = vld [vmem:[%s3741] ss:$2 sm:$0xff]
        %s3743 = scalar_lea.vmem [#allocation2], 112
        %v3744 = vld [vmem:[%s3743] ss:$2 sm:$0xff]
        %s3745 = scalar_lea.vmem [#allocation2], 1
        %v3746 = vld [vmem:[%s3745] ss:$2 sm:$0xff]
        %s3747 = scalar_lea.vmem [#allocation2], 17
        %v3748 = vld [vmem:[%s3747] ss:$2 sm:$0xff]
        %s3749 = scalar_lea.vmem [#allocation2], 33
        %v3750 = vld [vmem:[%s3749] ss:$2 sm:$0xff]
        %s3751 = scalar_lea.vmem [#allocation2], 49
        %v3752 = vld [vmem:[%s3751] ss:$2 sm:$0xff]
        %s3753 = scalar_lea.vmem [#allocation2], 65
        %v3754 = vld [vmem:[%s3753] ss:$2 sm:$0xff]
        %s3755 = scalar_lea.vmem [#allocation2], 81
        %v3756 = vld [vmem:[%s3755] ss:$2 sm:$0xff]
        %s3757 = scalar_lea.vmem [#allocation2], 97
        %v3758 = vld [vmem:[%s3757] ss:$2 sm:$0xff]
        %s3759 = scalar_lea.vmem [#allocation2], 113
        %v3760 = vld [vmem:[%s3759] ss:$2 sm:$0xff]
        %v3761 = vmax.f32 %v3730, %v3746
        %v3762 = vmax.f32 %v3732, %v3748
        %v3763 = vmax.f32 %v3734, %v3750
        %v3764 = vmax.f32 %v3736, %v3752
        %v3765 = vmax.f32 %v3738, %v3754
        %v3766 = vmax.f32 %v3740, %v3756
        %v3767 = vmax.f32 %v3742, %v3758
        %v3768 = vmax.f32 %v3744, %v3760
        %v3769 = vld [vmem:[%s2] sm:$0x1]
        %v3771 = vlaneseq
        %v3772 = vshrl.u32 %v3771, 7
        %v3773 = vsub.s32 0, %v3772
        %v3774 = vrot.slane %v3769, %v3773
        %v3776 = vadd.f32 %v3761, %v3774
        %v3777 = vadd.f32 %v3762, %v3774
        %v3778 = vadd.f32 %v3763, %v3774
        %v3779 = vadd.f32 %v3764, %v3774
        %v3780 = vadd.f32 %v3765, %v3774
        %v3781 = vadd.f32 %v3766, %v3774
        %v3782 = vadd.f32 %v3767, %v3774
        %v3783 = vadd.f32 %v3768, %v3774
        %v3784 = vmax.f32 %v3776, 0.0
        %v3785 = vmax.f32 %v3777, 0.0
        %v3786 = vmax.f32 %v3778, 0.0
        %v3787 = vmax.f32 %v3779, 0.0
        %v3788 = vmax.f32 %v3780, 0.0
        %v3789 = vmax.f32 %v3781, 0.0
        %v3790 = vmax.f32 %v3782, 0.0
        %v3791 = vmax.f32 %v3783, 0.0
        %3792 = vst [vmem:[#allocation4] sm:$0xff] 0.0
        %3793 = vst [vmem:[#allocation4 + $0x8] sm:$0x3] 0.0
        %3794 = vst [vmem:[#allocation4 + $0x10] sm:$0xff] 0.0
        %3795 = vst [vmem:[#allocation4 + $0x18] sm:$0x3] 0.0
        %3796 = vst [vmem:[#allocation4 + $0x20] sm:$0xff] 0.0
        %3797 = vst [vmem:[#allocation4 + $0x28] sm:$0x3] 0.0
        %3798 = vst [vmem:[#allocation4 + $0x30] sm:$0xff] 0.0
        %3799 = vst [vmem:[#allocation4 + $0x38] sm:$0x3] 0.0
        %3800 = vst [vmem:[#allocation4 + $0x40] sm:$0xff] 0.0
        %3801 = vst [vmem:[#allocation4 + $0x48] sm:$0x3] 0.0
        %3802 = vst [vmem:[#allocation4 + $0x50] sm:$0xff] 0.0
        %3803 = vst [vmem:[#allocation4 + $0x58] sm:$0x3] 0.0
        %3804 = vst [vmem:[#allocation4 + $0x60] sm:$0xff] 0.0
        %3805 = vst [vmem:[#allocation4 + $0x68] sm:$0x3] 0.0
        %3806 = vst [vmem:[#allocation4 + $0x70] sm:$0xff] 0.0
        %3807 = vst [vmem:[#allocation4 + $0x78] sm:$0x3] 0.0
        %3808 = vst [vmem:[#allocation4 + $0x80] sm:$0xff] 0.0
        %3809 = vst [vmem:[#allocation4 + $0x88] sm:$0x3] 0.0
        %3810 = vst [vmem:[#allocation4 + $0x90] sm:$0xff] 0.0
        %3811 = vst [vmem:[#allocation4 + $0x98] sm:$0x3] 0.0
        %s3812 = scalar_lea.vmem [#allocation4], 16
        %3813 = vst [vmem:[%s3812 + $0x1] sm:$0xff] %v3784
        %3814 = vst [vmem:[%s3812 + $0x11] sm:$0xff] %v3785
        %3815 = vst [vmem:[%s3812 + $0x21] sm:$0xff] %v3786
        %3816 = vst [vmem:[%s3812 + $0x31] sm:$0xff] %v3787
        %3817 = vst [vmem:[%s3812 + $0x41] sm:$0xff] %v3788
        %3818 = vst [vmem:[%s3812 + $0x51] sm:$0xff] %v3789
        %3819 = vst [vmem:[%s3812 + $0x61] sm:$0xff] %v3790
        %3820 = vst [vmem:[%s3812 + $0x71] sm:$0xff] %v3791
        %v3821 = vld [vmem:[#allocation4] sm:$0xff]
        %v3822 = vld [vmem:[#allocation4 + $0x10] sm:$0xff]
        %v3823 = vld [vmem:[#allocation4 + $0x20] sm:$0xff]
        %v3824 = vld [vmem:[#allocation4 + $0x30] sm:$0xff]
        %v3825 = vld [vmem:[#allocation4 + $0x40] sm:$0xff]
        %v3826 = vld [vmem:[#allocation4 + $0x50] sm:$0xff]
        %v3827 = vld [vmem:[#allocation4 + $0x60] sm:$0xff]
        %v3828 = vld [vmem:[#allocation4 + $0x70] sm:$0xff]
        %v3829 = vld [vmem:[#allocation4 + $0x1] sm:$0xff]
        %v3830 = vld [vmem:[#allocation4 + $0x11] sm:$0xff]
        %v3831 = vld [vmem:[#allocation4 + $0x21] sm:$0xff]
        %v3832 = vld [vmem:[#allocation4 + $0x31] sm:$0xff]
        %v3833 = vld [vmem:[#allocation4 + $0x41] sm:$0xff]
        %v3834 = vld [vmem:[#allocation4 + $0x51] sm:$0xff]
        %v3835 = vld [vmem:[#allocation4 + $0x61] sm:$0xff]
        %v3836 = vld [vmem:[#allocation4 + $0x71] sm:$0xff]
        %v3837 = vld [vmem:[#allocation4 + $0x2] sm:$0xff]
        %v3838 = vld [vmem:[#allocation4 + $0x12] sm:$0xff]
        %v3839 = vld [vmem:[#allocation4 + $0x22] sm:$0xff]
        %v3840 = vld [vmem:[#allocation4 + $0x32] sm:$0xff]
        %v3841 = vld [vmem:[#allocation4 + $0x42] sm:$0xff]
        %v3842 = vld [vmem:[#allocation4 + $0x52] sm:$0xff]
        %v3843 = vld [vmem:[#allocation4 + $0x62] sm:$0xff]
        %v3844 = vld [vmem:[#allocation4 + $0x72] sm:$0xff]
        %v3845 = vld [vmem:[%s3812] sm:$0xff]
        %v3846 = vld [vmem:[%s3812 + $0x10] sm:$0xff]
        %v3847 = vld [vmem:[%s3812 + $0x20] sm:$0xff]
        %v3848 = vld [vmem:[%s3812 + $0x30] sm:$0xff]
        %v3849 = vld [vmem:[%s3812 + $0x40] sm:$0xff]
        %v3850 = vld [vmem:[%s3812 + $0x50] sm:$0xff]
        %v3851 = vld [vmem:[%s3812 + $0x60] sm:$0xff]
        %v3852 = vld [vmem:[%s3812 + $0x70] sm:$0xff]
        %v3853 = vld [vmem:[%s3812 + $0x1] sm:$0xff]
        %v3854 = vld [vmem:[%s3812 + $0x11] sm:$0xff]
        %v3855 = vld [vmem:[%s3812 + $0x21] sm:$0xff]
        %v3856 = vld [vmem:[%s3812 + $0x31] sm:$0xff]
        %v3857 = vld [vmem:[%s3812 + $0x41] sm:$0xff]
        %v3858 = vld [vmem:[%s3812 + $0x51] sm:$0xff]
        %v3859 = vld [vmem:[%s3812 + $0x61] sm:$0xff]
        %v3860 = vld [vmem:[%s3812 + $0x71] sm:$0xff]
        %v3861 = vld [vmem:[%s3812 + $0x2] sm:$0xff]
        %v3862 = vld [vmem:[%s3812 + $0x12] sm:$0xff]
        %v3863 = vld [vmem:[%s3812 + $0x22] sm:$0xff]
        %v3864 = vld [vmem:[%s3812 + $0x32] sm:$0xff]
        %v3865 = vld [vmem:[%s3812 + $0x42] sm:$0xff]
        %v3866 = vld [vmem:[%s3812 + $0x52] sm:$0xff]
        %v3867 = vld [vmem:[%s3812 + $0x62] sm:$0xff]
        %v3868 = vld [vmem:[%s3812 + $0x72] sm:$0xff]
        %s3869 = scalar_lea.vmem [#allocation4], 32
        %v3870 = vld [vmem:[%s3869] sm:$0xff]
        %v3871 = vld [vmem:[%s3869 + $0x10] sm:$0xff]
        %v3872 = vld [vmem:[%s3869 + $0x20] sm:$0xff]
        %v3873 = vld [vmem:[%s3869 + $0x30] sm:$0xff]
        %v3874 = vld [vmem:[%s3869 + $0x40] sm:$0xff]
        %v3875 = vld [vmem:[%s3869 + $0x50] sm:$0xff]
        %v3876 = vld [vmem:[%s3869 + $0x60] sm:$0xff]
        %v3877 = vld [vmem:[%s3869 + $0x70] sm:$0xff]
        %v3878 = vld [vmem:[%s3869 + $0x1] sm:$0xff]
        %v3879 = vld [vmem:[%s3869 + $0x11] sm:$0xff]
        %v3880 = vld [vmem:[%s3869 + $0x21] sm:$0xff]
        %v3881 = vld [vmem:[%s3869 + $0x31] sm:$0xff]
        %v3882 = vld [vmem:[%s3869 + $0x41] sm:$0xff]
        %v3883 = vld [vmem:[%s3869 + $0x51] sm:$0xff]
        %v3884 = vld [vmem:[%s3869 + $0x61] sm:$0xff]
        %v3885 = vld [vmem:[%s3869 + $0x71] sm:$0xff]
        %v3886 = vld [vmem:[%s3869 + $0x2] sm:$0xff]
        %v3887 = vld [vmem:[%s3869 + $0x12] sm:$0xff]
        %v3888 = vld [vmem:[%s3869 + $0x22] sm:$0xff]
        %v3889 = vld [vmem:[%s3869 + $0x32] sm:$0xff]
        %v3890 = vld [vmem:[%s3869 + $0x42] sm:$0xff]
        %v3891 = vld [vmem:[%s3869 + $0x52] sm:$0xff]
        %v3892 = vld [vmem:[%s3869 + $0x62] sm:$0xff]
        %v3893 = vld [vmem:[%s3869 + $0x72] sm:$0xff]
        %v3894 = vpack.c.bf16 %v3822, %v3821
        %v3895 = vpack.c.bf16 %v3830, %v3829
        %v3896 = vpack.c.bf16 %v3838, %v3837
        %v3897 = vpack.c.bf16 %v3846, %v3845
        %v3898 = vpack.c.bf16 %v3854, %v3853
        %v3899 = vpack.c.bf16 %v3862, %v3861
        %v3900 = vpack.c.bf16 %v3871, %v3870
        %v3901 = vpack.c.bf16 %v3879, %v3878
        %v3902 = vpack.c.bf16 %v3887, %v3886
        %v3903 = vpack.c.bf16 %v3824, %v3823
        %v3904 = vpack.c.bf16 %v3832, %v3831
        %v3905 = vpack.c.bf16 %v3840, %v3839
        %v3906 = vpack.c.bf16 %v3848, %v3847
        %v3907 = vpack.c.bf16 %v3856, %v3855
        %v3908 = vpack.c.bf16 %v3864, %v3863
        %v3909 = vpack.c.bf16 %v3873, %v3872
        %v3910 = vpack.c.bf16 %v3881, %v3880
        %v3911 = vpack.c.bf16 %v3889, %v3888
        %v3912 = vpack.c.bf16 %v3826, %v3825
        %v3913 = vpack.c.bf16 %v3834, %v3833
        %v3914 = vpack.c.bf16 %v3842, %v3841
        %v3915 = vpack.c.bf16 %v3850, %v3849
        %v3916 = vpack.c.bf16 %v3858, %v3857
        %v3917 = vpack.c.bf16 %v3866, %v3865
        %v3918 = vpack.c.bf16 %v3875, %v3874
        %v3919 = vpack.c.bf16 %v3883, %v3882
        %v3920 = vpack.c.bf16 %v3891, %v3890
        %v3921 = vpack.c.bf16 %v3828, %v3827
        %v3922 = vpack.c.bf16 %v3836, %v3835
        %v3923 = vpack.c.bf16 %v3844, %v3843
        %v3924 = vpack.c.bf16 %v3852, %v3851
        %v3925 = vpack.c.bf16 %v3860, %v3859
        %v3926 = vpack.c.bf16 %v3868, %v3867
        %v3927 = vpack.c.bf16 %v3877, %v3876
        %v3928 = vpack.c.bf16 %v3885, %v3884
        %v3929 = vpack.c.bf16 %v3893, %v3892
        %v3930 = vld [vmem:[%s3] sm:$0xf]
        %v3931 = vld [vmem:[%s3 + $0x4] sm:$0xf]
        %v3932 = vld [vmem:[%s3 + $0x8] sm:$0xf]
        %v3933 = vld [vmem:[%s3 + $0xc] sm:$0xf]
        %v3934 = vld [vmem:[%s3 + $0x10] sm:$0xf]
        %v3935 = vld [vmem:[%s3 + $0x14] sm:$0xf]
        %v3936 = vld [vmem:[%s3 + $0x18] sm:$0xf]
        %v3937 = vld [vmem:[%s3 + $0x1c] sm:$0xf]
        %v3938 = vld [vmem:[%s3 + $0x20] sm:$0xf]
        %v3939 = vld [vmem:[%s3 + $0x24] sm:$0xf]
        %v3940 = vld [vmem:[%s3 + $0x28] sm:$0xf]
        %v3941 = vld [vmem:[%s3 + $0x2c] sm:$0xf]
        %v3942 = vld [vmem:[%s3 + $0x30] sm:$0xf]
        %v3943 = vld [vmem:[%s3 + $0x34] sm:$0xf]
        %v3944 = vld [vmem:[%s3 + $0x38] sm:$0xf]
        %v3945 = vld [vmem:[%s3 + $0x3c] sm:$0xf]
        %v3946 = vld [vmem:[%s3 + $0x40] sm:$0xf]
        %v3947 = vld [vmem:[%s3 + $0x44] sm:$0xf]
        %v3948 = vld [vmem:[%s3 + $0x48] sm:$0xf]
        %v3949 = vld [vmem:[%s3 + $0x4c] sm:$0xf]
        %v3950 = vld [vmem:[%s3 + $0x50] sm:$0xf]
        %v3951 = vld [vmem:[%s3 + $0x54] sm:$0xf]
        %v3952 = vld [vmem:[%s3 + $0x58] sm:$0xf]
        %v3953 = vld [vmem:[%s3 + $0x5c] sm:$0xf]
        %v3954 = vld [vmem:[%s3 + $0x60] sm:$0xf]
        %v3955 = vld [vmem:[%s3 + $0x64] sm:$0xf]
        %v3956 = vld [vmem:[%s3 + $0x68] sm:$0xf]
        %v3957 = vld [vmem:[%s3 + $0x6c] sm:$0xf]
        %v3958 = vld [vmem:[%s3 + $0x70] sm:$0xf]
        %v3959 = vld [vmem:[%s3 + $0x74] sm:$0xf]
        %v3960 = vld [vmem:[%s3 + $0x78] sm:$0xf]
        %v3961 = vld [vmem:[%s3 + $0x7c] sm:$0xf]
        %v3962 = vld [vmem:[%s3 + $0x80] sm:$0xf]
        %v3963 = vld [vmem:[%s3 + $0x84] sm:$0xf]
        %v3964 = vld [vmem:[%s3 + $0x88] sm:$0xf]
        %v3965 = vld [vmem:[%s3 + $0x8c] sm:$0xf]
        %v3966 = vld [vmem:[%s3 + $0x90] sm:$0xf]
        %v3967 = vld [vmem:[%s3 + $0x94] sm:$0xf]
        %v3968 = vld [vmem:[%s3 + $0x98] sm:$0xf]
        %v3969 = vld [vmem:[%s3 + $0x9c] sm:$0xf]
        %v3970 = vld [vmem:[%s3 + $0xa0] sm:$0xf]
        %v3971 = vld [vmem:[%s3 + $0xa4] sm:$0xf]
        %v3972 = vld [vmem:[%s3 + $0xa8] sm:$0xf]
        %v3973 = vld [vmem:[%s3 + $0xac] sm:$0xf]
        %v3974 = vld [vmem:[%s3 + $0xb0] sm:$0xf]
        %v3975 = vld [vmem:[%s3 + $0xb4] sm:$0xf]
        %v3976 = vld [vmem:[%s3 + $0xb8] sm:$0xf]
        %v3977 = vld [vmem:[%s3 + $0xbc] sm:$0xf]
        %v3978 = vld [vmem:[%s3 + $0xc0] sm:$0xf]
        %v3979 = vld [vmem:[%s3 + $0xc4] sm:$0xf]
        %v3980 = vld [vmem:[%s3 + $0xc8] sm:$0xf]
        %v3981 = vld [vmem:[%s3 + $0xcc] sm:$0xf]
        %v3982 = vld [vmem:[%s3 + $0xd0] sm:$0xf]
        %v3983 = vld [vmem:[%s3 + $0xd4] sm:$0xf]
        %v3984 = vld [vmem:[%s3 + $0xd8] sm:$0xf]
        %v3985 = vld [vmem:[%s3 + $0xdc] sm:$0xf]
        %v3986 = vld [vmem:[%s3 + $0xe0] sm:$0xf]
        %v3987 = vld [vmem:[%s3 + $0xe4] sm:$0xf]
        %v3988 = vld [vmem:[%s3 + $0xe8] sm:$0xf]
        %v3989 = vld [vmem:[%s3 + $0xec] sm:$0xf]
        %v3990 = vld [vmem:[%s3 + $0xf0] sm:$0xf]
        %v3991 = vld [vmem:[%s3 + $0xf4] sm:$0xf]
        %v3992 = vld [vmem:[%s3 + $0xf8] sm:$0xf]
        %v3993 = vld [vmem:[%s3 + $0xfc] sm:$0xf]
        %v3994 = vld [vmem:[%s3 + $0x100] sm:$0xf]
        %v3995 = vld [vmem:[%s3 + $0x104] sm:$0xf]
        %v3996 = vld [vmem:[%s3 + $0x108] sm:$0xf]
        %v3997 = vld [vmem:[%s3 + $0x10c] sm:$0xf]
        %v3998 = vld [vmem:[%s3 + $0x110] sm:$0xf]
        %v3999 = vld [vmem:[%s3 + $0x114] sm:$0xf]
        %v4000 = vld [vmem:[%s3 + $0x118] sm:$0xf]
        %v4001 = vld [vmem:[%s3 + $0x11c] sm:$0xf]
        %v4002 = vld [vmem:[%s3 + $0x120] sm:$0xf]
        %v4003 = vld [vmem:[%s3 + $0x124] sm:$0xf]
        %v4004 = vld [vmem:[%s3 + $0x128] sm:$0xf]
        %v4005 = vld [vmem:[%s3 + $0x12c] sm:$0xf]
        %v4006 = vld [vmem:[%s3 + $0x130] sm:$0xf]
        %v4007 = vld [vmem:[%s3 + $0x134] sm:$0xf]
        %v4008 = vld [vmem:[%s3 + $0x138] sm:$0xf]
        %v4009 = vld [vmem:[%s3 + $0x13c] sm:$0xf]
        %v4010 = vld [vmem:[%s3 + $0x140] sm:$0xf]
        %v4011 = vld [vmem:[%s3 + $0x144] sm:$0xf]
        %v4012 = vld [vmem:[%s3 + $0x148] sm:$0xf]
        %v4013 = vld [vmem:[%s3 + $0x14c] sm:$0xf]
        %v4014 = vld [vmem:[%s3 + $0x150] sm:$0xf]
        %v4015 = vld [vmem:[%s3 + $0x154] sm:$0xf]
        %v4016 = vld [vmem:[%s3 + $0x158] sm:$0xf]
        %v4017 = vld [vmem:[%s3 + $0x15c] sm:$0xf]
        %v4018 = vld [vmem:[%s3 + $0x160] sm:$0xf]
        %v4019 = vld [vmem:[%s3 + $0x164] sm:$0xf]
        %v4020 = vld [vmem:[%s3 + $0x168] sm:$0xf]
        %v4021 = vld [vmem:[%s3 + $0x16c] sm:$0xf]
        %v4022 = vld [vmem:[%s3 + $0x170] sm:$0xf]
        %v4023 = vld [vmem:[%s3 + $0x174] sm:$0xf]
        %v4024 = vld [vmem:[%s3 + $0x178] sm:$0xf]
        %v4025 = vld [vmem:[%s3 + $0x17c] sm:$0xf]
        %v4026 = vld [vmem:[%s3 + $0x180] sm:$0xf]
        %v4027 = vld [vmem:[%s3 + $0x184] sm:$0xf]
        %v4028 = vld [vmem:[%s3 + $0x188] sm:$0xf]
        %v4029 = vld [vmem:[%s3 + $0x18c] sm:$0xf]
        %v4030 = vld [vmem:[%s3 + $0x190] sm:$0xf]
        %v4031 = vld [vmem:[%s3 + $0x194] sm:$0xf]
        %v4032 = vld [vmem:[%s3 + $0x198] sm:$0xf]
        %v4033 = vld [vmem:[%s3 + $0x19c] sm:$0xf]
        %v4034 = vld [vmem:[%s3 + $0x1a0] sm:$0xf]
        %v4035 = vld [vmem:[%s3 + $0x1a4] sm:$0xf]
        %v4036 = vld [vmem:[%s3 + $0x1a8] sm:$0xf]
        %v4037 = vld [vmem:[%s3 + $0x1ac] sm:$0xf]
        %v4038 = vld [vmem:[%s3 + $0x1b0] sm:$0xf]
        %v4039 = vld [vmem:[%s3 + $0x1b4] sm:$0xf]
        %v4040 = vld [vmem:[%s3 + $0x1b8] sm:$0xf]
        %v4041 = vld [vmem:[%s3 + $0x1bc] sm:$0xf]
        %v4042 = vld [vmem:[%s3 + $0x1c0] sm:$0xf]
        %v4043 = vld [vmem:[%s3 + $0x1c4] sm:$0xf]
        %v4044 = vld [vmem:[%s3 + $0x1c8] sm:$0xf]
        %v4045 = vld [vmem:[%s3 + $0x1cc] sm:$0xf]
        %v4046 = vld [vmem:[%s3 + $0x1d0] sm:$0xf]
        %v4047 = vld [vmem:[%s3 + $0x1d4] sm:$0xf]
        %v4048 = vld [vmem:[%s3 + $0x1d8] sm:$0xf]
        %v4049 = vld [vmem:[%s3 + $0x1dc] sm:$0xf]
        %v4050 = vld [vmem:[%s3 + $0x1e0] sm:$0xf]
        %v4051 = vld [vmem:[%s3 + $0x1e4] sm:$0xf]
        %v4052 = vld [vmem:[%s3 + $0x1e8] sm:$0xf]
        %v4053 = vld [vmem:[%s3 + $0x1ec] sm:$0xf]
        %v4054 = vld [vmem:[%s3 + $0x1f0] sm:$0xf]
        %v4055 = vld [vmem:[%s3 + $0x1f4] sm:$0xf]
        %v4056 = vld [vmem:[%s3 + $0x1f8] sm:$0xf]
        %v4057 = vld [vmem:[%s3 + $0x1fc] sm:$0xf]
        %v4058 = vld [vmem:[%s3 + $0x200] sm:$0xf]
        %v4059 = vld [vmem:[%s3 + $0x204] sm:$0xf]
        %v4060 = vld [vmem:[%s3 + $0x208] sm:$0xf]
        %v4061 = vld [vmem:[%s3 + $0x20c] sm:$0xf]
        %v4062 = vld [vmem:[%s3 + $0x210] sm:$0xf]
        %v4063 = vld [vmem:[%s3 + $0x214] sm:$0xf]
        %v4064 = vld [vmem:[%s3 + $0x218] sm:$0xf]
        %v4065 = vld [vmem:[%s3 + $0x21c] sm:$0xf]
        %v4066 = vld [vmem:[%s3 + $0x220] sm:$0xf]
        %v4067 = vld [vmem:[%s3 + $0x224] sm:$0xf]
        %v4068 = vld [vmem:[%s3 + $0x228] sm:$0xf]
        %v4069 = vld [vmem:[%s3 + $0x22c] sm:$0xf]
        %v4070 = vld [vmem:[%s3 + $0x230] sm:$0xf]
        %v4071 = vld [vmem:[%s3 + $0x234] sm:$0xf]
        %v4072 = vld [vmem:[%s3 + $0x238] sm:$0xf]
        %v4073 = vld [vmem:[%s3 + $0x23c] sm:$0xf]
        %v4218 = vunpack.c.l.b16 %v3930
        %v4219 = vunpack.c.l.b16 %v3931
        %v4220 = vunpack.c.l.b16 %v3932
        %v4221 = vunpack.c.l.b16 %v3933
        %v4222 = vunpack.c.l.b16 %v3934
        %v4223 = vunpack.c.l.b16 %v3935
        %v4224 = vunpack.c.l.b16 %v3936
        %v4225 = vunpack.c.l.b16 %v3937
        %v4226 = vunpack.c.l.b16 %v3938
        %v4227 = vunpack.c.l.b16 %v3939
        %v4228 = vunpack.c.l.b16 %v3940
        %v4229 = vunpack.c.l.b16 %v3941
        %v4230 = vunpack.c.l.b16 %v3942
        %v4231 = vunpack.c.l.b16 %v3943
        %v4232 = vunpack.c.l.b16 %v3944
        %v4233 = vunpack.c.l.b16 %v3945
        %v4234 = vunpack.c.l.b16 %v3946
        %v4235 = vunpack.c.l.b16 %v3947
        %v4236 = vunpack.c.l.b16 %v3948
        %v4237 = vunpack.c.l.b16 %v3949
        %v4238 = vunpack.c.l.b16 %v3950
        %v4239 = vunpack.c.l.b16 %v3951
        %v4240 = vunpack.c.l.b16 %v3952
        %v4241 = vunpack.c.l.b16 %v3953
        %v4242 = vunpack.c.l.b16 %v3954
        %v4243 = vunpack.c.l.b16 %v3955
        %v4244 = vunpack.c.l.b16 %v3956
        %v4245 = vunpack.c.l.b16 %v3957
        %v4246 = vunpack.c.l.b16 %v3958
        %v4247 = vunpack.c.l.b16 %v3959
        %v4248 = vunpack.c.l.b16 %v3960
        %v4249 = vunpack.c.l.b16 %v3961
        %v4250 = vunpack.c.l.b16 %v3962
        %v4251 = vunpack.c.l.b16 %v3963
        %v4252 = vunpack.c.l.b16 %v3964
        %v4253 = vunpack.c.l.b16 %v3965
        %v4254 = vunpack.c.l.b16 %v3966
        %v4255 = vunpack.c.l.b16 %v3967
        %v4256 = vunpack.c.l.b16 %v3968
        %v4257 = vunpack.c.l.b16 %v3969
        %v4258 = vunpack.c.l.b16 %v3970
        %v4259 = vunpack.c.l.b16 %v3971
        %v4260 = vunpack.c.l.b16 %v3972
        %v4261 = vunpack.c.l.b16 %v3973
        %v4262 = vunpack.c.l.b16 %v3974
        %v4263 = vunpack.c.l.b16 %v3975
        %v4264 = vunpack.c.l.b16 %v3976
        %v4265 = vunpack.c.l.b16 %v3977
        %v4266 = vunpack.c.l.b16 %v3978
        %v4267 = vunpack.c.l.b16 %v3979
        %v4268 = vunpack.c.l.b16 %v3980
        %v4269 = vunpack.c.l.b16 %v3981
        %v4270 = vunpack.c.l.b16 %v3982
        %v4271 = vunpack.c.l.b16 %v3983
        %v4272 = vunpack.c.l.b16 %v3984
        %v4273 = vunpack.c.l.b16 %v3985
        %v4274 = vunpack.c.l.b16 %v3986
        %v4275 = vunpack.c.l.b16 %v3987
        %v4276 = vunpack.c.l.b16 %v3988
        %v4277 = vunpack.c.l.b16 %v3989
        %v4278 = vunpack.c.l.b16 %v3990
        %v4279 = vunpack.c.l.b16 %v3991
        %v4280 = vunpack.c.l.b16 %v3992
        %v4281 = vunpack.c.l.b16 %v3993
        %v4282 = vunpack.c.l.b16 %v3994
        %v4283 = vunpack.c.l.b16 %v3995
        %v4284 = vunpack.c.l.b16 %v3996
        %v4285 = vunpack.c.l.b16 %v3997
        %v4286 = vunpack.c.l.b16 %v3998
        %v4287 = vunpack.c.l.b16 %v3999
        %v4288 = vunpack.c.l.b16 %v4000
        %v4289 = vunpack.c.l.b16 %v4001
        %v4290 = vunpack.c.l.b16 %v4002
        %v4291 = vunpack.c.l.b16 %v4003
        %v4292 = vunpack.c.l.b16 %v4004
        %v4293 = vunpack.c.l.b16 %v4005
        %v4294 = vunpack.c.l.b16 %v4006
        %v4295 = vunpack.c.l.b16 %v4007
        %v4296 = vunpack.c.l.b16 %v4008
        %v4297 = vunpack.c.l.b16 %v4009
        %v4298 = vunpack.c.l.b16 %v4010
        %v4299 = vunpack.c.l.b16 %v4011
        %v4300 = vunpack.c.l.b16 %v4012
        %v4301 = vunpack.c.l.b16 %v4013
        %v4302 = vunpack.c.l.b16 %v4014
        %v4303 = vunpack.c.l.b16 %v4015
        %v4304 = vunpack.c.l.b16 %v4016
        %v4305 = vunpack.c.l.b16 %v4017
        %v4306 = vunpack.c.l.b16 %v4018
        %v4307 = vunpack.c.l.b16 %v4019
        %v4308 = vunpack.c.l.b16 %v4020
        %v4309 = vunpack.c.l.b16 %v4021
        %v4310 = vunpack.c.l.b16 %v4022
        %v4311 = vunpack.c.l.b16 %v4023
        %v4312 = vunpack.c.l.b16 %v4024
        %v4313 = vunpack.c.l.b16 %v4025
        %v4314 = vunpack.c.l.b16 %v4026
        %v4315 = vunpack.c.l.b16 %v4027
        %v4316 = vunpack.c.l.b16 %v4028
        %v4317 = vunpack.c.l.b16 %v4029
        %v4318 = vunpack.c.l.b16 %v4030
        %v4319 = vunpack.c.l.b16 %v4031
        %v4320 = vunpack.c.l.b16 %v4032
        %v4321 = vunpack.c.l.b16 %v4033
        %v4322 = vunpack.c.l.b16 %v4034
        %v4323 = vunpack.c.l.b16 %v4035
        %v4324 = vunpack.c.l.b16 %v4036
        %v4325 = vunpack.c.l.b16 %v4037
        %v4326 = vunpack.c.l.b16 %v4038
        %v4327 = vunpack.c.l.b16 %v4039
        %v4328 = vunpack.c.l.b16 %v4040
        %v4329 = vunpack.c.l.b16 %v4041
        %v4330 = vunpack.c.l.b16 %v4042
        %v4331 = vunpack.c.l.b16 %v4043
        %v4332 = vunpack.c.l.b16 %v4044
        %v4333 = vunpack.c.l.b16 %v4045
        %v4334 = vunpack.c.l.b16 %v4046
        %v4335 = vunpack.c.l.b16 %v4047
        %v4336 = vunpack.c.l.b16 %v4048
        %v4337 = vunpack.c.l.b16 %v4049
        %v4338 = vunpack.c.l.b16 %v4050
        %v4339 = vunpack.c.l.b16 %v4051
        %v4340 = vunpack.c.l.b16 %v4052
        %v4341 = vunpack.c.l.b16 %v4053
        %v4342 = vunpack.c.l.b16 %v4054
        %v4343 = vunpack.c.l.b16 %v4055
        %v4344 = vunpack.c.l.b16 %v4056
        %v4345 = vunpack.c.l.b16 %v4057
        %v4346 = vunpack.c.l.b16 %v4058
        %v4347 = vunpack.c.l.b16 %v4059
        %v4348 = vunpack.c.l.b16 %v4060
        %v4349 = vunpack.c.l.b16 %v4061
        %v4350 = vunpack.c.l.b16 %v4062
        %v4351 = vunpack.c.l.b16 %v4063
        %v4352 = vunpack.c.l.b16 %v4064
        %v4353 = vunpack.c.l.b16 %v4065
        %v4354 = vunpack.c.l.b16 %v4066
        %v4355 = vunpack.c.l.b16 %v4067
        %v4356 = vunpack.c.l.b16 %v4068
        %v4357 = vunpack.c.l.b16 %v4069
        %v4358 = vunpack.c.l.b16 %v4070
        %v4359 = vunpack.c.l.b16 %v4071
        %v4360 = vunpack.c.l.b16 %v4072
        %v4361 = vunpack.c.l.b16 %v4073
        %v4362 = vpack.c.b16 %v4219, %v4218
        %v4363 = vpack.c.b16 %v4221, %v4220
        %v4364 = vpack.c.b16 %v4223, %v4222
        %v4365 = vpack.c.b16 %v4225, %v4224
        %v4366 = vpack.c.b16 %v4227, %v4226
        %v4367 = vpack.c.b16 %v4229, %v4228
        %v4368 = vpack.c.b16 %v4231, %v4230
        %v4369 = vpack.c.b16 %v4233, %v4232
        %v4370 = vpack.c.b16 %v4235, %v4234
        %v4371 = vpack.c.b16 %v4237, %v4236
        %v4372 = vpack.c.b16 %v4239, %v4238
        %v4373 = vpack.c.b16 %v4241, %v4240
        %v4374 = vpack.c.b16 %v4243, %v4242
        %v4375 = vpack.c.b16 %v4245, %v4244
        %v4376 = vpack.c.b16 %v4247, %v4246
        %v4377 = vpack.c.b16 %v4249, %v4248
        %v4378 = vpack.c.b16 %v4251, %v4250
        %v4379 = vpack.c.b16 %v4253, %v4252
        %v4380 = vpack.c.b16 %v4255, %v4254
        %v4381 = vpack.c.b16 %v4257, %v4256
        %v4382 = vpack.c.b16 %v4259, %v4258
        %v4383 = vpack.c.b16 %v4261, %v4260
        %v4384 = vpack.c.b16 %v4263, %v4262
        %v4385 = vpack.c.b16 %v4265, %v4264
        %v4386 = vpack.c.b16 %v4267, %v4266
        %v4387 = vpack.c.b16 %v4269, %v4268
        %v4388 = vpack.c.b16 %v4271, %v4270
        %v4389 = vpack.c.b16 %v4273, %v4272
        %v4390 = vpack.c.b16 %v4275, %v4274
        %v4391 = vpack.c.b16 %v4277, %v4276
        %v4392 = vpack.c.b16 %v4279, %v4278
        %v4393 = vpack.c.b16 %v4281, %v4280
        %v4394 = vpack.c.b16 %v4283, %v4282
        %v4395 = vpack.c.b16 %v4285, %v4284
        %v4396 = vpack.c.b16 %v4287, %v4286
        %v4397 = vpack.c.b16 %v4289, %v4288
        %v4398 = vpack.c.b16 %v4291, %v4290
        %v4399 = vpack.c.b16 %v4293, %v4292
        %v4400 = vpack.c.b16 %v4295, %v4294
        %v4401 = vpack.c.b16 %v4297, %v4296
        %v4402 = vpack.c.b16 %v4299, %v4298
        %v4403 = vpack.c.b16 %v4301, %v4300
        %v4404 = vpack.c.b16 %v4303, %v4302
        %v4405 = vpack.c.b16 %v4305, %v4304
        %v4406 = vpack.c.b16 %v4307, %v4306
        %v4407 = vpack.c.b16 %v4309, %v4308
        %v4408 = vpack.c.b16 %v4311, %v4310
        %v4409 = vpack.c.b16 %v4313, %v4312
        %v4410 = vpack.c.b16 %v4315, %v4314
        %v4411 = vpack.c.b16 %v4317, %v4316
        %v4412 = vpack.c.b16 %v4319, %v4318
        %v4413 = vpack.c.b16 %v4321, %v4320
        %v4414 = vpack.c.b16 %v4323, %v4322
        %v4415 = vpack.c.b16 %v4325, %v4324
        %v4416 = vpack.c.b16 %v4327, %v4326
        %v4417 = vpack.c.b16 %v4329, %v4328
        %v4418 = vpack.c.b16 %v4331, %v4330
        %v4419 = vpack.c.b16 %v4333, %v4332
        %v4420 = vpack.c.b16 %v4335, %v4334
        %v4421 = vpack.c.b16 %v4337, %v4336
        %v4422 = vpack.c.b16 %v4339, %v4338
        %v4423 = vpack.c.b16 %v4341, %v4340
        %v4424 = vpack.c.b16 %v4343, %v4342
        %v4425 = vpack.c.b16 %v4345, %v4344
        %v4426 = vpack.c.b16 %v4347, %v4346
        %v4427 = vpack.c.b16 %v4349, %v4348
        %v4428 = vpack.c.b16 %v4351, %v4350
        %v4429 = vpack.c.b16 %v4353, %v4352
        %v4430 = vpack.c.b16 %v4355, %v4354
        %v4431 = vpack.c.b16 %v4357, %v4356
        %v4432 = vpack.c.b16 %v4359, %v4358
        %v4433 = vpack.c.b16 %v4361, %v4360
        %4506 = vmatprep.subr.bf16.mxu0 0
        %4507 = vmatpush1.bf16.msra.mxu0 %v4362
        %4508 = vmatprep.subr.bf16.mxu0 0
        %4509 = vmatpush1.bf16.msra.mxu0 %v4363
        %4510 = vmatprep.subr.bf16.mxu0 0
        %4511 = vmatpush1.bf16.msra.mxu0 %v4364
        %4512 = vmatprep.subr.bf16.mxu0 0
        %4513 = vmatpush1.bf16.msra.mxu0 %v4365
        %4514 = vmatprep.subr.bf16.mxu0 0
        %4515 = vmatpush1.bf16.msra.mxu0 %v4366
        %4516 = vmatprep.subr.bf16.mxu0 0
        %4517 = vmatpush1.bf16.msra.mxu0 %v4367
        %4518 = vmatprep.subr.bf16.mxu0 0
        %4519 = vmatpush1.bf16.msra.mxu0 %v4368
        %4520 = vmatprep.subr.bf16.mxu0 0
        %4521 = vmatpush1.bf16.msra.mxu0 %v4369
        %4522 = vmatprep.subr.bf16.mxu0 0
        %4523 = vmatpush1.bf16.msra.mxu0 %v4370
        %4524 = vmatprep.subr.bf16.mxu0 0
        %4525 = vmatpush1.bf16.msra.mxu0 %v4371
        %4526 = vmatprep.subr.bf16.mxu0 0
        %4527 = vmatpush1.bf16.msra.mxu0 %v4372
        %4528 = vmatprep.subr.bf16.mxu0 0
        %4529 = vmatpush1.bf16.msra.mxu0 %v4373
        %4530 = vmatprep.subr.bf16.mxu0 0
        %4531 = vmatpush1.bf16.msra.mxu0 %v4374
        %4532 = vmatprep.subr.bf16.mxu0 0
        %4533 = vmatpush1.bf16.msra.mxu0 %v4375
        %4534 = vmatprep.subr.bf16.mxu0 0
        %4535 = vmatpush1.bf16.msra.mxu0 %v4376
        %4536 = vmatprep.subr.bf16.mxu0 0
        %4537 = vmatpush1.bf16.msra.mxu0 %v4377
        %4538 = vmatprep.mubr.bf16.mxu0 %v3895
        %4539 = vmatmul.mubr.bf16.gmra.mrb[0].mxu0 %v3894
        %v4540 = vpop.f32.mrb[0].mxu0
        %v4541 = vadd.f32 0.0, %v4540
        %v4542 = vpop.f32.mrb[0].mxu0
        %v4543 = vpop.f32.mrb[0].mxu0
        %v4544 = vadd.f32 0.0, %v4543
        %v4545 = vpop.f32.mrb[0].mxu0
        %4546 = vmatprep.mubr.bf16.mxu0 %v3904
        %4547 = vmatmul.mubr.bf16.gmra.mrb[0].mxu0 %v3903
        %v4548 = vpop.f32.mrb[0].mxu0
        %v4549 = vadd.f32 0.0, %v4548
        %v4550 = vpop.f32.mrb[0].mxu0
        %v4551 = vpop.f32.mrb[0].mxu0
        %v4552 = vadd.f32 0.0, %v4551
        %v4553 = vpop.f32.mrb[0].mxu0
        %4554 = vmatprep.mubr.bf16.mxu0 %v3913
        %4555 = vmatmul.mubr.bf16.gmra.mrb[0].mxu0 %v3912
        %v4556 = vpop.f32.mrb[0].mxu0
        %v4557 = vadd.f32 0.0, %v4556
        %v4558 = vpop.f32.mrb[0].mxu0
        %v4559 = vpop.f32.mrb[0].mxu0
        %v4560 = vadd.f32 0.0, %v4559
        %v4561 = vpop.f32.mrb[0].mxu0
        %4562 = vmatprep.mubr.bf16.mxu0 %v3922
        %4563 = vmatmul.mubr.bf16.gmra.mrb[0].mxu0 %v3921
        %v4564 = vpop.f32.mrb[0].mxu0
        %v4565 = vadd.f32 0.0, %v4564
        %v4566 = vpop.f32.mrb[0].mxu0
        %v4567 = vpop.f32.mrb[0].mxu0
        %v4568 = vadd.f32 0.0, %v4567
        %v4569 = vpop.f32.mrb[0].mxu0
        %4570 = vdwg.mxu0
        %4571 = vmatprep.subr.bf16.mxu0 0
        %4572 = vmatpush1.bf16.msra.mxu0 %v4378
        %4573 = vmatprep.subr.bf16.mxu0 0
        %4574 = vmatpush1.bf16.msra.mxu0 %v4379
        %4575 = vmatprep.subr.bf16.mxu0 0
        %4576 = vmatpush1.bf16.msra.mxu0 %v4380
        %4577 = vmatprep.subr.bf16.mxu0 0
        %4578 = vmatpush1.bf16.msra.mxu0 %v4381
        %4579 = vmatprep.subr.bf16.mxu0 0
        %4580 = vmatpush1.bf16.msra.mxu0 %v4382
        %4581 = vmatprep.subr.bf16.mxu0 0
        %4582 = vmatpush1.bf16.msra.mxu0 %v4383
        %4583 = vmatprep.subr.bf16.mxu0 0
        %4584 = vmatpush1.bf16.msra.mxu0 %v4384
        %4585 = vmatprep.subr.bf16.mxu0 0
        %4586 = vmatpush1.bf16.msra.mxu0 %v4385
        %4587 = vmatprep.subr.bf16.mxu0 0
        %4588 = vmatpush1.bf16.msra.mxu0 %v4386
        %4589 = vmatprep.subr.bf16.mxu0 0
        %4590 = vmatpush1.bf16.msra.mxu0 %v4387
        %4591 = vmatprep.subr.bf16.mxu0 0
        %4592 = vmatpush1.bf16.msra.mxu0 %v4388
        %4593 = vmatprep.subr.bf16.mxu0 0
        %4594 = vmatpush1.bf16.msra.mxu0 %v4389
        %4595 = vmatprep.subr.bf16.mxu0 0
        %4596 = vmatpush1.bf16.msra.mxu0 %v4390
        %4597 = vmatprep.subr.bf16.mxu0 0
        %4598 = vmatpush1.bf16.msra.mxu0 %v4391
        %4599 = vmatprep.subr.bf16.mxu0 0
        %4600 = vmatpush1.bf16.msra.mxu0 %v4392
        %4601 = vmatprep.subr.bf16.mxu0 0
        %4602 = vmatpush1.bf16.msra.mxu0 %v4393
        %4603 = vmatprep.mubr.bf16.mxu0 %v3897
        %4604 = vmatmul.mubr.bf16.gmra.mrb[0].mxu0 %v3896
        %v4605 = vpop.f32.mrb[0].mxu0
        %v4606 = vadd.f32 %v4541, %v4605
        %v4607 = vpop.f32.mrb[0].mxu0
        %v4608 = vpop.f32.mrb[0].mxu0
        %v4609 = vadd.f32 %v4544, %v4608
        %v4610 = vpop.f32.mrb[0].mxu0
        %4611 = vmatprep.mubr.bf16.mxu0 %v3906
        %4612 = vmatmul.mubr.bf16.gmra.mrb[0].mxu0 %v3905
        %v4613 = vpop.f32.mrb[0].mxu0
        %v4614 = vadd.f32 %v4549, %v4613
        %v4615 = vpop.f32.mrb[0].mxu0
        %v4616 = vpop.f32.mrb[0].mxu0
        %v4617 = vadd.f32 %v4552, %v4616
        %v4618 = vpop.f32.mrb[0].mxu0
        %4619 = vmatprep.mubr.bf16.mxu0 %v3915
        %4620 = vmatmul.mubr.bf16.gmra.mrb[0].mxu0 %v3914
        %v4621 = vpop.f32.mrb[0].mxu0
        %v4622 = vadd.f32 %v4557, %v4621
        %v4623 = vpop.f32.mrb[0].mxu0
        %v4624 = vpop.f32.mrb[0].mxu0
        %v4625 = vadd.f32 %v4560, %v4624
        %v4626 = vpop.f32.mrb[0].mxu0
        %4627 = vmatprep.mubr.bf16.mxu0 %v3924
        %4628 = vmatmul.mubr.bf16.gmra.mrb[0].mxu0 %v3923
        %v4629 = vpop.f32.mrb[0].mxu0
        %v4630 = vadd.f32 %v4565, %v4629
        %v4631 = vpop.f32.mrb[0].mxu0
        %v4632 = vpop.f32.mrb[0].mxu0
        %v4633 = vadd.f32 %v4568, %v4632
        %v4634 = vpop.f32.mrb[0].mxu0
        %4635 = vdwg.mxu0
        %4636 = vmatprep.subr.bf16.mxu0 0
        %4637 = vmatpush1.bf16.msra.mxu0 %v4394
        %4638 = vmatprep.subr.bf16.mxu0 0
        %4639 = vmatpush1.bf16.msra.mxu0 %v4395
        %4640 = vmatprep.subr.bf16.mxu0 0
        %4641 = vmatpush1.bf16.msra.mxu0 %v4396
        %4642 = vmatprep.subr.bf16.mxu0 0
        %4643 = vmatpush1.bf16.msra.mxu0 %v4397
        %4644 = vmatprep.subr.bf16.mxu0 0
        %4645 = vmatpush1.bf16.msra.mxu0 %v4398
        %4646 = vmatprep.subr.bf16.mxu0 0
        %4647 = vmatpush1.bf16.msra.mxu0 %v4399
        %4648 = vmatprep.subr.bf16.mxu0 0
        %4649 = vmatpush1.bf16.msra.mxu0 %v4400
        %4650 = vmatprep.subr.bf16.mxu0 0
        %4651 = vmatpush1.bf16.msra.mxu0 %v4401
        %4652 = vmatprep.subr.bf16.mxu0 0
        %4653 = vmatpush1.bf16.msra.mxu0 %v4402
        %4654 = vmatprep.subr.bf16.mxu0 0
        %4655 = vmatpush1.bf16.msra.mxu0 %v4403
        %4656 = vmatprep.subr.bf16.mxu0 0
        %4657 = vmatpush1.bf16.msra.mxu0 %v4404
        %4658 = vmatprep.subr.bf16.mxu0 0
        %4659 = vmatpush1.bf16.msra.mxu0 %v4405
        %4660 = vmatprep.subr.bf16.mxu0 0
        %4661 = vmatpush1.bf16.msra.mxu0 %v4406
        %4662 = vmatprep.subr.bf16.mxu0 0
        %4663 = vmatpush1.bf16.msra.mxu0 %v4407
        %4664 = vmatprep.subr.bf16.mxu0 0
        %4665 = vmatpush1.bf16.msra.mxu0 %v4408
        %4666 = vmatprep.subr.bf16.mxu0 0
        %4667 = vmatpush1.bf16.msra.mxu0 %v4409
        %4668 = vmatprep.mubr.bf16.mxu0 %v3899
        %4669 = vmatmul.mubr.bf16.gmra.mrb[0].mxu0 %v3898
        %v4670 = vpop.f32.mrb[0].mxu0
        %v4671 = vadd.f32 %v4606, %v4670
        %v4672 = vpop.f32.mrb[0].mxu0
        %v4673 = vpop.f32.mrb[0].mxu0
        %v4674 = vadd.f32 %v4609, %v4673
        %v4675 = vpop.f32.mrb[0].mxu0
        %4676 = vmatprep.mubr.bf16.mxu0 %v3908
        %4677 = vmatmul.mubr.bf16.gmra.mrb[0].mxu0 %v3907
        %v4678 = vpop.f32.mrb[0].mxu0
        %v4679 = vadd.f32 %v4614, %v4678
        %v4680 = vpop.f32.mrb[0].mxu0
        %v4681 = vpop.f32.mrb[0].mxu0
        %v4682 = vadd.f32 %v4617, %v4681
        %v4683 = vpop.f32.mrb[0].mxu0
        %4684 = vmatprep.mubr.bf16.mxu0 %v3917
        %4685 = vmatmul.mubr.bf16.gmra.mrb[0].mxu0 %v3916
        %v4686 = vpop.f32.mrb[0].mxu0
        %v4687 = vadd.f32 %v4622, %v4686
        %v4688 = vpop.f32.mrb[0].mxu0
        %v4689 = vpop.f32.mrb[0].mxu0
        %v4690 = vadd.f32 %v4625, %v4689
        %v4691 = vpop.f32.mrb[0].mxu0
        %4692 = vmatprep.mubr.bf16.mxu0 %v3926
        %4693 = vmatmul.mubr.bf16.gmra.mrb[0].mxu0 %v3925
        %v4694 = vpop.f32.mrb[0].mxu0
        %v4695 = vadd.f32 %v4630, %v4694
        %v4696 = vpop.f32.mrb[0].mxu0
        %v4697 = vpop.f32.mrb[0].mxu0
        %v4698 = vadd.f32 %v4633, %v4697
        %v4699 = vpop.f32.mrb[0].mxu0
        %4700 = vdwg.mxu0
        %4701 = vmatprep.subr.bf16.mxu0 0
        %4702 = vmatpush1.bf16.msra.mxu0 %v4410
        %4703 = vmatprep.subr.bf16.mxu0 0
        %4704 = vmatpush1.bf16.msra.mxu0 %v4411
        %4705 = vmatprep.subr.bf16.mxu0 0
        %4706 = vmatpush1.bf16.msra.mxu0 %v4412
        %4707 = vmatprep.subr.bf16.mxu0 0
        %4708 = vmatpush1.bf16.msra.mxu0 %v4413
        %4709 = vmatprep.subr.bf16.mxu0 0
        %4710 = vmatpush1.bf16.msra.mxu0 %v4414
        %4711 = vmatprep.subr.bf16.mxu0 0
        %4712 = vmatpush1.bf16.msra.mxu0 %v4415
        %4713 = vmatprep.subr.bf16.mxu0 0
        %4714 = vmatpush1.bf16.msra.mxu0 %v4416
        %4715 = vmatprep.subr.bf16.mxu0 0
        %4716 = vmatpush1.bf16.msra.mxu0 %v4417
        %4717 = vmatprep.subr.bf16.mxu0 0
        %4718 = vmatpush1.bf16.msra.mxu0 %v4418
        %4719 = vmatprep.subr.bf16.mxu0 0
        %4720 = vmatpush1.bf16.msra.mxu0 %v4419
        %4721 = vmatprep.subr.bf16.mxu0 0
        %4722 = vmatpush1.bf16.msra.mxu0 %v4420
        %4723 = vmatprep.subr.bf16.mxu0 0
        %4724 = vmatpush1.bf16.msra.mxu0 %v4421
        %4725 = vmatprep.subr.bf16.mxu0 0
        %4726 = vmatpush1.bf16.msra.mxu0 %v4422
        %4727 = vmatprep.subr.bf16.mxu0 0
        %4728 = vmatpush1.bf16.msra.mxu0 %v4423
        %4729 = vmatprep.subr.bf16.mxu0 0
        %4730 = vmatpush1.bf16.msra.mxu0 %v4424
        %4731 = vmatprep.subr.bf16.mxu0 0
        %4732 = vmatpush1.bf16.msra.mxu0 %v4425
        %4733 = vmatprep.mubr.bf16.mxu0 %v3901
        %4734 = vmatmul.mubr.bf16.gmra.mrb[0].mxu0 %v3900
        %v4735 = vpop.f32.mrb[0].mxu0
        %v4736 = vadd.f32 %v4671, %v4735
        %v4737 = vpop.f32.mrb[0].mxu0
        %v4738 = vpop.f32.mrb[0].mxu0
        %v4739 = vadd.f32 %v4674, %v4738
        %v4740 = vpop.f32.mrb[0].mxu0
        %4741 = vmatprep.mubr.bf16.mxu0 %v3910
        %4742 = vmatmul.mubr.bf16.gmra.mrb[0].mxu0 %v3909
        %v4743 = vpop.f32.mrb[0].mxu0
        %v4744 = vadd.f32 %v4679, %v4743
        %v4745 = vpop.f32.mrb[0].mxu0
        %v4746 = vpop.f32.mrb[0].mxu0
        %v4747 = vadd.f32 %v4682, %v4746
        %v4748 = vpop.f32.mrb[0].mxu0
        %4749 = vmatprep.mubr.bf16.mxu0 %v3919
        %4750 = vmatmul.mubr.bf16.gmra.mrb[0].mxu0 %v3918
        %v4751 = vpop.f32.mrb[0].mxu0
        %v4752 = vadd.f32 %v4687, %v4751
        %v4753 = vpop.f32.mrb[0].mxu0
        %v4754 = vpop.f32.mrb[0].mxu0
        %v4755 = vadd.f32 %v4690, %v4754
        %v4756 = vpop.f32.mrb[0].mxu0
        %4757 = vmatprep.mubr.bf16.mxu0 %v3928
        %4758 = vmatmul.mubr.bf16.gmra.mrb[0].mxu0 %v3927
        %v4759 = vpop.f32.mrb[0].mxu0
        %v4760 = vadd.f32 %v4695, %v4759
        %v4761 = vpop.f32.mrb[0].mxu0
        %v4762 = vpop.f32.mrb[0].mxu0
        %v4763 = vadd.f32 %v4698, %v4762
        %v4764 = vpop.f32.mrb[0].mxu0
        %4765 = vdwg.mxu0
        %4766 = vmatprep.subr.bf16.mxu0 0
        %4767 = vmatpush1.bf16.msra.mxu0 %v4426
        %4768 = vmatprep.subr.bf16.mxu0 0
        %4769 = vmatpush1.bf16.msra.mxu0 %v4427
        %4770 = vmatprep.subr.bf16.mxu0 0
        %4771 = vmatpush1.bf16.msra.mxu0 %v4428
        %4772 = vmatprep.subr.bf16.mxu0 0
        %4773 = vmatpush1.bf16.msra.mxu0 %v4429
        %4774 = vmatprep.subr.bf16.mxu0 0
        %4775 = vmatpush1.bf16.msra.mxu0 %v4430
        %4776 = vmatprep.subr.bf16.mxu0 0
        %4777 = vmatpush1.bf16.msra.mxu0 %v4431
        %4778 = vmatprep.subr.bf16.mxu0 0
        %4779 = vmatpush1.bf16.msra.mxu0 %v4432
        %4780 = vmatprep.subr.bf16.mxu0 0
        %4781 = vmatpush1.bf16.msra.mxu0 %v4433
        %4782 = vmatprep.subr.bf16.mxu0 0
        %4783 = vmatpush1.bf16.msra.mxu0 0
        %4784 = vmatprep.subr.bf16.mxu0 0
        %4785 = vmatpush1.bf16.msra.mxu0 0
        %4786 = vmatprep.subr.bf16.mxu0 0
        %4787 = vmatpush1.bf16.msra.mxu0 0
        %4788 = vmatprep.subr.bf16.mxu0 0
        %4789 = vmatpush1.bf16.msra.mxu0 0
        %4790 = vmatprep.subr.bf16.mxu0 0
        %4791 = vmatpush1.bf16.msra.mxu0 0
        %4792 = vmatprep.subr.bf16.mxu0 0
        %4793 = vmatpush1.bf16.msra.mxu0 0
        %4794 = vmatprep.subr.bf16.mxu0 0
        %4795 = vmatpush1.bf16.msra.mxu0 0
        %4796 = vmatprep.subr.bf16.mxu0 0
        %4797 = vmatpush1.bf16.msra.mxu0 0
        %4798 = vmatprep.mubr.bf16.mxu0 0
        %4799 = vmatmul.mubr.bf16.gmra.mrb[0].mxu0 %v3902
        %v4800 = vpop.f32.mrb[0].mxu0
        %v4801 = vadd.f32 %v4736, %v4800
        %v4802 = vpop.f32.mrb[0].mxu0
        %v4803 = vpop.f32.mrb[0].mxu0
        %v4804 = vadd.f32 %v4739, %v4803
        %v4805 = vpop.f32.mrb[0].mxu0
        %4806 = vmatprep.mubr.bf16.mxu0 0
        %4807 = vmatmul.mubr.bf16.gmra.mrb[0].mxu0 %v3911
        %v4808 = vpop.f32.mrb[0].mxu0
        %v4809 = vadd.f32 %v4744, %v4808
        %v4810 = vpop.f32.mrb[0].mxu0
        %v4811 = vpop.f32.mrb[0].mxu0
        %v4812 = vadd.f32 %v4747, %v4811
        %v4813 = vpop.f32.mrb[0].mxu0
        %4814 = vmatprep.mubr.bf16.mxu0 0
        %4815 = vmatmul.mubr.bf16.gmra.mrb[0].mxu0 %v3920
        %v4816 = vpop.f32.mrb[0].mxu0
        %v4817 = vadd.f32 %v4752, %v4816
        %v4818 = vpop.f32.mrb[0].mxu0
        %v4819 = vpop.f32.mrb[0].mxu0
        %v4820 = vadd.f32 %v4755, %v4819
        %v4821 = vpop.f32.mrb[0].mxu0
        %4822 = vmatprep.mubr.bf16.mxu0 0
        %4823 = vmatmul.mubr.bf16.gmra.mrb[0].mxu0 %v3929
        %v4824 = vpop.f32.mrb[0].mxu0
        %v4825 = vadd.f32 %v4760, %v4824
        %v4826 = vpop.f32.mrb[0].mxu0
        %v4827 = vpop.f32.mrb[0].mxu0
        %v4828 = vadd.f32 %v4763, %v4827
        %v4829 = vpop.f32.mrb[0].mxu0
        %4830 = vdwg.mxu0
        %v4831 = vmax.f32 %v4801, %v4804
        %v4832 = vmax.f32 %v4809, %v4812
        %v4833 = vmax.f32 %v4817, %v4820
        %v4834 = vmax.f32 %v4825, %v4828
        %4835 = vst [vmem:[#allocation3] sm:$0xff] %v4831
        %4836 = vst [vmem:[#allocation3 + $0x8] sm:$0xff] %v4832
        %4837 = vst [vmem:[#allocation3 + $0x10] sm:$0xff] %v4833
        %4838 = vst [vmem:[#allocation3 + $0x18] sm:$0xff] %v4834
        %v4839 = vld [vmem:[#allocation3] ss:$2 sm:$0xff]
        %s4840 = scalar_lea.vmem [#allocation3], 16
        %v4841 = vld [vmem:[%s4840] ss:$2 sm:$0xff]
        %s4842 = scalar_lea.vmem [#allocation3], 1
        %v4843 = vld [vmem:[%s4842] ss:$2 sm:$0xff]
        %s4844 = scalar_lea.vmem [#allocation3], 17
        %v4845 = vld [vmem:[%s4844] ss:$2 sm:$0xff]
        %v4846 = vmax.f32 %v4839, %v4843
        %v4847 = vmax.f32 %v4841, %v4845
        %v4848 = vld [vmem:[%s4] sm:$0x1]
        %v4850 = vlaneseq
        %v4851 = vshrl.u32 %v4850, 7
        %v4852 = vsub.s32 0, %v4851
        %v4853 = vrot.slane %v4848, %v4852
        %v4855 = vadd.f32 %v4846, %v4853
        %v4856 = vadd.f32 %v4847, %v4853
        %v4857 = vmax.f32 %v4855, 0.0
        %v4858 = vmax.f32 %v4856, 0.0
        %v4860 = vrot.slane %v4857, 1
        %v4862 = vrot.slane %v4857, 2
        %v4864 = vrot.slane %v4857, 3
        %v4866 = vrot.slane %v4857, 4
        %v4868 = vrot.slane %v4857, 5
        %v4870 = vrot.slane %v4857, 6
        %v4872 = vrot.slane %v4857, 7
        %v4875 = vrot.slane %v4858, 1
        %v4877 = vrot.slane %v4858, 2
        %v4879 = vrot.slane %v4858, 3
        %v4881 = vrot.slane %v4858, 4
        %v4883 = vrot.slane %v4858, 5
        %v4885 = vrot.slane %v4858, 6
        %v4887 = vrot.slane %v4858, 7
        %v4889 = vpack.c.bf16 %v4857, %v4857
        %v4890 = vpack.c.bf16 %v4860, %v4860
        %v4891 = vpack.c.bf16 %v4862, %v4862
        %v4892 = vpack.c.bf16 %v4864, %v4864
        %v4893 = vpack.c.bf16 %v4866, %v4866
        %v4894 = vpack.c.bf16 %v4868, %v4868
        %v4895 = vpack.c.bf16 %v4870, %v4870
        %v4896 = vpack.c.bf16 %v4872, %v4872
        %v4897 = vpack.c.bf16 %v4858, %v4858
        %v4898 = vpack.c.bf16 %v4875, %v4875
        %v4899 = vpack.c.bf16 %v4877, %v4877
        %v4900 = vpack.c.bf16 %v4879, %v4879
        %v4901 = vpack.c.bf16 %v4881, %v4881
        %v4902 = vpack.c.bf16 %v4883, %v4883
        %v4903 = vpack.c.bf16 %v4885, %v4885
        %v4904 = vpack.c.bf16 %v4887, %v4887
        %v4905 = vld [vmem:[%s5] sm:$0xf]
        %v4906 = vld [vmem:[%s5 + $0x4] sm:$0xf]
        %v4907 = vld [vmem:[%s5 + $0x8] sm:$0xf]
        %v4908 = vld [vmem:[%s5 + $0xc] sm:$0xf]
        %v4909 = vld [vmem:[%s5 + $0x10] sm:$0xf]
        %v4910 = vld [vmem:[%s5 + $0x14] sm:$0xf]
        %v4911 = vld [vmem:[%s5 + $0x18] sm:$0xf]
        %v4912 = vld [vmem:[%s5 + $0x1c] sm:$0xf]
        %v4913 = vld [vmem:[%s5 + $0x20] sm:$0xf]
        %v4914 = vld [vmem:[%s5 + $0x24] sm:$0xf]
        %v4915 = vld [vmem:[%s5 + $0x28] sm:$0xf]
        %v4916 = vld [vmem:[%s5 + $0x2c] sm:$0xf]
        %v4917 = vld [vmem:[%s5 + $0x30] sm:$0xf]
        %v4918 = vld [vmem:[%s5 + $0x34] sm:$0xf]
        %v4919 = vld [vmem:[%s5 + $0x38] sm:$0xf]
        %v4920 = vld [vmem:[%s5 + $0x3c] sm:$0xf]
        %v4921 = vld [vmem:[%s5 + $0x40] sm:$0xf]
        %v4922 = vld [vmem:[%s5 + $0x44] sm:$0xf]
        %v4923 = vld [vmem:[%s5 + $0x48] sm:$0xf]
        %v4924 = vld [vmem:[%s5 + $0x4c] sm:$0xf]
        %v4925 = vld [vmem:[%s5 + $0x50] sm:$0xf]
        %v4926 = vld [vmem:[%s5 + $0x54] sm:$0xf]
        %v4927 = vld [vmem:[%s5 + $0x58] sm:$0xf]
        %v4928 = vld [vmem:[%s5 + $0x5c] sm:$0xf]
        %v4929 = vld [vmem:[%s5 + $0x60] sm:$0xf]
        %v4930 = vld [vmem:[%s5 + $0x64] sm:$0xf]
        %v4931 = vld [vmem:[%s5 + $0x68] sm:$0xf]
        %v4932 = vld [vmem:[%s5 + $0x6c] sm:$0xf]
        %v4933 = vld [vmem:[%s5 + $0x70] sm:$0xf]
        %v4934 = vld [vmem:[%s5 + $0x74] sm:$0xf]
        %v4935 = vld [vmem:[%s5 + $0x78] sm:$0xf]
        %v4936 = vld [vmem:[%s5 + $0x7c] sm:$0xf]
        %v4937 = vld [vmem:[%s5 + $0x80] sm:$0xf]
        %v4938 = vld [vmem:[%s5 + $0x84] sm:$0xf]
        %v4939 = vld [vmem:[%s5 + $0x88] sm:$0xf]
        %v4940 = vld [vmem:[%s5 + $0x8c] sm:$0xf]
        %v4941 = vld [vmem:[%s5 + $0x90] sm:$0xf]
        %v4942 = vld [vmem:[%s5 + $0x94] sm:$0xf]
        %v4943 = vld [vmem:[%s5 + $0x98] sm:$0xf]
        %v4944 = vld [vmem:[%s5 + $0x9c] sm:$0xf]
        %v4945 = vld [vmem:[%s5 + $0xa0] sm:$0xf]
        %v4946 = vld [vmem:[%s5 + $0xa4] sm:$0xf]
        %v4947 = vld [vmem:[%s5 + $0xa8] sm:$0xf]
        %v4948 = vld [vmem:[%s5 + $0xac] sm:$0xf]
        %v4949 = vld [vmem:[%s5 + $0xb0] sm:$0xf]
        %v4950 = vld [vmem:[%s5 + $0xb4] sm:$0xf]
        %v4951 = vld [vmem:[%s5 + $0xb8] sm:$0xf]
        %v4952 = vld [vmem:[%s5 + $0xbc] sm:$0xf]
        %v4953 = vld [vmem:[%s5 + $0xc0] sm:$0xf]
        %v4954 = vld [vmem:[%s5 + $0xc4] sm:$0xf]
        %v4955 = vld [vmem:[%s5 + $0xc8] sm:$0xf]
        %v4956 = vld [vmem:[%s5 + $0xcc] sm:$0xf]
        %v4957 = vld [vmem:[%s5 + $0xd0] sm:$0xf]
        %v4958 = vld [vmem:[%s5 + $0xd4] sm:$0xf]
        %v4959 = vld [vmem:[%s5 + $0xd8] sm:$0xf]
        %v4960 = vld [vmem:[%s5 + $0xdc] sm:$0xf]
        %v4961 = vld [vmem:[%s5 + $0xe0] sm:$0xf]
        %v4962 = vld [vmem:[%s5 + $0xe4] sm:$0xf]
        %v4963 = vld [vmem:[%s5 + $0xe8] sm:$0xf]
        %v4964 = vld [vmem:[%s5 + $0xec] sm:$0xf]
        %v4965 = vld [vmem:[%s5 + $0xf0] sm:$0xf]
        %v4966 = vld [vmem:[%s5 + $0xf4] sm:$0xf]
        %v4967 = vld [vmem:[%s5 + $0xf8] sm:$0xf]
        %v4968 = vld [vmem:[%s5 + $0xfc] sm:$0xf]
        %v4969 = vld [vmem:[%s5 + $0x100] sm:$0xf]
        %v4970 = vld [vmem:[%s5 + $0x104] sm:$0xf]
        %v4971 = vld [vmem:[%s5 + $0x108] sm:$0xf]
        %v4972 = vld [vmem:[%s5 + $0x10c] sm:$0xf]
        %v4973 = vld [vmem:[%s5 + $0x110] sm:$0xf]
        %v4974 = vld [vmem:[%s5 + $0x114] sm:$0xf]
        %v4975 = vld [vmem:[%s5 + $0x118] sm:$0xf]
        %v4976 = vld [vmem:[%s5 + $0x11c] sm:$0xf]
        %v4977 = vld [vmem:[%s5 + $0x120] sm:$0xf]
        %v4978 = vld [vmem:[%s5 + $0x124] sm:$0xf]
        %v4979 = vld [vmem:[%s5 + $0x128] sm:$0xf]
        %v4980 = vld [vmem:[%s5 + $0x12c] sm:$0xf]
        %v4981 = vld [vmem:[%s5 + $0x130] sm:$0xf]
        %v4982 = vld [vmem:[%s5 + $0x134] sm:$0xf]
        %v4983 = vld [vmem:[%s5 + $0x138] sm:$0xf]
        %v4984 = vld [vmem:[%s5 + $0x13c] sm:$0xf]
        %v4985 = vld [vmem:[%s5 + $0x140] sm:$0xf]
        %v4986 = vld [vmem:[%s5 + $0x144] sm:$0xf]
        %v4987 = vld [vmem:[%s5 + $0x148] sm:$0xf]
        %v4988 = vld [vmem:[%s5 + $0x14c] sm:$0xf]
        %v4989 = vld [vmem:[%s5 + $0x150] sm:$0xf]
        %v4990 = vld [vmem:[%s5 + $0x154] sm:$0xf]
        %v4991 = vld [vmem:[%s5 + $0x158] sm:$0xf]
        %v4992 = vld [vmem:[%s5 + $0x15c] sm:$0xf]
        %v4993 = vld [vmem:[%s5 + $0x160] sm:$0xf]
        %v4994 = vld [vmem:[%s5 + $0x164] sm:$0xf]
        %v4995 = vld [vmem:[%s5 + $0x168] sm:$0xf]
        %v4996 = vld [vmem:[%s5 + $0x16c] sm:$0xf]
        %v4997 = vld [vmem:[%s5 + $0x170] sm:$0xf]
        %v4998 = vld [vmem:[%s5 + $0x174] sm:$0xf]
        %v4999 = vld [vmem:[%s5 + $0x178] sm:$0xf]
        %v5000 = vld [vmem:[%s5 + $0x17c] sm:$0xf]
        %v5001 = vld [vmem:[%s5 + $0x180] sm:$0xf]
        %v5002 = vld [vmem:[%s5 + $0x184] sm:$0xf]
        %v5003 = vld [vmem:[%s5 + $0x188] sm:$0xf]
        %v5004 = vld [vmem:[%s5 + $0x18c] sm:$0xf]
        %v5005 = vld [vmem:[%s5 + $0x190] sm:$0xf]
        %v5006 = vld [vmem:[%s5 + $0x194] sm:$0xf]
        %v5007 = vld [vmem:[%s5 + $0x198] sm:$0xf]
        %v5008 = vld [vmem:[%s5 + $0x19c] sm:$0xf]
        %v5009 = vld [vmem:[%s5 + $0x1a0] sm:$0xf]
        %v5010 = vld [vmem:[%s5 + $0x1a4] sm:$0xf]
        %v5011 = vld [vmem:[%s5 + $0x1a8] sm:$0xf]
        %v5012 = vld [vmem:[%s5 + $0x1ac] sm:$0xf]
        %v5013 = vld [vmem:[%s5 + $0x1b0] sm:$0xf]
        %v5014 = vld [vmem:[%s5 + $0x1b4] sm:$0xf]
        %v5015 = vld [vmem:[%s5 + $0x1b8] sm:$0xf]
        %v5016 = vld [vmem:[%s5 + $0x1bc] sm:$0xf]
        %v5017 = vld [vmem:[%s5 + $0x1c0] sm:$0xf]
        %v5018 = vld [vmem:[%s5 + $0x1c4] sm:$0xf]
        %v5019 = vld [vmem:[%s5 + $0x1c8] sm:$0xf]
        %v5020 = vld [vmem:[%s5 + $0x1cc] sm:$0xf]
        %v5021 = vld [vmem:[%s5 + $0x1d0] sm:$0xf]
        %v5022 = vld [vmem:[%s5 + $0x1d4] sm:$0xf]
        %v5023 = vld [vmem:[%s5 + $0x1d8] sm:$0xf]
        %v5024 = vld [vmem:[%s5 + $0x1dc] sm:$0xf]
        %v5025 = vld [vmem:[%s5 + $0x1e0] sm:$0xf]
        %v5026 = vld [vmem:[%s5 + $0x1e4] sm:$0xf]
        %v5027 = vld [vmem:[%s5 + $0x1e8] sm:$0xf]
        %v5028 = vld [vmem:[%s5 + $0x1ec] sm:$0xf]
        %v5029 = vld [vmem:[%s5 + $0x1f0] sm:$0xf]
        %v5030 = vld [vmem:[%s5 + $0x1f4] sm:$0xf]
        %v5031 = vld [vmem:[%s5 + $0x1f8] sm:$0xf]
        %v5032 = vld [vmem:[%s5 + $0x1fc] sm:$0xf]
        %v5033 = vld [vmem:[%s5 + $0x200] sm:$0xf]
        %v5034 = vld [vmem:[%s5 + $0x204] sm:$0xf]
        %v5035 = vld [vmem:[%s5 + $0x208] sm:$0xf]
        %v5036 = vld [vmem:[%s5 + $0x20c] sm:$0xf]
        %v5037 = vld [vmem:[%s5 + $0x210] sm:$0xf]
        %v5038 = vld [vmem:[%s5 + $0x214] sm:$0xf]
        %v5039 = vld [vmem:[%s5 + $0x218] sm:$0xf]
        %v5040 = vld [vmem:[%s5 + $0x21c] sm:$0xf]
        %v5041 = vld [vmem:[%s5 + $0x220] sm:$0xf]
        %v5042 = vld [vmem:[%s5 + $0x224] sm:$0xf]
        %v5043 = vld [vmem:[%s5 + $0x228] sm:$0xf]
        %v5044 = vld [vmem:[%s5 + $0x22c] sm:$0xf]
        %v5045 = vld [vmem:[%s5 + $0x230] sm:$0xf]
        %v5046 = vld [vmem:[%s5 + $0x234] sm:$0xf]
        %v5047 = vld [vmem:[%s5 + $0x238] sm:$0xf]
        %v5048 = vld [vmem:[%s5 + $0x23c] sm:$0xf]
        %v5049 = vld [vmem:[%s5 + $0x240] sm:$0xf]
        %v5050 = vld [vmem:[%s5 + $0x244] sm:$0xf]
        %v5051 = vld [vmem:[%s5 + $0x248] sm:$0xf]
        %v5052 = vld [vmem:[%s5 + $0x24c] sm:$0xf]
        %v5053 = vld [vmem:[%s5 + $0x250] sm:$0xf]
        %v5054 = vld [vmem:[%s5 + $0x254] sm:$0xf]
        %v5055 = vld [vmem:[%s5 + $0x258] sm:$0xf]
        %v5056 = vld [vmem:[%s5 + $0x25c] sm:$0xf]
        %v5057 = vld [vmem:[%s5 + $0x260] sm:$0xf]
        %v5058 = vld [vmem:[%s5 + $0x264] sm:$0xf]
        %v5059 = vld [vmem:[%s5 + $0x268] sm:$0xf]
        %v5060 = vld [vmem:[%s5 + $0x26c] sm:$0xf]
        %v5061 = vld [vmem:[%s5 + $0x270] sm:$0xf]
        %v5062 = vld [vmem:[%s5 + $0x274] sm:$0xf]
        %v5063 = vld [vmem:[%s5 + $0x278] sm:$0xf]
        %v5064 = vld [vmem:[%s5 + $0x27c] sm:$0xf]
        %v5065 = vld [vmem:[%s5 + $0x280] sm:$0xf]
        %v5066 = vld [vmem:[%s5 + $0x284] sm:$0xf]
        %v5067 = vld [vmem:[%s5 + $0x288] sm:$0xf]
        %v5068 = vld [vmem:[%s5 + $0x28c] sm:$0xf]
        %v5069 = vld [vmem:[%s5 + $0x290] sm:$0xf]
        %v5070 = vld [vmem:[%s5 + $0x294] sm:$0xf]
        %v5071 = vld [vmem:[%s5 + $0x298] sm:$0xf]
        %v5072 = vld [vmem:[%s5 + $0x29c] sm:$0xf]
        %v5073 = vld [vmem:[%s5 + $0x2a0] sm:$0xf]
        %v5074 = vld [vmem:[%s5 + $0x2a4] sm:$0xf]
        %v5075 = vld [vmem:[%s5 + $0x2a8] sm:$0xf]
        %v5076 = vld [vmem:[%s5 + $0x2ac] sm:$0xf]
        %v5077 = vld [vmem:[%s5 + $0x2b0] sm:$0xf]
        %v5078 = vld [vmem:[%s5 + $0x2b4] sm:$0xf]
        %v5079 = vld [vmem:[%s5 + $0x2b8] sm:$0xf]
        %v5080 = vld [vmem:[%s5 + $0x2bc] sm:$0xf]
        %v5081 = vld [vmem:[%s5 + $0x2c0] sm:$0xf]
        %v5082 = vld [vmem:[%s5 + $0x2c4] sm:$0xf]
        %v5083 = vld [vmem:[%s5 + $0x2c8] sm:$0xf]
        %v5084 = vld [vmem:[%s5 + $0x2cc] sm:$0xf]
        %v5085 = vld [vmem:[%s5 + $0x2d0] sm:$0xf]
        %v5086 = vld [vmem:[%s5 + $0x2d4] sm:$0xf]
        %v5087 = vld [vmem:[%s5 + $0x2d8] sm:$0xf]
        %v5088 = vld [vmem:[%s5 + $0x2dc] sm:$0xf]
        %v5089 = vld [vmem:[%s5 + $0x2e0] sm:$0xf]
        %v5090 = vld [vmem:[%s5 + $0x2e4] sm:$0xf]
        %v5091 = vld [vmem:[%s5 + $0x2e8] sm:$0xf]
        %v5092 = vld [vmem:[%s5 + $0x2ec] sm:$0xf]
        %v5093 = vld [vmem:[%s5 + $0x2f0] sm:$0xf]
        %v5094 = vld [vmem:[%s5 + $0x2f4] sm:$0xf]
        %v5095 = vld [vmem:[%s5 + $0x2f8] sm:$0xf]
        %v5096 = vld [vmem:[%s5 + $0x2fc] sm:$0xf]
        %v5097 = vld [vmem:[%s5 + $0x300] sm:$0xf]
        %v5098 = vld [vmem:[%s5 + $0x304] sm:$0xf]
        %v5099 = vld [vmem:[%s5 + $0x308] sm:$0xf]
        %v5100 = vld [vmem:[%s5 + $0x30c] sm:$0xf]
        %v5101 = vld [vmem:[%s5 + $0x310] sm:$0xf]
        %v5102 = vld [vmem:[%s5 + $0x314] sm:$0xf]
        %v5103 = vld [vmem:[%s5 + $0x318] sm:$0xf]
        %v5104 = vld [vmem:[%s5 + $0x31c] sm:$0xf]
        %v5105 = vld [vmem:[%s5 + $0x320] sm:$0xf]
        %v5106 = vld [vmem:[%s5 + $0x324] sm:$0xf]
        %v5107 = vld [vmem:[%s5 + $0x328] sm:$0xf]
        %v5108 = vld [vmem:[%s5 + $0x32c] sm:$0xf]
        %v5109 = vld [vmem:[%s5 + $0x330] sm:$0xf]
        %v5110 = vld [vmem:[%s5 + $0x334] sm:$0xf]
        %v5111 = vld [vmem:[%s5 + $0x338] sm:$0xf]
        %v5112 = vld [vmem:[%s5 + $0x33c] sm:$0xf]
        %v5113 = vld [vmem:[%s5 + $0x340] sm:$0xf]
        %v5114 = vld [vmem:[%s5 + $0x344] sm:$0xf]
        %v5115 = vld [vmem:[%s5 + $0x348] sm:$0xf]
        %v5116 = vld [vmem:[%s5 + $0x34c] sm:$0xf]
        %v5117 = vld [vmem:[%s5 + $0x350] sm:$0xf]
        %v5118 = vld [vmem:[%s5 + $0x354] sm:$0xf]
        %v5119 = vld [vmem:[%s5 + $0x358] sm:$0xf]
        %v5120 = vld [vmem:[%s5 + $0x35c] sm:$0xf]
        %v5121 = vld [vmem:[%s5 + $0x360] sm:$0xf]
        %v5122 = vld [vmem:[%s5 + $0x364] sm:$0xf]
        %v5123 = vld [vmem:[%s5 + $0x368] sm:$0xf]
        %v5124 = vld [vmem:[%s5 + $0x36c] sm:$0xf]
        %v5125 = vld [vmem:[%s5 + $0x370] sm:$0xf]
        %v5126 = vld [vmem:[%s5 + $0x374] sm:$0xf]
        %v5127 = vld [vmem:[%s5 + $0x378] sm:$0xf]
        %v5128 = vld [vmem:[%s5 + $0x37c] sm:$0xf]
        %v5129 = vld [vmem:[%s5 + $0x380] sm:$0xf]
        %v5130 = vld [vmem:[%s5 + $0x384] sm:$0xf]
        %v5131 = vld [vmem:[%s5 + $0x388] sm:$0xf]
        %v5132 = vld [vmem:[%s5 + $0x38c] sm:$0xf]
        %v5133 = vld [vmem:[%s5 + $0x390] sm:$0xf]
        %v5134 = vld [vmem:[%s5 + $0x394] sm:$0xf]
        %v5135 = vld [vmem:[%s5 + $0x398] sm:$0xf]
        %v5136 = vld [vmem:[%s5 + $0x39c] sm:$0xf]
        %v5137 = vld [vmem:[%s5 + $0x3a0] sm:$0xf]
        %v5138 = vld [vmem:[%s5 + $0x3a4] sm:$0xf]
        %v5139 = vld [vmem:[%s5 + $0x3a8] sm:$0xf]
        %v5140 = vld [vmem:[%s5 + $0x3ac] sm:$0xf]
        %v5141 = vld [vmem:[%s5 + $0x3b0] sm:$0xf]
        %v5142 = vld [vmem:[%s5 + $0x3b4] sm:$0xf]
        %v5143 = vld [vmem:[%s5 + $0x3b8] sm:$0xf]
        %v5144 = vld [vmem:[%s5 + $0x3bc] sm:$0xf]
        %v5145 = vld [vmem:[%s5 + $0x3c0] sm:$0xf]
        %v5146 = vld [vmem:[%s5 + $0x3c4] sm:$0xf]
        %v5147 = vld [vmem:[%s5 + $0x3c8] sm:$0xf]
        %v5148 = vld [vmem:[%s5 + $0x3cc] sm:$0xf]
        %v5149 = vld [vmem:[%s5 + $0x3d0] sm:$0xf]
        %v5150 = vld [vmem:[%s5 + $0x3d4] sm:$0xf]
        %v5151 = vld [vmem:[%s5 + $0x3d8] sm:$0xf]
        %v5152 = vld [vmem:[%s5 + $0x3dc] sm:$0xf]
        %v5153 = vld [vmem:[%s5 + $0x3e0] sm:$0xf]
        %v5154 = vld [vmem:[%s5 + $0x3e4] sm:$0xf]
        %v5155 = vld [vmem:[%s5 + $0x3e8] sm:$0xf]
        %v5156 = vld [vmem:[%s5 + $0x3ec] sm:$0xf]
        %v5157 = vld [vmem:[%s5 + $0x3f0] sm:$0xf]
        %v5158 = vld [vmem:[%s5 + $0x3f4] sm:$0xf]
        %v5159 = vld [vmem:[%s5 + $0x3f8] sm:$0xf]
        %v5160 = vld [vmem:[%s5 + $0x3fc] sm:$0xf]
        %v5161 = vld [vmem:[%s6] sm:$0x1]
        %v5418 = vunpack.c.l.b16 %v4905
        %v5419 = vunpack.c.l.b16 %v4906
        %v5420 = vunpack.c.l.b16 %v4907
        %v5421 = vunpack.c.l.b16 %v4908
        %v5422 = vunpack.c.l.b16 %v4909
        %v5423 = vunpack.c.l.b16 %v4910
        %v5424 = vunpack.c.l.b16 %v4911
        %v5425 = vunpack.c.l.b16 %v4912
        %v5426 = vunpack.c.l.b16 %v4913
        %v5427 = vunpack.c.l.b16 %v4914
        %v5428 = vunpack.c.l.b16 %v4915
        %v5429 = vunpack.c.l.b16 %v4916
        %v5430 = vunpack.c.l.b16 %v4917
        %v5431 = vunpack.c.l.b16 %v4918
        %v5432 = vunpack.c.l.b16 %v4919
        %v5433 = vunpack.c.l.b16 %v4920
        %v5434 = vunpack.c.l.b16 %v4921
        %v5435 = vunpack.c.l.b16 %v4922
        %v5436 = vunpack.c.l.b16 %v4923
        %v5437 = vunpack.c.l.b16 %v4924
        %v5438 = vunpack.c.l.b16 %v4925
        %v5439 = vunpack.c.l.b16 %v4926
        %v5440 = vunpack.c.l.b16 %v4927
        %v5441 = vunpack.c.l.b16 %v4928
        %v5442 = vunpack.c.l.b16 %v4929
        %v5443 = vunpack.c.l.b16 %v4930
        %v5444 = vunpack.c.l.b16 %v4931
        %v5445 = vunpack.c.l.b16 %v4932
        %v5446 = vunpack.c.l.b16 %v4933
        %v5447 = vunpack.c.l.b16 %v4934
        %v5448 = vunpack.c.l.b16 %v4935
        %v5449 = vunpack.c.l.b16 %v4936
        %v5450 = vunpack.c.l.b16 %v4937
        %v5451 = vunpack.c.l.b16 %v4938
        %v5452 = vunpack.c.l.b16 %v4939
        %v5453 = vunpack.c.l.b16 %v4940
        %v5454 = vunpack.c.l.b16 %v4941
        %v5455 = vunpack.c.l.b16 %v4942
        %v5456 = vunpack.c.l.b16 %v4943
        %v5457 = vunpack.c.l.b16 %v4944
        %v5458 = vunpack.c.l.b16 %v4945
        %v5459 = vunpack.c.l.b16 %v4946
        %v5460 = vunpack.c.l.b16 %v4947
        %v5461 = vunpack.c.l.b16 %v4948
        %v5462 = vunpack.c.l.b16 %v4949
        %v5463 = vunpack.c.l.b16 %v4950
        %v5464 = vunpack.c.l.b16 %v4951
        %v5465 = vunpack.c.l.b16 %v4952
        %v5466 = vunpack.c.l.b16 %v4953
        %v5467 = vunpack.c.l.b16 %v4954
        %v5468 = vunpack.c.l.b16 %v4955
        %v5469 = vunpack.c.l.b16 %v4956
        %v5470 = vunpack.c.l.b16 %v4957
        %v5471 = vunpack.c.l.b16 %v4958
        %v5472 = vunpack.c.l.b16 %v4959
        %v5473 = vunpack.c.l.b16 %v4960
        %v5474 = vunpack.c.l.b16 %v4961
        %v5475 = vunpack.c.l.b16 %v4962
        %v5476 = vunpack.c.l.b16 %v4963
        %v5477 = vunpack.c.l.b16 %v4964
        %v5478 = vunpack.c.l.b16 %v4965
        %v5479 = vunpack.c.l.b16 %v4966
        %v5480 = vunpack.c.l.b16 %v4967
        %v5481 = vunpack.c.l.b16 %v4968
        %v5482 = vunpack.c.l.b16 %v4969
        %v5483 = vunpack.c.l.b16 %v4970
        %v5484 = vunpack.c.l.b16 %v4971
        %v5485 = vunpack.c.l.b16 %v4972
        %v5486 = vunpack.c.l.b16 %v4973
        %v5487 = vunpack.c.l.b16 %v4974
        %v5488 = vunpack.c.l.b16 %v4975
        %v5489 = vunpack.c.l.b16 %v4976
        %v5490 = vunpack.c.l.b16 %v4977
        %v5491 = vunpack.c.l.b16 %v4978
        %v5492 = vunpack.c.l.b16 %v4979
        %v5493 = vunpack.c.l.b16 %v4980
        %v5494 = vunpack.c.l.b16 %v4981
        %v5495 = vunpack.c.l.b16 %v4982
        %v5496 = vunpack.c.l.b16 %v4983
        %v5497 = vunpack.c.l.b16 %v4984
        %v5498 = vunpack.c.l.b16 %v4985
        %v5499 = vunpack.c.l.b16 %v4986
        %v5500 = vunpack.c.l.b16 %v4987
        %v5501 = vunpack.c.l.b16 %v4988
        %v5502 = vunpack.c.l.b16 %v4989
        %v5503 = vunpack.c.l.b16 %v4990
        %v5504 = vunpack.c.l.b16 %v4991
        %v5505 = vunpack.c.l.b16 %v4992
        %v5506 = vunpack.c.l.b16 %v4993
        %v5507 = vunpack.c.l.b16 %v4994
        %v5508 = vunpack.c.l.b16 %v4995
        %v5509 = vunpack.c.l.b16 %v4996
        %v5510 = vunpack.c.l.b16 %v4997
        %v5511 = vunpack.c.l.b16 %v4998
        %v5512 = vunpack.c.l.b16 %v4999
        %v5513 = vunpack.c.l.b16 %v5000
        %v5514 = vunpack.c.l.b16 %v5001
        %v5515 = vunpack.c.l.b16 %v5002
        %v5516 = vunpack.c.l.b16 %v5003
        %v5517 = vunpack.c.l.b16 %v5004
        %v5518 = vunpack.c.l.b16 %v5005
        %v5519 = vunpack.c.l.b16 %v5006
        %v5520 = vunpack.c.l.b16 %v5007
        %v5521 = vunpack.c.l.b16 %v5008
        %v5522 = vunpack.c.l.b16 %v5009
        %v5523 = vunpack.c.l.b16 %v5010
        %v5524 = vunpack.c.l.b16 %v5011
        %v5525 = vunpack.c.l.b16 %v5012
        %v5526 = vunpack.c.l.b16 %v5013
        %v5527 = vunpack.c.l.b16 %v5014
        %v5528 = vunpack.c.l.b16 %v5015
        %v5529 = vunpack.c.l.b16 %v5016
        %v5530 = vunpack.c.l.b16 %v5017
        %v5531 = vunpack.c.l.b16 %v5018
        %v5532 = vunpack.c.l.b16 %v5019
        %v5533 = vunpack.c.l.b16 %v5020
        %v5534 = vunpack.c.l.b16 %v5021
        %v5535 = vunpack.c.l.b16 %v5022
        %v5536 = vunpack.c.l.b16 %v5023
        %v5537 = vunpack.c.l.b16 %v5024
        %v5538 = vunpack.c.l.b16 %v5025
        %v5539 = vunpack.c.l.b16 %v5026
        %v5540 = vunpack.c.l.b16 %v5027
        %v5541 = vunpack.c.l.b16 %v5028
        %v5542 = vunpack.c.l.b16 %v5029
        %v5543 = vunpack.c.l.b16 %v5030
        %v5544 = vunpack.c.l.b16 %v5031
        %v5545 = vunpack.c.l.b16 %v5032
        %v5546 = vunpack.c.l.b16 %v5033
        %v5547 = vunpack.c.l.b16 %v5034
        %v5548 = vunpack.c.l.b16 %v5035
        %v5549 = vunpack.c.l.b16 %v5036
        %v5550 = vunpack.c.l.b16 %v5037
        %v5551 = vunpack.c.l.b16 %v5038
        %v5552 = vunpack.c.l.b16 %v5039
        %v5553 = vunpack.c.l.b16 %v5040
        %v5554 = vunpack.c.l.b16 %v5041
        %v5555 = vunpack.c.l.b16 %v5042
        %v5556 = vunpack.c.l.b16 %v5043
        %v5557 = vunpack.c.l.b16 %v5044
        %v5558 = vunpack.c.l.b16 %v5045
        %v5559 = vunpack.c.l.b16 %v5046
        %v5560 = vunpack.c.l.b16 %v5047
        %v5561 = vunpack.c.l.b16 %v5048
        %v5562 = vunpack.c.l.b16 %v5049
        %v5563 = vunpack.c.l.b16 %v5050
        %v5564 = vunpack.c.l.b16 %v5051
        %v5565 = vunpack.c.l.b16 %v5052
        %v5566 = vunpack.c.l.b16 %v5053
        %v5567 = vunpack.c.l.b16 %v5054
        %v5568 = vunpack.c.l.b16 %v5055
        %v5569 = vunpack.c.l.b16 %v5056
        %v5570 = vunpack.c.l.b16 %v5057
        %v5571 = vunpack.c.l.b16 %v5058
        %v5572 = vunpack.c.l.b16 %v5059
        %v5573 = vunpack.c.l.b16 %v5060
        %v5574 = vunpack.c.l.b16 %v5061
        %v5575 = vunpack.c.l.b16 %v5062
        %v5576 = vunpack.c.l.b16 %v5063
        %v5577 = vunpack.c.l.b16 %v5064
        %v5578 = vunpack.c.l.b16 %v5065
        %v5579 = vunpack.c.l.b16 %v5066
        %v5580 = vunpack.c.l.b16 %v5067
        %v5581 = vunpack.c.l.b16 %v5068
        %v5582 = vunpack.c.l.b16 %v5069
        %v5583 = vunpack.c.l.b16 %v5070
        %v5584 = vunpack.c.l.b16 %v5071
        %v5585 = vunpack.c.l.b16 %v5072
        %v5586 = vunpack.c.l.b16 %v5073
        %v5587 = vunpack.c.l.b16 %v5074
        %v5588 = vunpack.c.l.b16 %v5075
        %v5589 = vunpack.c.l.b16 %v5076
        %v5590 = vunpack.c.l.b16 %v5077
        %v5591 = vunpack.c.l.b16 %v5078
        %v5592 = vunpack.c.l.b16 %v5079
        %v5593 = vunpack.c.l.b16 %v5080
        %v5594 = vunpack.c.l.b16 %v5081
        %v5595 = vunpack.c.l.b16 %v5082
        %v5596 = vunpack.c.l.b16 %v5083
        %v5597 = vunpack.c.l.b16 %v5084
        %v5598 = vunpack.c.l.b16 %v5085
        %v5599 = vunpack.c.l.b16 %v5086
        %v5600 = vunpack.c.l.b16 %v5087
        %v5601 = vunpack.c.l.b16 %v5088
        %v5602 = vunpack.c.l.b16 %v5089
        %v5603 = vunpack.c.l.b16 %v5090
        %v5604 = vunpack.c.l.b16 %v5091
        %v5605 = vunpack.c.l.b16 %v5092
        %v5606 = vunpack.c.l.b16 %v5093
        %v5607 = vunpack.c.l.b16 %v5094
        %v5608 = vunpack.c.l.b16 %v5095
        %v5609 = vunpack.c.l.b16 %v5096
        %v5610 = vunpack.c.l.b16 %v5097
        %v5611 = vunpack.c.l.b16 %v5098
        %v5612 = vunpack.c.l.b16 %v5099
        %v5613 = vunpack.c.l.b16 %v5100
        %v5614 = vunpack.c.l.b16 %v5101
        %v5615 = vunpack.c.l.b16 %v5102
        %v5616 = vunpack.c.l.b16 %v5103
        %v5617 = vunpack.c.l.b16 %v5104
        %v5618 = vunpack.c.l.b16 %v5105
        %v5619 = vunpack.c.l.b16 %v5106
        %v5620 = vunpack.c.l.b16 %v5107
        %v5621 = vunpack.c.l.b16 %v5108
        %v5622 = vunpack.c.l.b16 %v5109
        %v5623 = vunpack.c.l.b16 %v5110
        %v5624 = vunpack.c.l.b16 %v5111
        %v5625 = vunpack.c.l.b16 %v5112
        %v5626 = vunpack.c.l.b16 %v5113
        %v5627 = vunpack.c.l.b16 %v5114
        %v5628 = vunpack.c.l.b16 %v5115
        %v5629 = vunpack.c.l.b16 %v5116
        %v5630 = vunpack.c.l.b16 %v5117
        %v5631 = vunpack.c.l.b16 %v5118
        %v5632 = vunpack.c.l.b16 %v5119
        %v5633 = vunpack.c.l.b16 %v5120
        %v5634 = vunpack.c.l.b16 %v5121
        %v5635 = vunpack.c.l.b16 %v5122
        %v5636 = vunpack.c.l.b16 %v5123
        %v5637 = vunpack.c.l.b16 %v5124
        %v5638 = vunpack.c.l.b16 %v5125
        %v5639 = vunpack.c.l.b16 %v5126
        %v5640 = vunpack.c.l.b16 %v5127
        %v5641 = vunpack.c.l.b16 %v5128
        %v5642 = vunpack.c.l.b16 %v5129
        %v5643 = vunpack.c.l.b16 %v5130
        %v5644 = vunpack.c.l.b16 %v5131
        %v5645 = vunpack.c.l.b16 %v5132
        %v5646 = vunpack.c.l.b16 %v5133
        %v5647 = vunpack.c.l.b16 %v5134
        %v5648 = vunpack.c.l.b16 %v5135
        %v5649 = vunpack.c.l.b16 %v5136
        %v5650 = vunpack.c.l.b16 %v5137
        %v5651 = vunpack.c.l.b16 %v5138
        %v5652 = vunpack.c.l.b16 %v5139
        %v5653 = vunpack.c.l.b16 %v5140
        %v5654 = vunpack.c.l.b16 %v5141
        %v5655 = vunpack.c.l.b16 %v5142
        %v5656 = vunpack.c.l.b16 %v5143
        %v5657 = vunpack.c.l.b16 %v5144
        %v5658 = vunpack.c.l.b16 %v5145
        %v5659 = vunpack.c.l.b16 %v5146
        %v5660 = vunpack.c.l.b16 %v5147
        %v5661 = vunpack.c.l.b16 %v5148
        %v5662 = vunpack.c.l.b16 %v5149
        %v5663 = vunpack.c.l.b16 %v5150
        %v5664 = vunpack.c.l.b16 %v5151
        %v5665 = vunpack.c.l.b16 %v5152
        %v5666 = vunpack.c.l.b16 %v5153
        %v5667 = vunpack.c.l.b16 %v5154
        %v5668 = vunpack.c.l.b16 %v5155
        %v5669 = vunpack.c.l.b16 %v5156
        %v5670 = vunpack.c.l.b16 %v5157
        %v5671 = vunpack.c.l.b16 %v5158
        %v5672 = vunpack.c.l.b16 %v5159
        %v5673 = vunpack.c.l.b16 %v5160
        %v5674 = vpack.c.b16 %v5419, %v5418
        %v5675 = vpack.c.b16 %v5421, %v5420
        %v5676 = vpack.c.b16 %v5423, %v5422
        %v5677 = vpack.c.b16 %v5425, %v5424
        %v5678 = vpack.c.b16 %v5427, %v5426
        %v5679 = vpack.c.b16 %v5429, %v5428
        %v5680 = vpack.c.b16 %v5431, %v5430
        %v5681 = vpack.c.b16 %v5433, %v5432
        %v5682 = vpack.c.b16 %v5435, %v5434
        %v5683 = vpack.c.b16 %v5437, %v5436
        %v5684 = vpack.c.b16 %v5439, %v5438
        %v5685 = vpack.c.b16 %v5441, %v5440
        %v5686 = vpack.c.b16 %v5443, %v5442
        %v5687 = vpack.c.b16 %v5445, %v5444
        %v5688 = vpack.c.b16 %v5447, %v5446
        %v5689 = vpack.c.b16 %v5449, %v5448
        %v5690 = vpack.c.b16 %v5451, %v5450
        %v5691 = vpack.c.b16 %v5453, %v5452
        %v5692 = vpack.c.b16 %v5455, %v5454
        %v5693 = vpack.c.b16 %v5457, %v5456
        %v5694 = vpack.c.b16 %v5459, %v5458
        %v5695 = vpack.c.b16 %v5461, %v5460
        %v5696 = vpack.c.b16 %v5463, %v5462
        %v5697 = vpack.c.b16 %v5465, %v5464
        %v5698 = vpack.c.b16 %v5467, %v5466
        %v5699 = vpack.c.b16 %v5469, %v5468
        %v5700 = vpack.c.b16 %v5471, %v5470
        %v5701 = vpack.c.b16 %v5473, %v5472
        %v5702 = vpack.c.b16 %v5475, %v5474
        %v5703 = vpack.c.b16 %v5477, %v5476
        %v5704 = vpack.c.b16 %v5479, %v5478
        %v5705 = vpack.c.b16 %v5481, %v5480
        %v5706 = vpack.c.b16 %v5483, %v5482
        %v5707 = vpack.c.b16 %v5485, %v5484
        %v5708 = vpack.c.b16 %v5487, %v5486
        %v5709 = vpack.c.b16 %v5489, %v5488
        %v5710 = vpack.c.b16 %v5491, %v5490
        %v5711 = vpack.c.b16 %v5493, %v5492
        %v5712 = vpack.c.b16 %v5495, %v5494
        %v5713 = vpack.c.b16 %v5497, %v5496
        %v5714 = vpack.c.b16 %v5499, %v5498
        %v5715 = vpack.c.b16 %v5501, %v5500
        %v5716 = vpack.c.b16 %v5503, %v5502
        %v5717 = vpack.c.b16 %v5505, %v5504
        %v5718 = vpack.c.b16 %v5507, %v5506
        %v5719 = vpack.c.b16 %v5509, %v5508
        %v5720 = vpack.c.b16 %v5511, %v5510
        %v5721 = vpack.c.b16 %v5513, %v5512
        %v5722 = vpack.c.b16 %v5515, %v5514
        %v5723 = vpack.c.b16 %v5517, %v5516
        %v5724 = vpack.c.b16 %v5519, %v5518
        %v5725 = vpack.c.b16 %v5521, %v5520
        %v5726 = vpack.c.b16 %v5523, %v5522
        %v5727 = vpack.c.b16 %v5525, %v5524
        %v5728 = vpack.c.b16 %v5527, %v5526
        %v5729 = vpack.c.b16 %v5529, %v5528
        %v5730 = vpack.c.b16 %v5531, %v5530
        %v5731 = vpack.c.b16 %v5533, %v5532
        %v5732 = vpack.c.b16 %v5535, %v5534
        %v5733 = vpack.c.b16 %v5537, %v5536
        %v5734 = vpack.c.b16 %v5539, %v5538
        %v5735 = vpack.c.b16 %v5541, %v5540
        %v5736 = vpack.c.b16 %v5543, %v5542
        %v5737 = vpack.c.b16 %v5545, %v5544
        %v5738 = vpack.c.b16 %v5547, %v5546
        %v5739 = vpack.c.b16 %v5549, %v5548
        %v5740 = vpack.c.b16 %v5551, %v5550
        %v5741 = vpack.c.b16 %v5553, %v5552
        %v5742 = vpack.c.b16 %v5555, %v5554
        %v5743 = vpack.c.b16 %v5557, %v5556
        %v5744 = vpack.c.b16 %v5559, %v5558
        %v5745 = vpack.c.b16 %v5561, %v5560
        %v5746 = vpack.c.b16 %v5563, %v5562
        %v5747 = vpack.c.b16 %v5565, %v5564
        %v5748 = vpack.c.b16 %v5567, %v5566
        %v5749 = vpack.c.b16 %v5569, %v5568
        %v5750 = vpack.c.b16 %v5571, %v5570
        %v5751 = vpack.c.b16 %v5573, %v5572
        %v5752 = vpack.c.b16 %v5575, %v5574
        %v5753 = vpack.c.b16 %v5577, %v5576
        %v5754 = vpack.c.b16 %v5579, %v5578
        %v5755 = vpack.c.b16 %v5581, %v5580
        %v5756 = vpack.c.b16 %v5583, %v5582
        %v5757 = vpack.c.b16 %v5585, %v5584
        %v5758 = vpack.c.b16 %v5587, %v5586
        %v5759 = vpack.c.b16 %v5589, %v5588
        %v5760 = vpack.c.b16 %v5591, %v5590
        %v5761 = vpack.c.b16 %v5593, %v5592
        %v5762 = vpack.c.b16 %v5595, %v5594
        %v5763 = vpack.c.b16 %v5597, %v5596
        %v5764 = vpack.c.b16 %v5599, %v5598
        %v5765 = vpack.c.b16 %v5601, %v5600
        %v5766 = vpack.c.b16 %v5603, %v5602
        %v5767 = vpack.c.b16 %v5605, %v5604
        %v5768 = vpack.c.b16 %v5607, %v5606
        %v5769 = vpack.c.b16 %v5609, %v5608
        %v5770 = vpack.c.b16 %v5611, %v5610
        %v5771 = vpack.c.b16 %v5613, %v5612
        %v5772 = vpack.c.b16 %v5615, %v5614
        %v5773 = vpack.c.b16 %v5617, %v5616
        %v5774 = vpack.c.b16 %v5619, %v5618
        %v5775 = vpack.c.b16 %v5621, %v5620
        %v5776 = vpack.c.b16 %v5623, %v5622
        %v5777 = vpack.c.b16 %v5625, %v5624
        %v5778 = vpack.c.b16 %v5627, %v5626
        %v5779 = vpack.c.b16 %v5629, %v5628
        %v5780 = vpack.c.b16 %v5631, %v5630
        %v5781 = vpack.c.b16 %v5633, %v5632
        %v5782 = vpack.c.b16 %v5635, %v5634
        %v5783 = vpack.c.b16 %v5637, %v5636
        %v5784 = vpack.c.b16 %v5639, %v5638
        %v5785 = vpack.c.b16 %v5641, %v5640
        %v5786 = vpack.c.b16 %v5643, %v5642
        %v5787 = vpack.c.b16 %v5645, %v5644
        %v5788 = vpack.c.b16 %v5647, %v5646
        %v5789 = vpack.c.b16 %v5649, %v5648
        %v5790 = vpack.c.b16 %v5651, %v5650
        %v5791 = vpack.c.b16 %v5653, %v5652
        %v5792 = vpack.c.b16 %v5655, %v5654
        %v5793 = vpack.c.b16 %v5657, %v5656
        %v5794 = vpack.c.b16 %v5659, %v5658
        %v5795 = vpack.c.b16 %v5661, %v5660
        %v5796 = vpack.c.b16 %v5663, %v5662
        %v5797 = vpack.c.b16 %v5665, %v5664
        %v5798 = vpack.c.b16 %v5667, %v5666
        %v5799 = vpack.c.b16 %v5669, %v5668
        %v5800 = vpack.c.b16 %v5671, %v5670
        %v5801 = vpack.c.b16 %v5673, %v5672
        %5930 = vmatprep.subr.bf16.mxu0 0
        %5931 = vmatpush1.bf16.msra.mxu0 %v5674
        %5932 = vmatprep.subr.bf16.mxu0 0
        %5933 = vmatpush1.bf16.msra.mxu0 %v5675
        %5934 = vmatprep.subr.bf16.mxu0 0
        %5935 = vmatpush1.bf16.msra.mxu0 %v5676
        %5936 = vmatprep.subr.bf16.mxu0 0
        %5937 = vmatpush1.bf16.msra.mxu0 %v5677
        %5938 = vmatprep.subr.bf16.mxu0 0
        %5939 = vmatpush1.bf16.msra.mxu0 %v5678
        %5940 = vmatprep.subr.bf16.mxu0 0
        %5941 = vmatpush1.bf16.msra.mxu0 %v5679
        %5942 = vmatprep.subr.bf16.mxu0 0
        %5943 = vmatpush1.bf16.msra.mxu0 %v5680
        %5944 = vmatprep.subr.bf16.mxu0 0
        %5945 = vmatpush1.bf16.msra.mxu0 %v5681
        %5946 = vmatprep.subr.bf16.mxu0 0
        %5947 = vmatpush1.bf16.msra.mxu0 %v5682
        %5948 = vmatprep.subr.bf16.mxu0 0
        %5949 = vmatpush1.bf16.msra.mxu0 %v5683
        %5950 = vmatprep.subr.bf16.mxu0 0
        %5951 = vmatpush1.bf16.msra.mxu0 %v5684
        %5952 = vmatprep.subr.bf16.mxu0 0
        %5953 = vmatpush1.bf16.msra.mxu0 %v5685
        %5954 = vmatprep.subr.bf16.mxu0 0
        %5955 = vmatpush1.bf16.msra.mxu0 %v5686
        %5956 = vmatprep.subr.bf16.mxu0 0
        %5957 = vmatpush1.bf16.msra.mxu0 %v5687
        %5958 = vmatprep.subr.bf16.mxu0 0
        %5959 = vmatpush1.bf16.msra.mxu0 %v5688
        %5960 = vmatprep.subr.bf16.mxu0 0
        %5961 = vmatpush1.bf16.msra.mxu0 %v5689
        %5962 = vmatprep.mubr.bf16.mxu0 %v4890
        %5963 = vmatmul.mubr.bf16.gmra.mrb[0].mxu0 %v4889
        %v5964 = vpop.f32.mrb[0].mxu0
        %v5965 = vadd.f32 %v5161, %v5964
        %v5966 = vpop.f32.mrb[0].mxu0
        %v5967 = vpop.f32.mrb[0].mxu0
        %v5968 = vpop.f32.mrb[0].mxu0
        %5969 = vdwg.mxu0
        %5970 = vmatprep.subr.bf16.mxu0 0
        %5971 = vmatpush1.bf16.msra.mxu0 %v5690
        %5972 = vmatprep.subr.bf16.mxu0 0
        %5973 = vmatpush1.bf16.msra.mxu0 %v5691
        %5974 = vmatprep.subr.bf16.mxu0 0
        %5975 = vmatpush1.bf16.msra.mxu0 %v5692
        %5976 = vmatprep.subr.bf16.mxu0 0
        %5977 = vmatpush1.bf16.msra.mxu0 %v5693
        %5978 = vmatprep.subr.bf16.mxu0 0
        %5979 = vmatpush1.bf16.msra.mxu0 %v5694
        %5980 = vmatprep.subr.bf16.mxu0 0
        %5981 = vmatpush1.bf16.msra.mxu0 %v5695
        %5982 = vmatprep.subr.bf16.mxu0 0
        %5983 = vmatpush1.bf16.msra.mxu0 %v5696
        %5984 = vmatprep.subr.bf16.mxu0 0
        %5985 = vmatpush1.bf16.msra.mxu0 %v5697
        %5986 = vmatprep.subr.bf16.mxu0 0
        %5987 = vmatpush1.bf16.msra.mxu0 %v5698
        %5988 = vmatprep.subr.bf16.mxu0 0
        %5989 = vmatpush1.bf16.msra.mxu0 %v5699
        %5990 = vmatprep.subr.bf16.mxu0 0
        %5991 = vmatpush1.bf16.msra.mxu0 %v5700
        %5992 = vmatprep.subr.bf16.mxu0 0
        %5993 = vmatpush1.bf16.msra.mxu0 %v5701
        %5994 = vmatprep.subr.bf16.mxu0 0
        %5995 = vmatpush1.bf16.msra.mxu0 %v5702
        %5996 = vmatprep.subr.bf16.mxu0 0
        %5997 = vmatpush1.bf16.msra.mxu0 %v5703
        %5998 = vmatprep.subr.bf16.mxu0 0
        %5999 = vmatpush1.bf16.msra.mxu0 %v5704
        %6000 = vmatprep.subr.bf16.mxu0 0
        %6001 = vmatpush1.bf16.msra.mxu0 %v5705
        %6002 = vmatprep.mubr.bf16.mxu0 %v4892
        %6003 = vmatmul.mubr.bf16.gmra.mrb[0].mxu0 %v4891
        %v6004 = vpop.f32.mrb[0].mxu0
        %v6005 = vadd.f32 %v5965, %v6004
        %v6006 = vpop.f32.mrb[0].mxu0
        %v6007 = vpop.f32.mrb[0].mxu0
        %v6008 = vpop.f32.mrb[0].mxu0
        %6009 = vdwg.mxu0
        %6010 = vmatprep.subr.bf16.mxu0 0
        %6011 = vmatpush1.bf16.msra.mxu0 %v5706
        %6012 = vmatprep.subr.bf16.mxu0 0
        %6013 = vmatpush1.bf16.msra.mxu0 %v5707
        %6014 = vmatprep.subr.bf16.mxu0 0
        %6015 = vmatpush1.bf16.msra.mxu0 %v5708
        %6016 = vmatprep.subr.bf16.mxu0 0
        %6017 = vmatpush1.bf16.msra.mxu0 %v5709
        %6018 = vmatprep.subr.bf16.mxu0 0
        %6019 = vmatpush1.bf16.msra.mxu0 %v5710
        %6020 = vmatprep.subr.bf16.mxu0 0
        %6021 = vmatpush1.bf16.msra.mxu0 %v5711
        %6022 = vmatprep.subr.bf16.mxu0 0
        %6023 = vmatpush1.bf16.msra.mxu0 %v5712
        %6024 = vmatprep.subr.bf16.mxu0 0
        %6025 = vmatpush1.bf16.msra.mxu0 %v5713
        %6026 = vmatprep.subr.bf16.mxu0 0
        %6027 = vmatpush1.bf16.msra.mxu0 %v5714
        %6028 = vmatprep.subr.bf16.mxu0 0
        %6029 = vmatpush1.bf16.msra.mxu0 %v5715
        %6030 = vmatprep.subr.bf16.mxu0 0
        %6031 = vmatpush1.bf16.msra.mxu0 %v5716
        %6032 = vmatprep.subr.bf16.mxu0 0
        %6033 = vmatpush1.bf16.msra.mxu0 %v5717
        %6034 = vmatprep.subr.bf16.mxu0 0
        %6035 = vmatpush1.bf16.msra.mxu0 %v5718
        %6036 = vmatprep.subr.bf16.mxu0 0
        %6037 = vmatpush1.bf16.msra.mxu0 %v5719
        %6038 = vmatprep.subr.bf16.mxu0 0
        %6039 = vmatpush1.bf16.msra.mxu0 %v5720
        %6040 = vmatprep.subr.bf16.mxu0 0
        %6041 = vmatpush1.bf16.msra.mxu0 %v5721
        %6042 = vmatprep.mubr.bf16.mxu0 %v4894
        %6043 = vmatmul.mubr.bf16.gmra.mrb[0].mxu0 %v4893
        %v6044 = vpop.f32.mrb[0].mxu0
        %v6045 = vadd.f32 %v6005, %v6044
        %v6046 = vpop.f32.mrb[0].mxu0
        %v6047 = vpop.f32.mrb[0].mxu0
        %v6048 = vpop.f32.mrb[0].mxu0
        %6049 = vdwg.mxu0
        %6050 = vmatprep.subr.bf16.mxu0 0
        %6051 = vmatpush1.bf16.msra.mxu0 %v5722
        %6052 = vmatprep.subr.bf16.mxu0 0
        %6053 = vmatpush1.bf16.msra.mxu0 %v5723
        %6054 = vmatprep.subr.bf16.mxu0 0
        %6055 = vmatpush1.bf16.msra.mxu0 %v5724
        %6056 = vmatprep.subr.bf16.mxu0 0
        %6057 = vmatpush1.bf16.msra.mxu0 %v5725
        %6058 = vmatprep.subr.bf16.mxu0 0
        %6059 = vmatpush1.bf16.msra.mxu0 %v5726
        %6060 = vmatprep.subr.bf16.mxu0 0
        %6061 = vmatpush1.bf16.msra.mxu0 %v5727
        %6062 = vmatprep.subr.bf16.mxu0 0
        %6063 = vmatpush1.bf16.msra.mxu0 %v5728
        %6064 = vmatprep.subr.bf16.mxu0 0
        %6065 = vmatpush1.bf16.msra.mxu0 %v5729
        %6066 = vmatprep.subr.bf16.mxu0 0
        %6067 = vmatpush1.bf16.msra.mxu0 %v5730
        %6068 = vmatprep.subr.bf16.mxu0 0
        %6069 = vmatpush1.bf16.msra.mxu0 %v5731
        %6070 = vmatprep.subr.bf16.mxu0 0
        %6071 = vmatpush1.bf16.msra.mxu0 %v5732
        %6072 = vmatprep.subr.bf16.mxu0 0
        %6073 = vmatpush1.bf16.msra.mxu0 %v5733
        %6074 = vmatprep.subr.bf16.mxu0 0
        %6075 = vmatpush1.bf16.msra.mxu0 %v5734
        %6076 = vmatprep.subr.bf16.mxu0 0
        %6077 = vmatpush1.bf16.msra.mxu0 %v5735
        %6078 = vmatprep.subr.bf16.mxu0 0
        %6079 = vmatpush1.bf16.msra.mxu0 %v5736
        %6080 = vmatprep.subr.bf16.mxu0 0
        %6081 = vmatpush1.bf16.msra.mxu0 %v5737
        %6082 = vmatprep.mubr.bf16.mxu0 %v4896
        %6083 = vmatmul.mubr.bf16.gmra.mrb[0].mxu0 %v4895
        %v6084 = vpop.f32.mrb[0].mxu0
        %v6085 = vadd.f32 %v6045, %v6084
        %v6086 = vpop.f32.mrb[0].mxu0
        %v6087 = vpop.f32.mrb[0].mxu0
        %v6088 = vpop.f32.mrb[0].mxu0
        %6089 = vdwg.mxu0
        %6090 = vmatprep.subr.bf16.mxu0 0
        %6091 = vmatpush1.bf16.msra.mxu0 %v5738
        %6092 = vmatprep.subr.bf16.mxu0 0
        %6093 = vmatpush1.bf16.msra.mxu0 %v5739
        %6094 = vmatprep.subr.bf16.mxu0 0
        %6095 = vmatpush1.bf16.msra.mxu0 %v5740
        %6096 = vmatprep.subr.bf16.mxu0 0
        %6097 = vmatpush1.bf16.msra.mxu0 %v5741
        %6098 = vmatprep.subr.bf16.mxu0 0
        %6099 = vmatpush1.bf16.msra.mxu0 %v5742
        %6100 = vmatprep.subr.bf16.mxu0 0
        %6101 = vmatpush1.bf16.msra.mxu0 %v5743
        %6102 = vmatprep.subr.bf16.mxu0 0
        %6103 = vmatpush1.bf16.msra.mxu0 %v5744
        %6104 = vmatprep.subr.bf16.mxu0 0
        %6105 = vmatpush1.bf16.msra.mxu0 %v5745
        %6106 = vmatprep.subr.bf16.mxu0 0
        %6107 = vmatpush1.bf16.msra.mxu0 %v5746
        %6108 = vmatprep.subr.bf16.mxu0 0
        %6109 = vmatpush1.bf16.msra.mxu0 %v5747
        %6110 = vmatprep.subr.bf16.mxu0 0
        %6111 = vmatpush1.bf16.msra.mxu0 %v5748
        %6112 = vmatprep.subr.bf16.mxu0 0
        %6113 = vmatpush1.bf16.msra.mxu0 %v5749
        %6114 = vmatprep.subr.bf16.mxu0 0
        %6115 = vmatpush1.bf16.msra.mxu0 %v5750
        %6116 = vmatprep.subr.bf16.mxu0 0
        %6117 = vmatpush1.bf16.msra.mxu0 %v5751
        %6118 = vmatprep.subr.bf16.mxu0 0
        %6119 = vmatpush1.bf16.msra.mxu0 %v5752
        %6120 = vmatprep.subr.bf16.mxu0 0
        %6121 = vmatpush1.bf16.msra.mxu0 %v5753
        %6122 = vmatprep.mubr.bf16.mxu0 %v4898
        %6123 = vmatmul.mubr.bf16.gmra.mrb[0].mxu0 %v4897
        %v6124 = vpop.f32.mrb[0].mxu0
        %v6125 = vadd.f32 %v6085, %v6124
        %v6126 = vpop.f32.mrb[0].mxu0
        %v6127 = vpop.f32.mrb[0].mxu0
        %v6128 = vpop.f32.mrb[0].mxu0
        %6129 = vdwg.mxu0
        %6130 = vmatprep.subr.bf16.mxu0 0
        %6131 = vmatpush1.bf16.msra.mxu0 %v5754
        %6132 = vmatprep.subr.bf16.mxu0 0
        %6133 = vmatpush1.bf16.msra.mxu0 %v5755
        %6134 = vmatprep.subr.bf16.mxu0 0
        %6135 = vmatpush1.bf16.msra.mxu0 %v5756
        %6136 = vmatprep.subr.bf16.mxu0 0
        %6137 = vmatpush1.bf16.msra.mxu0 %v5757
        %6138 = vmatprep.subr.bf16.mxu0 0
        %6139 = vmatpush1.bf16.msra.mxu0 %v5758
        %6140 = vmatprep.subr.bf16.mxu0 0
        %6141 = vmatpush1.bf16.msra.mxu0 %v5759
        %6142 = vmatprep.subr.bf16.mxu0 0
        %6143 = vmatpush1.bf16.msra.mxu0 %v5760
        %6144 = vmatprep.subr.bf16.mxu0 0
        %6145 = vmatpush1.bf16.msra.mxu0 %v5761
        %6146 = vmatprep.subr.bf16.mxu0 0
        %6147 = vmatpush1.bf16.msra.mxu0 %v5762
        %6148 = vmatprep.subr.bf16.mxu0 0
        %6149 = vmatpush1.bf16.msra.mxu0 %v5763
        %6150 = vmatprep.subr.bf16.mxu0 0
        %6151 = vmatpush1.bf16.msra.mxu0 %v5764
        %6152 = vmatprep.subr.bf16.mxu0 0
        %6153 = vmatpush1.bf16.msra.mxu0 %v5765
        %6154 = vmatprep.subr.bf16.mxu0 0
        %6155 = vmatpush1.bf16.msra.mxu0 %v5766
        %6156 = vmatprep.subr.bf16.mxu0 0
        %6157 = vmatpush1.bf16.msra.mxu0 %v5767
        %6158 = vmatprep.subr.bf16.mxu0 0
        %6159 = vmatpush1.bf16.msra.mxu0 %v5768
        %6160 = vmatprep.subr.bf16.mxu0 0
        %6161 = vmatpush1.bf16.msra.mxu0 %v5769
        %6162 = vmatprep.mubr.bf16.mxu0 %v4900
        %6163 = vmatmul.mubr.bf16.gmra.mrb[0].mxu0 %v4899
        %v6164 = vpop.f32.mrb[0].mxu0
        %v6165 = vadd.f32 %v6125, %v6164
        %v6166 = vpop.f32.mrb[0].mxu0
        %v6167 = vpop.f32.mrb[0].mxu0
        %v6168 = vpop.f32.mrb[0].mxu0
        %6169 = vdwg.mxu0
        %6170 = vmatprep.subr.bf16.mxu0 0
        %6171 = vmatpush1.bf16.msra.mxu0 %v5770
        %6172 = vmatprep.subr.bf16.mxu0 0
        %6173 = vmatpush1.bf16.msra.mxu0 %v5771
        %6174 = vmatprep.subr.bf16.mxu0 0
        %6175 = vmatpush1.bf16.msra.mxu0 %v5772
        %6176 = vmatprep.subr.bf16.mxu0 0
        %6177 = vmatpush1.bf16.msra.mxu0 %v5773
        %6178 = vmatprep.subr.bf16.mxu0 0
        %6179 = vmatpush1.bf16.msra.mxu0 %v5774
        %6180 = vmatprep.subr.bf16.mxu0 0
        %6181 = vmatpush1.bf16.msra.mxu0 %v5775
        %6182 = vmatprep.subr.bf16.mxu0 0
        %6183 = vmatpush1.bf16.msra.mxu0 %v5776
        %6184 = vmatprep.subr.bf16.mxu0 0
        %6185 = vmatpush1.bf16.msra.mxu0 %v5777
        %6186 = vmatprep.subr.bf16.mxu0 0
        %6187 = vmatpush1.bf16.msra.mxu0 %v5778
        %6188 = vmatprep.subr.bf16.mxu0 0
        %6189 = vmatpush1.bf16.msra.mxu0 %v5779
        %6190 = vmatprep.subr.bf16.mxu0 0
        %6191 = vmatpush1.bf16.msra.mxu0 %v5780
        %6192 = vmatprep.subr.bf16.mxu0 0
        %6193 = vmatpush1.bf16.msra.mxu0 %v5781
        %6194 = vmatprep.subr.bf16.mxu0 0
        %6195 = vmatpush1.bf16.msra.mxu0 %v5782
        %6196 = vmatprep.subr.bf16.mxu0 0
        %6197 = vmatpush1.bf16.msra.mxu0 %v5783
        %6198 = vmatprep.subr.bf16.mxu0 0
        %6199 = vmatpush1.bf16.msra.mxu0 %v5784
        %6200 = vmatprep.subr.bf16.mxu0 0
        %6201 = vmatpush1.bf16.msra.mxu0 %v5785
        %6202 = vmatprep.mubr.bf16.mxu0 %v4902
        %6203 = vmatmul.mubr.bf16.gmra.mrb[0].mxu0 %v4901
        %v6204 = vpop.f32.mrb[0].mxu0
        %v6205 = vadd.f32 %v6165, %v6204
        %v6206 = vpop.f32.mrb[0].mxu0
        %v6207 = vpop.f32.mrb[0].mxu0
        %v6208 = vpop.f32.mrb[0].mxu0
        %6209 = vdwg.mxu0
        %6210 = vmatprep.subr.bf16.mxu0 0
        %6211 = vmatpush1.bf16.msra.mxu0 %v5786
        %6212 = vmatprep.subr.bf16.mxu0 0
        %6213 = vmatpush1.bf16.msra.mxu0 %v5787
        %6214 = vmatprep.subr.bf16.mxu0 0
        %6215 = vmatpush1.bf16.msra.mxu0 %v5788
        %6216 = vmatprep.subr.bf16.mxu0 0
        %6217 = vmatpush1.bf16.msra.mxu0 %v5789
        %6218 = vmatprep.subr.bf16.mxu0 0
        %6219 = vmatpush1.bf16.msra.mxu0 %v5790
        %6220 = vmatprep.subr.bf16.mxu0 0
        %6221 = vmatpush1.bf16.msra.mxu0 %v5791
        %6222 = vmatprep.subr.bf16.mxu0 0
        %6223 = vmatpush1.bf16.msra.mxu0 %v5792
        %6224 = vmatprep.subr.bf16.mxu0 0
        %6225 = vmatpush1.bf16.msra.mxu0 %v5793
        %6226 = vmatprep.subr.bf16.mxu0 0
        %6227 = vmatpush1.bf16.msra.mxu0 %v5794
        %6228 = vmatprep.subr.bf16.mxu0 0
        %6229 = vmatpush1.bf16.msra.mxu0 %v5795
        %6230 = vmatprep.subr.bf16.mxu0 0
        %6231 = vmatpush1.bf16.msra.mxu0 %v5796
        %6232 = vmatprep.subr.bf16.mxu0 0
        %6233 = vmatpush1.bf16.msra.mxu0 %v5797
        %6234 = vmatprep.subr.bf16.mxu0 0
        %6235 = vmatpush1.bf16.msra.mxu0 %v5798
        %6236 = vmatprep.subr.bf16.mxu0 0
        %6237 = vmatpush1.bf16.msra.mxu0 %v5799
        %6238 = vmatprep.subr.bf16.mxu0 0
        %6239 = vmatpush1.bf16.msra.mxu0 %v5800
        %6240 = vmatprep.subr.bf16.mxu0 0
        %6241 = vmatpush1.bf16.msra.mxu0 %v5801
        %6242 = vmatprep.mubr.bf16.mxu0 %v4904
        %6243 = vmatmul.mubr.bf16.gmra.mrb[0].mxu0 %v4903
        %v6244 = vpop.f32.mrb[0].mxu0
        %v6245 = vadd.f32 %v6205, %v6244
        %v6246 = vpop.f32.mrb[0].mxu0
        %v6247 = vpop.f32.mrb[0].mxu0
        %v6248 = vpop.f32.mrb[0].mxu0
        %6249 = vdwg.mxu0
        %6250 = vst [vmem:[%s270] sm:$0x1] %v6245
        %s6251 = sand.u32 %s181, 1
        %s6252 = scalar_lea.sflag [#allocation6], %s6251
        %s6253 = sand.u32 %s181, 1
        %s6254 = scalar_lea.vmem [#allocation5], %s6253
        // Predicated region
        $region49: #{classifier_forward.1} parent=47 // pred_check
          %p6255 = pneg %p191
        $region50: #{classifier_forward.1} parent=47 // pred_check_branch
          %6257 = sbr.rel (%p6255) target = $region52
        $region51: #{classifier_forward.1} parent=47 // pred_region
          %s6259 = ssub.s32 16, 16
          %6260 = vsyncadd %s6252, %s6259
          %s6261 = smul.addr %s21, 16
          %s6262 = scalar_lea.hbm %s7, %s6261
          %s6264 = sshll.u32 %s6254, 4
          %s6265 = int_to_ptr.vmem [resolvable:$true] %s6264
          %6267 = dma.vmem_to_hbm [thread:$0]  %s6265, 16, %s6262, %s6252
        $region52: #{classifier_forward.1} parent=47 // pred_fallthru
          _
      $region48: #{classifier_forward.1} parent=5 // pred_fallthru
        _
      %p6268 = scmp.le.s32.totalorder 2, %s16
      // Predicated region
      $region53: #{classifier_forward.1} parent=5 // pred_check
        %p6269 = pneg %p6268
      $region54: #{classifier_forward.1} parent=5 // pred_check_branch
        %6271 = sbr.rel (%p6269) target = $region56
      $region55: #{classifier_forward.1} parent=5 // pred_region
        %s6272 = ssub.s32 %s16, 2
        // Predicated region
        $region57: #{classifier_forward.1} parent=55 // pred_check
          %p6273 = pneg %p197
        $region58: #{classifier_forward.1} parent=55 // pred_check_branch
          %6275 = sbr.rel (%p6273) target = $region60
        $region59: #{classifier_forward.1} parent=55 // pred_region
          %s6276 = sand.u32 %s182, 1
          %s6277 = scalar_lea.sflag [#allocation6], %s6276
          %s6278 = sand.u32 %s182, 1
          %s6279 = scalar_lea.vmem [#allocation5], %s6278
          %6280 = dma.done %s6277, 16
        $region60: #{classifier_forward.1} parent=55 // pred_fallthru
          _
      $region56: #{classifier_forward.1} parent=5 // pred_fallthru
        _
    $region6: #{classifier_forward.1} parent=1 // loop_footer
      %s20 = sadd.s32 1, %s16
    $region7: #{classifier_forward.1} parent=1 // loop_footer_branch
      %15 = sbr.rel target = $region3
    $region8: #{classifier_forward.1} parent=1 // loop_exit
      _
    %6281 = vsyncpa [#allocation6], 1
    %s6282 = scalar_lea.sflag [#allocation6], 1
    %6283 = vsyncpa %s6282, 1

</llo_original>
